<compile_context>
chip_gen: v5e
topology: v5e:2x2
jax: 0.10.0
libtpu: 0.0.40
codegen_flags: <defaults>
</compile_context>

<pallas_src>
import numpy as np
import jax
import jax.numpy as jnp
from jax.experimental import pallas as pl
from jax.experimental.pallas import tpu as pltpu


# ----------------------------------------------------------------------------
# Fused kernel: one batch tile (TB samples, rt = TB*8 rows) per grid step.
#   x_ref   : (2, rt, 256) bf16  parity-packed input rows (row = n*8 + u)
#   b1_ref  : (2, 256, 512) bf16 conv1 band matrices (K packed in pairs)
#   s1/t1   : (1, 512) f32       folded BN1 scale/bias, per output lane
#   c2_ref  : (2, 256, 512) bf16 conv2 band matrices
#   s2/t2   : (1, 512) f32       folded BN2 scale/bias
#   sel_ref : (6, TB, rt-2) bf16 one-hot flatten selectors (row n*8+po)
#   wf*/bf* : fc weights (bf16) / biases (f32), all padded to 128 lanes
#   out_ref : (TB, 128) f32      logits (cols >= 10 are zero)
# ----------------------------------------------------------------------------
def _lenet5_kernel(x_ref, b1_ref, s1_ref, t1_ref, c2_ref, s2_ref, t2_ref,
                   sel_ref, wf1_ref, bf1_ref, wf2_ref, bf2_ref, wf3_ref,
                   bf3_ref, out_ref):
    rt = x_ref.shape[1]                 # TB * 8
    r2 = rt - 2

    def mm(a, b):
        return jnp.dot(a, b, preferred_element_type=jnp.float32)

    def bn_relu_pool(z, s, t):
        # Folded BN + ReLU in f32, then max over the 4 (di,dj) pool quadrants.
        # Quadrants are at 128-aligned lane offsets -> slices are free vreg views.
        z = jnp.maximum(z * s + t, 0.0)
        return jnp.maximum(jnp.maximum(z[:, 0:128], z[:, 128:256]),
                           jnp.maximum(z[:, 256:384], z[:, 384:512]))

    x01 = x_ref[0]                      # (rt, 256): h%4==0 @ lanes 0.., h%4==1 @ 128..
    x23 = x_ref[1]                      # (rt, 256): h%4==2 @ lanes 0.., h%4==3 @ 128..

    # ---- conv1 + BN + ReLU + 2x2/2 maxpool (K packed to 256) -------------
    # even pooled rows (ho = 2u): input rows 4u .. 4u+3
    z_e = mm(x01, b1_ref[0]) + mm(x23, b1_ref[1])                   # (rt, 512)
    # odd pooled rows (ho = 2u+1): input rows 4u+2 .. 4u+5 -> x23[u], x01[u+1]
    # NOTE: per-sample row u=7 of z_o/p_o (and rows u>=6 of z2 below) read the
    # next sample's first row / zero padding and are garbage; they are never
    # selected by the flatten (po <= 5), so results stay correct.  Do not change
    # the 8-rows-per-sample layout or the pool sizes without revisiting this.
    z_o = mm(x23[0:rt - 1], b1_ref[0]) + mm(x01[1:rt], b1_ref[1])   # (rt-1, 512)
    p_e = bn_relu_pool(z_e, s1_ref[...], t1_ref[...]).astype(jnp.bfloat16)  # (rt, 128)
    p_o = bn_relu_pool(z_o, s1_ref[...], t1_ref[...]).astype(jnp.bfloat16)  # (rt-1, 128)

    # ---- conv2 + BN + ReLU + pool: pack (p_e | p_o) at lanes 0/128, K=256 --
    pk = jnp.concatenate([p_e[0:r2], p_o[0:r2]], axis=1)            # (r2, 256)
    pk1 = jnp.concatenate([p_e[1:r2 + 1], p_o[1:r2 + 1]], axis=1)   # +1 row shift
    z2 = mm(pk, c2_ref[0]) + mm(pk1, c2_ref[1])                     # (r2, 512)
    p2 = bn_relu_pool(z2, s2_ref[...], t2_ref[...]).astype(jnp.bfloat16)    # (r2, 128)

    # ---- flatten: precomputed one-hot selectors pick row n*8+po per sample;
    # pieces concatenate at 128-aligned lane offsets (f lane = po*128 + w*16 + c).
    pieces = [mm(sel_ref[po], p2) for po in range(6)]               # 6 x (TB, 128)
    f = jnp.concatenate(pieces, axis=1).astype(jnp.bfloat16)        # (TB, 768)

    # ---- fc1 -> fc2 -> fc3 (Dropout = identity in eval mode) --------------
    h1 = jnp.maximum(mm(f, wf1_ref[...]) + bf1_ref[...], 0.0).astype(jnp.bfloat16)
    h2 = jnp.maximum(mm(h1, wf2_ref[...]) + bf2_ref[...], 0.0).astype(jnp.bfloat16)
    out_ref[...] = mm(h2, wf3_ref[...]) + bf3_ref[...]              # (TB, 128)


# ----------------------------------------------------------------------------
# One-time parameter preprocessing (hoisted out of the forward).
# ----------------------------------------------------------------------------
def _conv_band(w, win, wout, j):
    """Band matrix B_j (j = di + ky): input row lanes (wi*Cin + ci) ->
    pooled-conv lanes (q*128 + wo*Cout + co), q = di*2 + dj the pool position."""
    w = np.asarray(w, np.float32)
    cout, cin, kh, kw = w.shape
    mat = np.zeros((win * cin, 4 * 128), np.float32)
    for di in range(2):
        ky = j - di
        if not 0 <= ky < kh:
            continue
        for dj in range(2):
            q = di * 2 + dj
            for wo in range(wout):
                for kx in range(kw):
                    wi = 2 * wo + dj + kx
                    if wi >= win:
                        continue
                    a0 = wi * cin
                    b0 = q * 128 + wo * cout
                    mat[a0:a0 + cin, b0:b0 + cout] = w[:, :, ky, kx].T
    return mat


def _pack_pair(m_lo, m_hi):
    """Stack two band matrices along K at row offsets 0 and 128 (K = 256)."""
    out = np.zeros((256, 512), np.float32)
    out[:m_lo.shape[0], :] = m_lo
    out[128:128 + m_hi.shape[0], :] = m_hi
    return out


def _fold_bn(conv_bias, gamma, beta, mean, var, eps=1e-5):
    scale = np.asarray(gamma, np.float32) / np.sqrt(np.asarray(var, np.float32) + eps)
    bias = (np.asarray(conv_bias, np.float32) - np.asarray(mean, np.float32)) * scale \
        + np.asarray(beta, np.float32)
    return scale, bias


def _bn_lanes(vec, reps, used):
    """Tile a per-channel vector over the (wo, co) lane layout of one quadrant,
    zero-pad to 128 lanes, replicate for the 4 quadrants -> (1, 512)."""
    pat = np.zeros(128, np.float32)
    pat[:used] = np.tile(np.asarray(vec, np.float32), reps)
    return np.tile(pat, 4).reshape(1, 512)


def prepare_params(params):
    prep = {}
    # conv1: 30x30x3 -> (pool) 14x14x6 ; conv2: 14x14x6 -> (pool) 6x6x16
    b1 = [_conv_band(params["w_conv1"], 30, 14, j) for j in range(4)]
    c2 = [_conv_band(params["w_conv2"], 14, 6, j) for j in range(4)]
    prep["b1"] = jnp.asarray(np.stack([_pack_pair(b1[0], b1[1]),
                                       _pack_pair(b1[2], b1[3])]), jnp.bfloat16)
    prep["c2"] = jnp.asarray(np.stack([_pack_pair(c2[0], c2[1]),
                                       _pack_pair(c2[2], c2[3])]), jnp.bfloat16)

    s1, t1 = _fold_bn(params["b_conv1"], params["bn1_gamma"], params["bn1_beta"],
                      params["bn1_mean"], params["bn1_var"])
    s2, t2 = _fold_bn(params["b_conv2"], params["bn2_gamma"], params["bn2_beta"],
                      params["bn2_mean"], params["bn2_var"])
    prep["s1"] = jnp.asarray(_bn_lanes(s1, 14, 84), jnp.float32)
    prep["t1"] = jnp.asarray(_bn_lanes(t1, 14, 84), jnp.float32)
    prep["s2"] = jnp.asarray(_bn_lanes(s2, 6, 96), jnp.float32)
    prep["t2"] = jnp.asarray(_bn_lanes(t2, 6, 96), jnp.float32)

    # fc1: torch flatten order (c, ph, pw) -> kernel lane order (ph, pw*16 + c),
    # padded to 128 lanes per ph (K = 6*128 = 768) and 128 output lanes.
    wf1 = np.asarray(params["w_fc1"], np.float32).reshape(120, 16, 6, 6)
    wf1 = wf1.transpose(2, 3, 1, 0).reshape(6, 96, 120)             # (ph, pw*c, out)
    wf1_p = np.zeros((6, 128, 128), np.float32)
    wf1_p[:, :96, :120] = wf1
    prep["wf1"] = jnp.asarray(wf1_p.reshape(768, 128), jnp.bfloat16)
    bf1 = np.zeros((1, 128), np.float32)
    bf1[0, :120] = np.asarray(params["b_fc1"], np.float32)
    prep["bf1"] = jnp.asarray(bf1)

    wf2_p = np.zeros((128, 128), np.float32)
    wf2_p[:120, :84] = np.asarray(params["w_fc2"], np.float32).T
    prep["wf2"] = jnp.asarray(wf2_p, jnp.bfloat16)
    bf2 = np.zeros((1, 128), np.float32)
    bf2[0, :84] = np.asarray(params["b_fc2"], np.float32)
    prep["bf2"] = jnp.asarray(bf2)

    # NOTE: columns 10..127 of wf3/bf3 must stay exactly zero — the kernel
    # writes all 128 output lanes and the wrapper slices [:, :10].
    wf3_p = np.zeros((128, 128), np.float32)
    wf3_p[:84, :10] = np.asarray(params["w_fc3"], np.float32).T
    prep["wf3"] = jnp.asarray(wf3_p, jnp.bfloat16)
    bf3 = np.zeros((1, 128), np.float32)
    bf3[0, :10] = np.asarray(params["b_fc3"], np.float32)
    prep["bf3"] = jnp.asarray(bf3)
    return prep


# ----------------------------------------------------------------------------
# Forward wrapper: input packing + pallas_call.
# ----------------------------------------------------------------------------
def _pick_tiling(n):
    if n <= 8:
        return n, n                              # single grid step (tiny batch)
    half = -(-n // 2)                            # >= 2 steps so v7x's 2nd TC gets work
    tb = min(128, ((half + 7) // 8) * 8)         # multiple of 8, capped at 128
    n_pad = ((n + tb - 1) // tb) * tb
    return tb, n_pad


def _prep_input(x_nchw, n_pad):
    # TODO(synk): this NCHW -> parity-packed relayout runs as XLA ops and costs
    # an extra HBM round-trip over the activations; fold it into the data
    # producer (or cache the packed slab) for large-batch serving.
    n = x_nchw.shape[0]
    x = jnp.transpose(x_nchw, (0, 2, 3, 1)).astype(jnp.bfloat16).reshape(n, 30, 90)
    x = jnp.pad(x, ((0, 0), (0, 2), (0, 0)))               # H: 30 -> 32
    x = x.reshape(n, 8, 4, 90)                             # h = 4u + m
    x = jnp.pad(x, ((0, 0), (0, 0), (0, 0), (0, 38)))      # lanes: 90 -> 128
    x01 = jnp.concatenate([x[:, :, 0, :], x[:, :, 1, :]], axis=-1)   # (n, 8, 256)
    x23 = jnp.concatenate([x[:, :, 2, :], x[:, :, 3, :]], axis=-1)
    xs = jnp.stack([x01, x23], axis=0).reshape(2, n * 8, 256)
    if n_pad > n:
        xs = jnp.pad(xs, ((0, 0), (0, (n_pad - n) * 8), (0, 0)))
    return xs


def _make_sel(tb, r2):
    sel = np.zeros((6, tb, r2), np.float32)
    rows = np.arange(tb) * 8
    for po in range(6):
        sel[po, np.arange(tb), rows + po] = 1.0
    return jnp.asarray(sel, jnp.bfloat16)


@jax.jit
def lenet5_forward(prep, x_nchw):
    n = x_nchw.shape[0]
    tb, n_pad = _pick_tiling(n)
    rt, r2 = tb * 8, tb * 8 - 2
    xs = _prep_input(x_nchw, n_pad)
    sel = _make_sel(tb, r2)
    grid = (n_pad // tb,)

    c2d = lambda i: (0, 0)
    c3d = lambda i: (0, 0, 0)
    in_specs = [
        pl.BlockSpec((2, rt, 256), lambda i: (0, i, 0)),   # activations (batch tiled)
        pl.BlockSpec((2, 256, 512), c3d),                  # conv1 bands (resident)
        pl.BlockSpec((1, 512), c2d), pl.BlockSpec((1, 512), c2d),
        pl.BlockSpec((2, 256, 512), c3d),                  # conv2 bands (resident)
        pl.BlockSpec((1, 512), c2d), pl.BlockSpec((1, 512), c2d),
        pl.BlockSpec((6, tb, r2), c3d),                    # flatten selectors
        pl.BlockSpec((768, 128), c2d), pl.BlockSpec((1, 128), c2d),
        pl.BlockSpec((128, 128), c2d), pl.BlockSpec((1, 128), c2d),
        pl.BlockSpec((128, 128), c2d), pl.BlockSpec((1, 128), c2d),
    ]
    out_specs = pl.BlockSpec((tb, 128), lambda i: (i, 0))

    flops = grid[0] * 2 * (2 * rt * 256 * 512 + 2 * (rt - 1) * 256 * 512
                           + 2 * r2 * 256 * 512 + 6 * tb * r2 * 128
                           + tb * (768 * 128 + 128 * 128 + 128 * 128))
    bytes_accessed = (xs.size * 2 + n_pad * 128 * 4
                      + (4 * 256 * 512 + 6 * tb * r2 + 768 * 128
                         + 2 * 128 * 128) * 2
                      + (4 * 512 + 4 * 128) * 4)

    out = pl.pallas_call(
        _lenet5_kernel,
        out_shape=jax.ShapeDtypeStruct((n_pad, 128), jnp.float32),
        grid=grid,
        in_specs=in_specs,
        out_specs=out_specs,
        compiler_params=pltpu.CompilerParams(
            dimension_semantics=("parallel",),
            vmem_limit_bytes=32 * 1024 * 1024),
        cost_estimate=pl.CostEstimate(flops=flops, transcendentals=0,
                                      bytes_accessed=bytes_accessed),
    )(xs, prep["b1"], prep["s1"], prep["t1"], prep["c2"], prep["s2"], prep["t2"],
      sel, prep["wf1"], prep["bf1"], prep["wf2"], prep["bf2"], prep["wf3"],
      prep["bf3"])
    return out[:n, :10]


# ----------------------------------------------------------------------------
# Deterministic synthetic parameters (shapes from LeNet5.__init__) + reference.
# ----------------------------------------------------------------------------
def init_params(key):
    ks = jax.random.split(key, 10)
    p = {}
    p["w_conv1"] = jax.random.normal(ks[0], (6, 3, 3, 3), jnp.float32) * 0.1
    p["b_conv1"] = jax.random.normal(ks[1], (6,), jnp.float32) * 0.1
    p["bn1_gamma"] = jnp.ones((6,), jnp.float32)
    p["bn1_beta"] = jnp.zeros((6,), jnp.float32)
    p["bn1_mean"] = jnp.zeros((6,), jnp.float32)
    p["bn1_var"] = jnp.ones((6,), jnp.float32)
    p["w_conv2"] = jax.random.normal(ks[2], (16, 6, 3, 3), jnp.float32) * 0.1
    p["b_conv2"] = jax.random.normal(ks[3], (16,), jnp.float32) * 0.1
    p["bn2_gamma"] = jnp.ones((16,), jnp.float32)
    p["bn2_beta"] = jnp.zeros((16,), jnp.float32)
    p["bn2_mean"] = jnp.zeros((16,), jnp.float32)
    p["bn2_var"] = jnp.ones((16,), jnp.float32)
    p["w_fc1"] = jax.random.normal(ks[4], (120, 576), jnp.float32) * 0.05
    p["b_fc1"] = jax.random.normal(ks[5], (120,), jnp.float32) * 0.05
    p["w_fc2"] = jax.random.normal(ks[6], (84, 120), jnp.float32) * 0.05
    p["b_fc2"] = jax.random.normal(ks[7], (84,), jnp.float32) * 0.05
    p["w_fc3"] = jax.random.normal(ks[8], (10, 84), jnp.float32) * 0.05
    p["b_fc3"] = jax.random.normal(ks[9], (10,), jnp.float32) * 0.05
    return p


def _lenet5_reference(params, x_nchw):
    x = jnp.transpose(x_nchw, (0, 2, 3, 1)).astype(jnp.float32)

    def block(x, w, b, gamma, beta, mean, var):
        y = jax.lax.conv_general_dilated(
            x, jnp.transpose(w, (2, 3, 1, 0)), (1, 1), "VALID",
            dimension_numbers=("NHWC", "HWIO", "NHWC"))
        scale = gamma / jnp.sqrt(var + 1e-5)
        y = (y + b - mean) * scale + beta
        y = jnp.maximum(y, 0.0)
        return jax.lax.reduce_window(y, -jnp.inf, jax.lax.max,
                                     (1, 2, 2, 1), (1, 2, 2, 1), "VALID")

    h = block(x, params["w_conv1"], params["b_conv1"], params["bn1_gamma"],
              params["bn1_beta"], params["bn1_mean"], params["bn1_var"])
    h = block(h, params["w_conv2"], params["b_conv2"], params["bn2_gamma"],
              params["bn2_beta"], params["bn2_mean"], params["bn2_var"])
    flat = jnp.transpose(h, (0, 3, 1, 2)).reshape(x.shape[0], -1)
    h1 = jnp.maximum(flat @ params["w_fc1"].T + params["b_fc1"], 0.0)
    h2 = jnp.maximum(h1 @ params["w_fc2"].T + params["b_fc2"], 0.0)
    return h2 @ params["w_fc3"].T + params["b_fc3"]


if __name__ == "__main__":
    key = jax.random.PRNGKey(0)
    pkey, xkey = jax.random.split(key)
    params = init_params(pkey)
    prep = prepare_params(params)          # one-time, hoisted out of the forward

    # Input spatial size 30x30 so the flatten size matches fc1's expected 576.
    x = jax.random.normal(xkey, (2, 3, 30, 30), jnp.float32)

    logits = lenet5_forward(prep, x)
    jax.block_until_ready(logits)
    assert logits.shape == (2, 10) and logits.dtype == jnp.float32

    ref = _lenet5_reference(params, x)
    err = float(jnp.max(jnp.abs(logits - ref)))
    assert err < 5e-2, f"max abs error vs f32 reference: {err}"
    print("KERNEL_OK")
</pallas_src>

<mosaic_0001>
module attributes {stable_mosaic.version = 11 : i64} {
  func.func @_lenet5_kernel(%arg0: i32, %arg1: memref<2x16x256xbf16, #tpu.memory_space<vmem>>, %arg2: memref<2x256x512xbf16, #tpu.memory_space<vmem>>, %arg3: memref<1x512xf32, #tpu.memory_space<vmem>>, %arg4: memref<1x512xf32, #tpu.memory_space<vmem>>, %arg5: memref<2x256x512xbf16, #tpu.memory_space<vmem>>, %arg6: memref<1x512xf32, #tpu.memory_space<vmem>>, %arg7: memref<1x512xf32, #tpu.memory_space<vmem>>, %arg8: memref<6x2x14xbf16, #tpu.memory_space<vmem>>, %arg9: memref<768x128xbf16, #tpu.memory_space<vmem>>, %arg10: memref<1x128xf32, #tpu.memory_space<vmem>>, %arg11: memref<128x128xbf16, #tpu.memory_space<vmem>>, %arg12: memref<1x128xf32, #tpu.memory_space<vmem>>, %arg13: memref<128x128xbf16, #tpu.memory_space<vmem>>, %arg14: memref<1x128xf32, #tpu.memory_space<vmem>>, %arg15: memref<2x128xf32, #tpu.memory_space<vmem>>) attributes {dimension_semantics = [#tpu.dimension_semantics<parallel>], iteration_bounds = array<i64: 1>, scalar_prefetch = 0 : i64, scratch_operands = 0 : i64, tpu.core_type = #tpu.core_type<tc>, window_params = [{transform_indices = @transform_0, window_bounds = array<i64: 2, 16, 256>}, {pipeline_mode = #tpu.pipeline_mode<synchronous>, transform_indices = @transform_1, window_bounds = array<i64: 2, 256, 512>}, {pipeline_mode = #tpu.pipeline_mode<synchronous>, transform_indices = @transform_2, window_bounds = array<i64: 1, 512>}, {pipeline_mode = #tpu.pipeline_mode<synchronous>, transform_indices = @transform_3, window_bounds = array<i64: 1, 512>}, {pipeline_mode = #tpu.pipeline_mode<synchronous>, transform_indices = @transform_4, window_bounds = array<i64: 2, 256, 512>}, {pipeline_mode = #tpu.pipeline_mode<synchronous>, transform_indices = @transform_5, window_bounds = array<i64: 1, 512>}, {pipeline_mode = #tpu.pipeline_mode<synchronous>, transform_indices = @transform_6, window_bounds = array<i64: 1, 512>}, {pipeline_mode = #tpu.pipeline_mode<synchronous>, transform_indices = @transform_7, window_bounds = array<i64: 6, 2, 14>}, {pipeline_mode = #tpu.pipeline_mode<synchronous>, transform_indices = @transform_8, window_bounds = array<i64: 768, 128>}, {pipeline_mode = #tpu.pipeline_mode<synchronous>, transform_indices = @transform_9, window_bounds = array<i64: 1, 128>}, {pipeline_mode = #tpu.pipeline_mode<synchronous>, transform_indices = @transform_10, window_bounds = array<i64: 128, 128>}, {pipeline_mode = #tpu.pipeline_mode<synchronous>, transform_indices = @transform_11, window_bounds = array<i64: 1, 128>}, {pipeline_mode = #tpu.pipeline_mode<synchronous>, transform_indices = @transform_12, window_bounds = array<i64: 128, 128>}, {pipeline_mode = #tpu.pipeline_mode<synchronous>, transform_indices = @transform_13, window_bounds = array<i64: 1, 128>}, {transform_indices = @transform_14, window_bounds = array<i64: 2, 128>}]} {
    %c0 = arith.constant 0 : index
    %c0_0 = arith.constant 0 : index
    %c0_1 = arith.constant 0 : index
    %0 = vector.load %arg1[%c0, %c0_0, %c0_1] : memref<2x16x256xbf16, #tpu.memory_space<vmem>>, vector<1x16x256xbf16>
    %1 = vector.shape_cast %0 : vector<1x16x256xbf16> to vector<16x256xbf16>
    %c1 = arith.constant 1 : index
    %c0_2 = arith.constant 0 : index
    %c0_3 = arith.constant 0 : index
    %2 = vector.load %arg1[%c1, %c0_2, %c0_3] : memref<2x16x256xbf16, #tpu.memory_space<vmem>>, vector<1x16x256xbf16>
    %3 = vector.shape_cast %2 : vector<1x16x256xbf16> to vector<16x256xbf16>
    %c0_4 = arith.constant 0 : index
    %c0_5 = arith.constant 0 : index
    %c0_6 = arith.constant 0 : index
    %4 = vector.load %arg2[%c0_4, %c0_5, %c0_6] : memref<2x256x512xbf16, #tpu.memory_space<vmem>>, vector<1x256x512xbf16>
    %5 = vector.shape_cast %4 : vector<1x256x512xbf16> to vector<256x512xbf16>
    %cst = arith.constant dense<0.000000e+00> : vector<16x512xf32>
    %6 = tpu.matmul %1, %5, %cst {dimension_numbers = #tpu.dot_dimension_numbers<[1], [0], [0], [1], [0, 0, 1, 1], [], []>} : vector<16x256xbf16>, vector<256x512xbf16>, vector<16x512xf32> -> vector<16x512xf32>
    %c1_7 = arith.constant 1 : index
    %c0_8 = arith.constant 0 : index
    %c0_9 = arith.constant 0 : index
    %7 = vector.load %arg2[%c1_7, %c0_8, %c0_9] : memref<2x256x512xbf16, #tpu.memory_space<vmem>>, vector<1x256x512xbf16>
    %8 = vector.shape_cast %7 : vector<1x256x512xbf16> to vector<256x512xbf16>
    %cst_10 = arith.constant dense<0.000000e+00> : vector<16x512xf32>
    %9 = tpu.matmul %3, %8, %cst_10 {dimension_numbers = #tpu.dot_dimension_numbers<[1], [0], [0], [1], [0, 0, 1, 1], [], []>} : vector<16x256xbf16>, vector<256x512xbf16>, vector<16x512xf32> -> vector<16x512xf32>
    %10 = arith.addf %6, %9 : vector<16x512xf32>
    %11 = vector.extract_strided_slice %3 {offsets = [0, 0], sizes = [15, 256], strides = [1, 1]} : vector<16x256xbf16> to vector<15x256xbf16>
    %c0_11 = arith.constant 0 : index
    %c0_12 = arith.constant 0 : index
    %c0_13 = arith.constant 0 : index
    %12 = vector.load %arg2[%c0_11, %c0_12, %c0_13] : memref<2x256x512xbf16, #tpu.memory_space<vmem>>, vector<1x256x512xbf16>
    %13 = vector.shape_cast %12 : vector<1x256x512xbf16> to vector<256x512xbf16>
    %cst_14 = arith.constant dense<0.000000e+00> : vector<15x512xf32>
    %14 = tpu.matmul %11, %13, %cst_14 {dimension_numbers = #tpu.dot_dimension_numbers<[1], [0], [0], [1], [0, 0, 1, 1], [], []>} : vector<15x256xbf16>, vector<256x512xbf16>, vector<15x512xf32> -> vector<15x512xf32>
    %15 = vector.extract_strided_slice %1 {offsets = [1, 0], sizes = [15, 256], strides = [1, 1]} : vector<16x256xbf16> to vector<15x256xbf16>
    %c1_15 = arith.constant 1 : index
    %c0_16 = arith.constant 0 : index
    %c0_17 = arith.constant 0 : index
    %16 = vector.load %arg2[%c1_15, %c0_16, %c0_17] : memref<2x256x512xbf16, #tpu.memory_space<vmem>>, vector<1x256x512xbf16>
    %17 = vector.shape_cast %16 : vector<1x256x512xbf16> to vector<256x512xbf16>
    %cst_18 = arith.constant dense<0.000000e+00> : vector<15x512xf32>
    %18 = tpu.matmul %15, %17, %cst_18 {dimension_numbers = #tpu.dot_dimension_numbers<[1], [0], [0], [1], [0, 0, 1, 1], [], []>} : vector<15x256xbf16>, vector<256x512xbf16>, vector<15x512xf32> -> vector<15x512xf32>
    %19 = arith.addf %14, %18 : vector<15x512xf32>
    %c0_19 = arith.constant 0 : index
    %c0_20 = arith.constant 0 : index
    %20 = vector.load %arg3[%c0_19, %c0_20] : memref<1x512xf32, #tpu.memory_space<vmem>>, vector<1x512xf32>
    %c0_21 = arith.constant 0 : index
    %c0_22 = arith.constant 0 : index
    %21 = vector.load %arg4[%c0_21, %c0_22] : memref<1x512xf32, #tpu.memory_space<vmem>>, vector<1x512xf32>
    %22 = vector.broadcast %20 : vector<1x512xf32> to vector<16x512xf32>
    %23 = arith.mulf %10, %22 : vector<16x512xf32>
    %24 = vector.broadcast %21 : vector<1x512xf32> to vector<16x512xf32>
    %25 = arith.addf %23, %24 : vector<16x512xf32>
    %cst_23 = arith.constant 0.000000e+00 : f32
    %26 = vector.broadcast %cst_23 : f32 to vector<16x512xf32>
    %27 = arith.maximumf %25, %26 : vector<16x512xf32>
    %28 = vector.extract_strided_slice %27 {offsets = [0, 0], sizes = [16, 128], strides = [1, 1]} : vector<16x512xf32> to vector<16x128xf32>
    %29 = vector.extract_strided_slice %27 {offsets = [0, 128], sizes = [16, 128], strides = [1, 1]} : vector<16x512xf32> to vector<16x128xf32>
    %30 = arith.maximumf %28, %29 : vector<16x128xf32>
    %31 = vector.extract_strided_slice %27 {offsets = [0, 256], sizes = [16, 128], strides = [1, 1]} : vector<16x512xf32> to vector<16x128xf32>
    %32 = vector.extract_strided_slice %27 {offsets = [0, 384], sizes = [16, 128], strides = [1, 1]} : vector<16x512xf32> to vector<16x128xf32>
    %33 = arith.maximumf %31, %32 : vector<16x128xf32>
    %34 = arith.maximumf %30, %33 : vector<16x128xf32>
    %35 = arith.truncf %34 : vector<16x128xf32> to vector<16x128xbf16>
    %c0_24 = arith.constant 0 : index
    %c0_25 = arith.constant 0 : index
    %36 = vector.load %arg3[%c0_24, %c0_25] : memref<1x512xf32, #tpu.memory_space<vmem>>, vector<1x512xf32>
    %c0_26 = arith.constant 0 : index
    %c0_27 = arith.constant 0 : index
    %37 = vector.load %arg4[%c0_26, %c0_27] : memref<1x512xf32, #tpu.memory_space<vmem>>, vector<1x512xf32>
    %38 = vector.broadcast %36 : vector<1x512xf32> to vector<15x512xf32>
    %39 = arith.mulf %19, %38 : vector<15x512xf32>
    %40 = vector.broadcast %37 : vector<1x512xf32> to vector<15x512xf32>
    %41 = arith.addf %39, %40 : vector<15x512xf32>
    %cst_28 = arith.constant 0.000000e+00 : f32
    %42 = vector.broadcast %cst_28 : f32 to vector<15x512xf32>
    %43 = arith.maximumf %41, %42 : vector<15x512xf32>
    %44 = vector.extract_strided_slice %43 {offsets = [0, 0], sizes = [15, 128], strides = [1, 1]} : vector<15x512xf32> to vector<15x128xf32>
    %45 = vector.extract_strided_slice %43 {offsets = [0, 128], sizes = [15, 128], strides = [1, 1]} : vector<15x512xf32> to vector<15x128xf32>
    %46 = arith.maximumf %44, %45 : vector<15x128xf32>
    %47 = vector.extract_strided_slice %43 {offsets = [0, 256], sizes = [15, 128], strides = [1, 1]} : vector<15x512xf32> to vector<15x128xf32>
    %48 = vector.extract_strided_slice %43 {offsets = [0, 384], sizes = [15, 128], strides = [1, 1]} : vector<15x512xf32> to vector<15x128xf32>
    %49 = arith.maximumf %47, %48 : vector<15x128xf32>
    %50 = arith.maximumf %46, %49 : vector<15x128xf32>
    %51 = arith.truncf %50 : vector<15x128xf32> to vector<15x128xbf16>
    %52 = vector.extract_strided_slice %35 {offsets = [0, 0], sizes = [14, 128], strides = [1, 1]} : vector<16x128xbf16> to vector<14x128xbf16>
    %53 = vector.extract_strided_slice %51 {offsets = [0, 0], sizes = [14, 128], strides = [1, 1]} : vector<15x128xbf16> to vector<14x128xbf16>
    %54 = tpu.concatenate %52, %53 in 1 : vector<14x128xbf16>, vector<14x128xbf16> -> vector<14x256xbf16>
    %55 = vector.extract_strided_slice %35 {offsets = [1, 0], sizes = [14, 128], strides = [1, 1]} : vector<16x128xbf16> to vector<14x128xbf16>
    %56 = vector.extract_strided_slice %51 {offsets = [1, 0], sizes = [14, 128], strides = [1, 1]} : vector<15x128xbf16> to vector<14x128xbf16>
    %57 = tpu.concatenate %55, %56 in 1 : vector<14x128xbf16>, vector<14x128xbf16> -> vector<14x256xbf16>
    %c0_29 = arith.constant 0 : index
    %c0_30 = arith.constant 0 : index
    %c0_31 = arith.constant 0 : index
    %58 = vector.load %arg5[%c0_29, %c0_30, %c0_31] : memref<2x256x512xbf16, #tpu.memory_space<vmem>>, vector<1x256x512xbf16>
    %59 = vector.shape_cast %58 : vector<1x256x512xbf16> to vector<256x512xbf16>
    %cst_32 = arith.constant dense<0.000000e+00> : vector<14x512xf32>
    %60 = tpu.matmul %54, %59, %cst_32 {dimension_numbers = #tpu.dot_dimension_numbers<[1], [0], [0], [1], [0, 0, 1, 1], [], []>} : vector<14x256xbf16>, vector<256x512xbf16>, vector<14x512xf32> -> vector<14x512xf32>
    %c1_33 = arith.constant 1 : index
    %c0_34 = arith.constant 0 : index
    %c0_35 = arith.constant 0 : index
    %61 = vector.load %arg5[%c1_33, %c0_34, %c0_35] : memref<2x256x512xbf16, #tpu.memory_space<vmem>>, vector<1x256x512xbf16>
    %62 = vector.shape_cast %61 : vector<1x256x512xbf16> to vector<256x512xbf16>
    %cst_36 = arith.constant dense<0.000000e+00> : vector<14x512xf32>
    %63 = tpu.matmul %57, %62, %cst_36 {dimension_numbers = #tpu.dot_dimension_numbers<[1], [0], [0], [1], [0, 0, 1, 1], [], []>} : vector<14x256xbf16>, vector<256x512xbf16>, vector<14x512xf32> -> vector<14x512xf32>
    %64 = arith.addf %60, %63 : vector<14x512xf32>
    %c0_37 = arith.constant 0 : index
    %c0_38 = arith.constant 0 : index
    %65 = vector.load %arg6[%c0_37, %c0_38] : memref<1x512xf32, #tpu.memory_space<vmem>>, vector<1x512xf32>
    %c0_39 = arith.constant 0 : index
    %c0_40 = arith.constant 0 : index
    %66 = vector.load %arg7[%c0_39, %c0_40] : memref<1x512xf32, #tpu.memory_space<vmem>>, vector<1x512xf32>
    %67 = vector.broadcast %65 : vector<1x512xf32> to vector<14x512xf32>
    %68 = arith.mulf %64, %67 : vector<14x512xf32>
    %69 = vector.broadcast %66 : vector<1x512xf32> to vector<14x512xf32>
    %70 = arith.addf %68, %69 : vector<14x512xf32>
    %cst_41 = arith.constant 0.000000e+00 : f32
    %71 = vector.broadcast %cst_41 : f32 to vector<14x512xf32>
    %72 = arith.maximumf %70, %71 : vector<14x512xf32>
    %73 = vector.extract_strided_slice %72 {offsets = [0, 0], sizes = [14, 128], strides = [1, 1]} : vector<14x512xf32> to vector<14x128xf32>
    %74 = vector.extract_strided_slice %72 {offsets = [0, 128], sizes = [14, 128], strides = [1, 1]} : vector<14x512xf32> to vector<14x128xf32>
    %75 = arith.maximumf %73, %74 : vector<14x128xf32>
    %76 = vector.extract_strided_slice %72 {offsets = [0, 256], sizes = [14, 128], strides = [1, 1]} : vector<14x512xf32> to vector<14x128xf32>
    %77 = vector.extract_strided_slice %72 {offsets = [0, 384], sizes = [14, 128], strides = [1, 1]} : vector<14x512xf32> to vector<14x128xf32>
    %78 = arith.maximumf %76, %77 : vector<14x128xf32>
    %79 = arith.maximumf %75, %78 : vector<14x128xf32>
    %80 = arith.truncf %79 : vector<14x128xf32> to vector<14x128xbf16>
    %c0_42 = arith.constant 0 : index
    %c0_43 = arith.constant 0 : index
    %c0_44 = arith.constant 0 : index
    %81 = vector.load %arg8[%c0_42, %c0_43, %c0_44] : memref<6x2x14xbf16, #tpu.memory_space<vmem>>, vector<1x2x14xbf16>
    %82 = vector.shape_cast %81 : vector<1x2x14xbf16> to vector<2x14xbf16>
    %cst_45 = arith.constant dense<0.000000e+00> : vector<2x128xf32>
    %83 = tpu.matmul %82, %80, %cst_45 {dimension_numbers = #tpu.dot_dimension_numbers<[1], [0], [0], [1], [0, 0, 1, 1], [], []>} : vector<2x14xbf16>, vector<14x128xbf16>, vector<2x128xf32> -> vector<2x128xf32>
    %c1_46 = arith.constant 1 : index
    %c0_47 = arith.constant 0 : index
    %c0_48 = arith.constant 0 : index
    %84 = vector.load %arg8[%c1_46, %c0_47, %c0_48] : memref<6x2x14xbf16, #tpu.memory_space<vmem>>, vector<1x2x14xbf16>
    %85 = vector.shape_cast %84 : vector<1x2x14xbf16> to vector<2x14xbf16>
    %cst_49 = arith.constant dense<0.000000e+00> : vector<2x128xf32>
    %86 = tpu.matmul %85, %80, %cst_49 {dimension_numbers = #tpu.dot_dimension_numbers<[1], [0], [0], [1], [0, 0, 1, 1], [], []>} : vector<2x14xbf16>, vector<14x128xbf16>, vector<2x128xf32> -> vector<2x128xf32>
    %c2 = arith.constant 2 : index
    %c0_50 = arith.constant 0 : index
    %c0_51 = arith.constant 0 : index
    %87 = vector.load %arg8[%c2, %c0_50, %c0_51] : memref<6x2x14xbf16, #tpu.memory_space<vmem>>, vector<1x2x14xbf16>
    %88 = vector.shape_cast %87 : vector<1x2x14xbf16> to vector<2x14xbf16>
    %cst_52 = arith.constant dense<0.000000e+00> : vector<2x128xf32>
    %89 = tpu.matmul %88, %80, %cst_52 {dimension_numbers = #tpu.dot_dimension_numbers<[1], [0], [0], [1], [0, 0, 1, 1], [], []>} : vector<2x14xbf16>, vector<14x128xbf16>, vector<2x128xf32> -> vector<2x128xf32>
    %c3 = arith.constant 3 : index
    %c0_53 = arith.constant 0 : index
    %c0_54 = arith.constant 0 : index
    %90 = vector.load %arg8[%c3, %c0_53, %c0_54] : memref<6x2x14xbf16, #tpu.memory_space<vmem>>, vector<1x2x14xbf16>
    %91 = vector.shape_cast %90 : vector<1x2x14xbf16> to vector<2x14xbf16>
    %cst_55 = arith.constant dense<0.000000e+00> : vector<2x128xf32>
    %92 = tpu.matmul %91, %80, %cst_55 {dimension_numbers = #tpu.dot_dimension_numbers<[1], [0], [0], [1], [0, 0, 1, 1], [], []>} : vector<2x14xbf16>, vector<14x128xbf16>, vector<2x128xf32> -> vector<2x128xf32>
    %c4 = arith.constant 4 : index
    %c0_56 = arith.constant 0 : index
    %c0_57 = arith.constant 0 : index
    %93 = vector.load %arg8[%c4, %c0_56, %c0_57] : memref<6x2x14xbf16, #tpu.memory_space<vmem>>, vector<1x2x14xbf16>
    %94 = vector.shape_cast %93 : vector<1x2x14xbf16> to vector<2x14xbf16>
    %cst_58 = arith.constant dense<0.000000e+00> : vector<2x128xf32>
    %95 = tpu.matmul %94, %80, %cst_58 {dimension_numbers = #tpu.dot_dimension_numbers<[1], [0], [0], [1], [0, 0, 1, 1], [], []>} : vector<2x14xbf16>, vector<14x128xbf16>, vector<2x128xf32> -> vector<2x128xf32>
    %c5 = arith.constant 5 : index
    %c0_59 = arith.constant 0 : index
    %c0_60 = arith.constant 0 : index
    %96 = vector.load %arg8[%c5, %c0_59, %c0_60] : memref<6x2x14xbf16, #tpu.memory_space<vmem>>, vector<1x2x14xbf16>
    %97 = vector.shape_cast %96 : vector<1x2x14xbf16> to vector<2x14xbf16>
    %cst_61 = arith.constant dense<0.000000e+00> : vector<2x128xf32>
    %98 = tpu.matmul %97, %80, %cst_61 {dimension_numbers = #tpu.dot_dimension_numbers<[1], [0], [0], [1], [0, 0, 1, 1], [], []>} : vector<2x14xbf16>, vector<14x128xbf16>, vector<2x128xf32> -> vector<2x128xf32>
    %99 = tpu.concatenate %83, %86, %89, %92, %95, %98 in 1 : vector<2x128xf32>, vector<2x128xf32>, vector<2x128xf32>, vector<2x128xf32>, vector<2x128xf32>, vector<2x128xf32> -> vector<2x768xf32>
    %100 = arith.truncf %99 : vector<2x768xf32> to vector<2x768xbf16>
    %c0_62 = arith.constant 0 : index
    %c0_63 = arith.constant 0 : index
    %101 = vector.load %arg9[%c0_62, %c0_63] : memref<768x128xbf16, #tpu.memory_space<vmem>>, vector<768x128xbf16>
    %cst_64 = arith.constant dense<0.000000e+00> : vector<2x128xf32>
    %102 = tpu.matmul %100, %101, %cst_64 {dimension_numbers = #tpu.dot_dimension_numbers<[1], [0], [0], [1], [0, 0, 1, 1], [], []>} : vector<2x768xbf16>, vector<768x128xbf16>, vector<2x128xf32> -> vector<2x128xf32>
    %c0_65 = arith.constant 0 : index
    %c0_66 = arith.constant 0 : index
    %103 = vector.load %arg10[%c0_65, %c0_66] : memref<1x128xf32, #tpu.memory_space<vmem>>, vector<1x128xf32>
    %104 = vector.broadcast %103 : vector<1x128xf32> to vector<2x128xf32>
    %105 = arith.addf %102, %104 : vector<2x128xf32>
    %cst_67 = arith.constant 0.000000e+00 : f32
    %106 = vector.broadcast %cst_67 : f32 to vector<2x128xf32>
    %107 = arith.maximumf %105, %106 : vector<2x128xf32>
    %108 = arith.truncf %107 : vector<2x128xf32> to vector<2x128xbf16>
    %c0_68 = arith.constant 0 : index
    %c0_69 = arith.constant 0 : index
    %109 = vector.load %arg11[%c0_68, %c0_69] : memref<128x128xbf16, #tpu.memory_space<vmem>>, vector<128x128xbf16>
    %cst_70 = arith.constant dense<0.000000e+00> : vector<2x128xf32>
    %110 = tpu.matmul %108, %109, %cst_70 {dimension_numbers = #tpu.dot_dimension_numbers<[1], [0], [0], [1], [0, 0, 1, 1], [], []>} : vector<2x128xbf16>, vector<128x128xbf16>, vector<2x128xf32> -> vector<2x128xf32>
    %c0_71 = arith.constant 0 : index
    %c0_72 = arith.constant 0 : index
    %111 = vector.load %arg12[%c0_71, %c0_72] : memref<1x128xf32, #tpu.memory_space<vmem>>, vector<1x128xf32>
    %112 = vector.broadcast %111 : vector<1x128xf32> to vector<2x128xf32>
    %113 = arith.addf %110, %112 : vector<2x128xf32>
    %cst_73 = arith.constant 0.000000e+00 : f32
    %114 = vector.broadcast %cst_73 : f32 to vector<2x128xf32>
    %115 = arith.maximumf %113, %114 : vector<2x128xf32>
    %116 = arith.truncf %115 : vector<2x128xf32> to vector<2x128xbf16>
    %c0_74 = arith.constant 0 : index
    %c0_75 = arith.constant 0 : index
    %117 = vector.load %arg13[%c0_74, %c0_75] : memref<128x128xbf16, #tpu.memory_space<vmem>>, vector<128x128xbf16>
    %cst_76 = arith.constant dense<0.000000e+00> : vector<2x128xf32>
    %118 = tpu.matmul %116, %117, %cst_76 {dimension_numbers = #tpu.dot_dimension_numbers<[1], [0], [0], [1], [0, 0, 1, 1], [], []>} : vector<2x128xbf16>, vector<128x128xbf16>, vector<2x128xf32> -> vector<2x128xf32>
    %c0_77 = arith.constant 0 : index
    %c0_78 = arith.constant 0 : index
    %119 = vector.load %arg14[%c0_77, %c0_78] : memref<1x128xf32, #tpu.memory_space<vmem>>, vector<1x128xf32>
    %120 = vector.broadcast %119 : vector<1x128xf32> to vector<2x128xf32>
    %121 = arith.addf %118, %120 : vector<2x128xf32>
    %c0_79 = arith.constant 0 : index
    %c0_80 = arith.constant 0 : index
    %122 = vector.load %arg15[%c0_79, %c0_80] : memref<2x128xf32, #tpu.memory_space<vmem>>, vector<2x128xf32>
    tpu.vector_store %arg15[%c0_79, %c0_80], %121 {strides = array<i32>} : memref<2x128xf32, #tpu.memory_space<vmem>>, vector<2x128xf32>,
    return
  }
  func.func @transform_0(%arg0: i32) -> (i32, i32, i32) {
    %c0_i32 = arith.constant 0 : i32
    %c0_i32_0 = arith.constant 0 : i32
    %c0_i32_1 = arith.constant 0 : i32
    return %c0_i32, %arg0, %c0_i32_0 : i32, i32, i32
  }
  func.func @transform_1(%arg0: i32) -> (i32, i32, i32) {
    %c0_i32 = arith.constant 0 : i32
    %c0_i32_0 = arith.constant 0 : i32
    %c0_i32_1 = arith.constant 0 : i32
    %c0_i32_2 = arith.constant 0 : i32
    return %c0_i32, %c0_i32_0, %c0_i32_1 : i32, i32, i32
  }
  func.func @transform_2(%arg0: i32) -> (i32, i32) {
    %c0_i32 = arith.constant 0 : i32
    %c0_i32_0 = arith.constant 0 : i32
    %c0_i32_1 = arith.constant 0 : i32
    return %c0_i32, %c0_i32_0 : i32, i32
  }
  func.func @transform_3(%arg0: i32) -> (i32, i32) {
    %c0_i32 = arith.constant 0 : i32
    %c0_i32_0 = arith.constant 0 : i32
    %c0_i32_1 = arith.constant 0 : i32
    return %c0_i32, %c0_i32_0 : i32, i32
  }
  func.func @transform_4(%arg0: i32) -> (i32, i32, i32) {
    %c0_i32 = arith.constant 0 : i32
    %c0_i32_0 = arith.constant 0 : i32
    %c0_i32_1 = arith.constant 0 : i32
    %c0_i32_2 = arith.constant 0 : i32
    return %c0_i32, %c0_i32_0, %c0_i32_1 : i32, i32, i32
  }
  func.func @transform_5(%arg0: i32) -> (i32, i32) {
    %c0_i32 = arith.constant 0 : i32
    %c0_i32_0 = arith.constant 0 : i32
    %c0_i32_1 = arith.constant 0 : i32
    return %c0_i32, %c0_i32_0 : i32, i32
  }
  func.func @transform_6(%arg0: i32) -> (i32, i32) {
    %c0_i32 = arith.constant 0 : i32
    %c0_i32_0 = arith.constant 0 : i32
    %c0_i32_1 = arith.constant 0 : i32
    return %c0_i32, %c0_i32_0 : i32, i32
  }
  func.func @transform_7(%arg0: i32) -> (i32, i32, i32) {
    %c0_i32 = arith.constant 0 : i32
    %c0_i32_0 = arith.constant 0 : i32
    %c0_i32_1 = arith.constant 0 : i32
    %c0_i32_2 = arith.constant 0 : i32
    return %c0_i32, %c0_i32_0, %c0_i32_1 : i32, i32, i32
  }
  func.func @transform_8(%arg0: i32) -> (i32, i32) {
    %c0_i32 = arith.constant 0 : i32
    %c0_i32_0 = arith.constant 0 : i32
    %c0_i32_1 = arith.constant 0 : i32
    return %c0_i32, %c0_i32_0 : i32, i32
  }
  func.func @transform_9(%arg0: i32) -> (i32, i32) {
    %c0_i32 = arith.constant 0 : i32
    %c0_i32_0 = arith.constant 0 : i32
    %c0_i32_1 = arith.constant 0 : i32
    return %c0_i32, %c0_i32_0 : i32, i32
  }
  func.func @transform_10(%arg0: i32) -> (i32, i32) {
    %c0_i32 = arith.constant 0 : i32
    %c0_i32_0 = arith.constant 0 : i32
    %c0_i32_1 = arith.constant 0 : i32
    return %c0_i32, %c0_i32_0 : i32, i32
  }
  func.func @transform_11(%arg0: i32) -> (i32, i32) {
    %c0_i32 = arith.constant 0 : i32
    %c0_i32_0 = arith.constant 0 : i32
    %c0_i32_1 = arith.constant 0 : i32
    return %c0_i32, %c0_i32_0 : i32, i32
  }
  func.func @transform_12(%arg0: i32) -> (i32, i32) {
    %c0_i32 = arith.constant 0 : i32
    %c0_i32_0 = arith.constant 0 : i32
    %c0_i32_1 = arith.constant 0 : i32
    return %c0_i32, %c0_i32_0 : i32, i32
  }
  func.func @transform_13(%arg0: i32) -> (i32, i32) {
    %c0_i32 = arith.constant 0 : i32
    %c0_i32_0 = arith.constant 0 : i32
    %c0_i32_1 = arith.constant 0 : i32
    return %c0_i32, %c0_i32_0 : i32, i32
  }
  func.func @transform_14(%arg0: i32) -> (i32, i32) {
    %c0_i32 = arith.constant 0 : i32
    %c0_i32_0 = arith.constant 0 : i32
    return %arg0, %c0_i32 : i32, i32
  }
}

</mosaic_0001>

<llo_original>
// kernel: lenet5_forward.1
$region0: #{lenet5_forward.1}
  #allocation0 [shape = 'u32[]', space=smem, size = 0x4, offset = 0x4, fixed_abs, tag = 'smem constant byte address 0x4 - core index']
  #allocation1 [shape = 'u32[72,128]{1,0:T(1,128)}', space=vmem, size = 0x9000, scoped, tag = 'internal scratch']
  %s0 = inlined_call_operand.vmem [shape: bf16[2,16,256], index: 0, kind: input, shape index: {}]
  %s1 = inlined_call_operand.hbm [shape: bf16[2,256,512], index: 1, kind: input, shape index: {}]
  %s2 = inlined_call_operand.vmem [shape: f32[1,512], index: 2, kind: input, shape index: {}]
  %s3 = inlined_call_operand.vmem [shape: f32[1,512], index: 3, kind: input, shape index: {}]
  %s4 = inlined_call_operand.hbm [shape: bf16[2,256,512], index: 4, kind: input, shape index: {}]
  %s5 = inlined_call_operand.vmem [shape: f32[1,512], index: 5, kind: input, shape index: {}]
  %s6 = inlined_call_operand.vmem [shape: f32[1,512], index: 6, kind: input, shape index: {}]
  %s7 = inlined_call_operand.vmem [shape: bf16[6,2,14], index: 7, kind: input, shape index: {}]
  %s8 = inlined_call_operand.vmem [shape: bf16[768,128], index: 8, kind: input, shape index: {}]
  %s9 = inlined_call_operand.vmem [shape: f32[1,128], index: 9, kind: input, shape index: {}]
  %s10 = inlined_call_operand.vmem [shape: bf16[128,128], index: 10, kind: input, shape index: {}]
  %s11 = inlined_call_operand.vmem [shape: f32[1,128], index: 11, kind: input, shape index: {}]
  %s12 = inlined_call_operand.vmem [shape: bf16[128,128], index: 12, kind: input, shape index: {}]
  %s13 = inlined_call_operand.vmem [shape: f32[1,128], index: 13, kind: input, shape index: {}]
  %s14 = inlined_call_operand.hbm [shape: f32[2,128], index: 14, kind: output, shape index: {}]
  %s15 = sld [smem:[#allocation0]]
  $region74: #{lenet5_forward.1} parent=0
    _
  %s17 = ssub.s32 1, %s15
  %s18 = scalar_select 0, %s17, %s15
  $region1: #{lenet5_forward.1} parent=0
    #allocation2 [shape = 'u8[524288]{0}', space=vmem, size = 0x80000, scoped, tag = 'input window, operand 1, single buffered']
    #allocation3 [shape = 's32[1]{0}', space=sflag, size = 0x4, scoped, tag = 'scoped memory for lenet5_forward.1']
    #allocation4 [shape = 's32[1]{0}', space=sflag, size = 0x4, scoped, tag = 'scoped memory for lenet5_forward.1']
    #allocation5 [shape = 'u8[524288]{0}', space=vmem, size = 0x80000, scoped, tag = 'input window, operand 4, single buffered']
    #allocation6 [shape = 's32[1]{0}', space=sflag, size = 0x4, scoped, tag = 'scoped memory for lenet5_forward.1']
    #allocation7 [shape = 'u8[1024]{0}', space=vmem, size = 0x400, scoped, tag = 'output window, operand 0, single buffered']
    %19 = vsyncpa [#allocation3], 0
    %20 = vsyncpa [#allocation6], 0
    %21 = vsyncpa [#allocation4], 0
    // Predicated region
    $region2: #{lenet5_forward.1} parent=1 // pred_check
      _
    $region3: #{lenet5_forward.1} parent=1 // pred_check_branch
      %23 = sbr.rel (0) target = $region5
    $region4: #{lenet5_forward.1} parent=1 // pred_region
      _
    $region5: #{lenet5_forward.1} parent=1 // pred_fallthru
      _
    // Predicated region
    $region6: #{lenet5_forward.1} parent=1 // pred_check
      _
    $region7: #{lenet5_forward.1} parent=1 // pred_check_branch
      %25 = sbr.rel (0) target = $region9
    $region8: #{lenet5_forward.1} parent=1 // pred_region
      %27 = vsyncadd [#allocation3], 0
      %s28 = sshll.u32 %s1, 4
      %s29 = int_to_ptr.hbm [resolvable:$true] %s28
      %s30 = sshll.u32 [#allocation2], 4
      %s31 = int_to_ptr.vmem [resolvable:$true] %s30
      %36 = dma.hbm_to_vmem [thread:$0]  %s29, 16384, %s31, [#allocation3], 256, 256, 16
    $region9: #{lenet5_forward.1} parent=1 // pred_fallthru
      _
    // Predicated region
    $region10: #{lenet5_forward.1} parent=1 // pred_check
      _
    $region11: #{lenet5_forward.1} parent=1 // pred_check_branch
      %38 = sbr.rel (0) target = $region13
    $region12: #{lenet5_forward.1} parent=1 // pred_region
      _
    $region13: #{lenet5_forward.1} parent=1 // pred_fallthru
      _
    // Predicated region
    $region14: #{lenet5_forward.1} parent=1 // pred_check
      _
    $region15: #{lenet5_forward.1} parent=1 // pred_check_branch
      %40 = sbr.rel (0) target = $region17
    $region16: #{lenet5_forward.1} parent=1 // pred_region
      _
    $region17: #{lenet5_forward.1} parent=1 // pred_fallthru
      _
    // Predicated region
    $region18: #{lenet5_forward.1} parent=1 // pred_check
      _
    $region19: #{lenet5_forward.1} parent=1 // pred_check_branch
      %42 = sbr.rel (0) target = $region21
    $region20: #{lenet5_forward.1} parent=1 // pred_region
      %44 = vsyncadd [#allocation6], 0
      %s45 = sshll.u32 %s4, 4
      %s46 = int_to_ptr.hbm [resolvable:$true] %s45
      %s47 = sshll.u32 [#allocation5], 4
      %s48 = int_to_ptr.vmem [resolvable:$true] %s47
      %53 = dma.hbm_to_vmem [thread:$0]  %s46, 16384, %s48, [#allocation6], 256, 256, 16
    $region21: #{lenet5_forward.1} parent=1 // pred_fallthru
      _
    // Predicated region
    $region22: #{lenet5_forward.1} parent=1 // pred_check
      _
    $region23: #{lenet5_forward.1} parent=1 // pred_check_branch
      %55 = sbr.rel (0) target = $region25
    $region24: #{lenet5_forward.1} parent=1 // pred_region
      _
    $region25: #{lenet5_forward.1} parent=1 // pred_fallthru
      _
    // Predicated region
    $region26: #{lenet5_forward.1} parent=1 // pred_check
      _
    $region27: #{lenet5_forward.1} parent=1 // pred_check_branch
      %57 = sbr.rel (0) target = $region29
    $region28: #{lenet5_forward.1} parent=1 // pred_region
      _
    $region29: #{lenet5_forward.1} parent=1 // pred_fallthru
      _
    // Predicated region
    $region30: #{lenet5_forward.1} parent=1 // pred_check
      _
    $region31: #{lenet5_forward.1} parent=1 // pred_check_branch
      %59 = sbr.rel (0) target = $region33
    $region32: #{lenet5_forward.1} parent=1 // pred_region
      _
    $region33: #{lenet5_forward.1} parent=1 // pred_fallthru
      _
    // Predicated region
    $region34: #{lenet5_forward.1} parent=1 // pred_check
      _
    $region35: #{lenet5_forward.1} parent=1 // pred_check_branch
      %61 = sbr.rel (0) target = $region37
    $region36: #{lenet5_forward.1} parent=1 // pred_region
      _
    $region37: #{lenet5_forward.1} parent=1 // pred_fallthru
      _
    // Predicated region
    $region38: #{lenet5_forward.1} parent=1 // pred_check
      _
    $region39: #{lenet5_forward.1} parent=1 // pred_check_branch
      %63 = sbr.rel (0) target = $region41
    $region40: #{lenet5_forward.1} parent=1 // pred_region
      _
    $region41: #{lenet5_forward.1} parent=1 // pred_fallthru
      _
    // Predicated region
    $region42: #{lenet5_forward.1} parent=1 // pred_check
      _
    $region43: #{lenet5_forward.1} parent=1 // pred_check_branch
      %65 = sbr.rel (0) target = $region45
    $region44: #{lenet5_forward.1} parent=1 // pred_region
      _
    $region45: #{lenet5_forward.1} parent=1 // pred_fallthru
      _
    // Predicated region
    $region46: #{lenet5_forward.1} parent=1 // pred_check
      _
    $region47: #{lenet5_forward.1} parent=1 // pred_check_branch
      %67 = sbr.rel (0) target = $region49
    $region48: #{lenet5_forward.1} parent=1 // pred_region
      _
    $region49: #{lenet5_forward.1} parent=1 // pred_fallthru
      _
    // Predicated region
    $region50: #{lenet5_forward.1} parent=1 // pred_check
      _
    $region51: #{lenet5_forward.1} parent=1 // pred_check_branch
      %69 = sbr.rel (0) target = $region53
    $region52: #{lenet5_forward.1} parent=1 // pred_region
      _
    $region53: #{lenet5_forward.1} parent=1 // pred_fallthru
      _
    // Predicated region
    $region54: #{lenet5_forward.1} parent=1 // pred_check
      _
    $region55: #{lenet5_forward.1} parent=1 // pred_check_branch
      %71 = sbr.rel (0) target = $region57
    $region56: #{lenet5_forward.1} parent=1 // pred_region
      _
    $region57: #{lenet5_forward.1} parent=1 // pred_fallthru
      _
    // Predicated region
    $region58: #{lenet5_forward.1} parent=1 // pred_check
      _
    $region59: #{lenet5_forward.1} parent=1 // pred_check_branch
      %73 = sbr.rel (0) target = $region61
    $region60: #{lenet5_forward.1} parent=1 // pred_region
      %75 = dma.done [#allocation3], 16384
    $region61: #{lenet5_forward.1} parent=1 // pred_fallthru
      _
    // Predicated region
    $region62: #{lenet5_forward.1} parent=1 // pred_check
      _
    $region63: #{lenet5_forward.1} parent=1 // pred_check_branch
      %77 = sbr.rel (0) target = $region65
    $region64: #{lenet5_forward.1} parent=1 // pred_region
      %79 = dma.done [#allocation6], 16384
    $region65: #{lenet5_forward.1} parent=1 // pred_fallthru
      _
    %v81 = vld [vmem:[%s0] sm:$0xff]
    %v82 = vld [vmem:[%s0 + $0x8] sm:$0xff]
    %s83 = scalar_lea.vmem %s0, 16
    %v84 = vld [vmem:[%s83] sm:$0xff]
    %v85 = vld [vmem:[%s83 + $0x8] sm:$0xff]
    %v86 = vld [vmem:[#allocation2] sm:$0xff]
    %v87 = vld [vmem:[#allocation2 + $0x8] sm:$0xff]
    %v88 = vld [vmem:[#allocation2 + $0x10] sm:$0xff]
    %v89 = vld [vmem:[#allocation2 + $0x18] sm:$0xff]
    %v90 = vld [vmem:[#allocation2 + $0x20] sm:$0xff]
    %v91 = vld [vmem:[#allocation2 + $0x28] sm:$0xff]
    %v92 = vld [vmem:[#allocation2 + $0x30] sm:$0xff]
    %v93 = vld [vmem:[#allocation2 + $0x38] sm:$0xff]
    %v94 = vld [vmem:[#allocation2 + $0x40] sm:$0xff]
    %v95 = vld [vmem:[#allocation2 + $0x48] sm:$0xff]
    %v96 = vld [vmem:[#allocation2 + $0x50] sm:$0xff]
    %v97 = vld [vmem:[#allocation2 + $0x58] sm:$0xff]
    %v98 = vld [vmem:[#allocation2 + $0x60] sm:$0xff]
    %v99 = vld [vmem:[#allocation2 + $0x68] sm:$0xff]
    %v100 = vld [vmem:[#allocation2 + $0x70] sm:$0xff]
    %v101 = vld [vmem:[#allocation2 + $0x78] sm:$0xff]
    %v102 = vld [vmem:[#allocation2 + $0x80] sm:$0xff]
    %v103 = vld [vmem:[#allocation2 + $0x88] sm:$0xff]
    %v104 = vld [vmem:[#allocation2 + $0x90] sm:$0xff]
    %v105 = vld [vmem:[#allocation2 + $0x98] sm:$0xff]
    %v106 = vld [vmem:[#allocation2 + $0xa0] sm:$0xff]
    %v107 = vld [vmem:[#allocation2 + $0xa8] sm:$0xff]
    %v108 = vld [vmem:[#allocation2 + $0xb0] sm:$0xff]
    %v109 = vld [vmem:[#allocation2 + $0xb8] sm:$0xff]
    %v110 = vld [vmem:[#allocation2 + $0xc0] sm:$0xff]
    %v111 = vld [vmem:[#allocation2 + $0xc8] sm:$0xff]
    %v112 = vld [vmem:[#allocation2 + $0xd0] sm:$0xff]
    %v113 = vld [vmem:[#allocation2 + $0xd8] sm:$0xff]
    %v114 = vld [vmem:[#allocation2 + $0xe0] sm:$0xff]
    %v115 = vld [vmem:[#allocation2 + $0xe8] sm:$0xff]
    %v116 = vld [vmem:[#allocation2 + $0xf0] sm:$0xff]
    %v117 = vld [vmem:[#allocation2 + $0xf8] sm:$0xff]
    %v118 = vld [vmem:[#allocation2 + $0x100] sm:$0xff]
    %v119 = vld [vmem:[#allocation2 + $0x108] sm:$0xff]
    %v120 = vld [vmem:[#allocation2 + $0x110] sm:$0xff]
    %v121 = vld [vmem:[#allocation2 + $0x118] sm:$0xff]
    %v122 = vld [vmem:[#allocation2 + $0x120] sm:$0xff]
    %v123 = vld [vmem:[#allocation2 + $0x128] sm:$0xff]
    %v124 = vld [vmem:[#allocation2 + $0x130] sm:$0xff]
    %v125 = vld [vmem:[#allocation2 + $0x138] sm:$0xff]
    %v126 = vld [vmem:[#allocation2 + $0x140] sm:$0xff]
    %v127 = vld [vmem:[#allocation2 + $0x148] sm:$0xff]
    %v128 = vld [vmem:[#allocation2 + $0x150] sm:$0xff]
    %v129 = vld [vmem:[#allocation2 + $0x158] sm:$0xff]
    %v130 = vld [vmem:[#allocation2 + $0x160] sm:$0xff]
    %v131 = vld [vmem:[#allocation2 + $0x168] sm:$0xff]
    %v132 = vld [vmem:[#allocation2 + $0x170] sm:$0xff]
    %v133 = vld [vmem:[#allocation2 + $0x178] sm:$0xff]
    %v134 = vld [vmem:[#allocation2 + $0x180] sm:$0xff]
    %v135 = vld [vmem:[#allocation2 + $0x188] sm:$0xff]
    %v136 = vld [vmem:[#allocation2 + $0x190] sm:$0xff]
    %v137 = vld [vmem:[#allocation2 + $0x198] sm:$0xff]
    %v138 = vld [vmem:[#allocation2 + $0x1a0] sm:$0xff]
    %v139 = vld [vmem:[#allocation2 + $0x1a8] sm:$0xff]
    %v140 = vld [vmem:[#allocation2 + $0x1b0] sm:$0xff]
    %v141 = vld [vmem:[#allocation2 + $0x1b8] sm:$0xff]
    %v142 = vld [vmem:[#allocation2 + $0x1c0] sm:$0xff]
    %v143 = vld [vmem:[#allocation2 + $0x1c8] sm:$0xff]
    %v144 = vld [vmem:[#allocation2 + $0x1d0] sm:$0xff]
    %v145 = vld [vmem:[#allocation2 + $0x1d8] sm:$0xff]
    %v146 = vld [vmem:[#allocation2 + $0x1e0] sm:$0xff]
    %v147 = vld [vmem:[#allocation2 + $0x1e8] sm:$0xff]
    %v148 = vld [vmem:[#allocation2 + $0x1f0] sm:$0xff]
    %v149 = vld [vmem:[#allocation2 + $0x1f8] sm:$0xff]
    %s150 = scalar_lea.vmem [#allocation2], 512
    %v151 = vld [vmem:[%s150] sm:$0xff]
    %v152 = vld [vmem:[%s150 + $0x8] sm:$0xff]
    %v153 = vld [vmem:[%s150 + $0x10] sm:$0xff]
    %v154 = vld [vmem:[%s150 + $0x18] sm:$0xff]
    %v155 = vld [vmem:[%s150 + $0x20] sm:$0xff]
    %v156 = vld [vmem:[%s150 + $0x28] sm:$0xff]
    %v157 = vld [vmem:[%s150 + $0x30] sm:$0xff]
    %v158 = vld [vmem:[%s150 + $0x38] sm:$0xff]
    %v159 = vld [vmem:[%s150 + $0x40] sm:$0xff]
    %v160 = vld [vmem:[%s150 + $0x48] sm:$0xff]
    %v161 = vld [vmem:[%s150 + $0x50] sm:$0xff]
    %v162 = vld [vmem:[%s150 + $0x58] sm:$0xff]
    %v163 = vld [vmem:[%s150 + $0x60] sm:$0xff]
    %v164 = vld [vmem:[%s150 + $0x68] sm:$0xff]
    %v165 = vld [vmem:[%s150 + $0x70] sm:$0xff]
    %v166 = vld [vmem:[%s150 + $0x78] sm:$0xff]
    %v167 = vld [vmem:[%s150 + $0x80] sm:$0xff]
    %v168 = vld [vmem:[%s150 + $0x88] sm:$0xff]
    %v169 = vld [vmem:[%s150 + $0x90] sm:$0xff]
    %v170 = vld [vmem:[%s150 + $0x98] sm:$0xff]
    %v171 = vld [vmem:[%s150 + $0xa0] sm:$0xff]
    %v172 = vld [vmem:[%s150 + $0xa8] sm:$0xff]
    %v173 = vld [vmem:[%s150 + $0xb0] sm:$0xff]
    %v174 = vld [vmem:[%s150 + $0xb8] sm:$0xff]
    %v175 = vld [vmem:[%s150 + $0xc0] sm:$0xff]
    %v176 = vld [vmem:[%s150 + $0xc8] sm:$0xff]
    %v177 = vld [vmem:[%s150 + $0xd0] sm:$0xff]
    %v178 = vld [vmem:[%s150 + $0xd8] sm:$0xff]
    %v179 = vld [vmem:[%s150 + $0xe0] sm:$0xff]
    %v180 = vld [vmem:[%s150 + $0xe8] sm:$0xff]
    %v181 = vld [vmem:[%s150 + $0xf0] sm:$0xff]
    %v182 = vld [vmem:[%s150 + $0xf8] sm:$0xff]
    %v183 = vld [vmem:[%s150 + $0x100] sm:$0xff]
    %v184 = vld [vmem:[%s150 + $0x108] sm:$0xff]
    %v185 = vld [vmem:[%s150 + $0x110] sm:$0xff]
    %v186 = vld [vmem:[%s150 + $0x118] sm:$0xff]
    %v187 = vld [vmem:[%s150 + $0x120] sm:$0xff]
    %v188 = vld [vmem:[%s150 + $0x128] sm:$0xff]
    %v189 = vld [vmem:[%s150 + $0x130] sm:$0xff]
    %v190 = vld [vmem:[%s150 + $0x138] sm:$0xff]
    %v191 = vld [vmem:[%s150 + $0x140] sm:$0xff]
    %v192 = vld [vmem:[%s150 + $0x148] sm:$0xff]
    %v193 = vld [vmem:[%s150 + $0x150] sm:$0xff]
    %v194 = vld [vmem:[%s150 + $0x158] sm:$0xff]
    %v195 = vld [vmem:[%s150 + $0x160] sm:$0xff]
    %v196 = vld [vmem:[%s150 + $0x168] sm:$0xff]
    %v197 = vld [vmem:[%s150 + $0x170] sm:$0xff]
    %v198 = vld [vmem:[%s150 + $0x178] sm:$0xff]
    %v199 = vld [vmem:[%s150 + $0x180] sm:$0xff]
    %v200 = vld [vmem:[%s150 + $0x188] sm:$0xff]
    %v201 = vld [vmem:[%s150 + $0x190] sm:$0xff]
    %v202 = vld [vmem:[%s150 + $0x198] sm:$0xff]
    %v203 = vld [vmem:[%s150 + $0x1a0] sm:$0xff]
    %v204 = vld [vmem:[%s150 + $0x1a8] sm:$0xff]
    %v205 = vld [vmem:[%s150 + $0x1b0] sm:$0xff]
    %v206 = vld [vmem:[%s150 + $0x1b8] sm:$0xff]
    %v207 = vld [vmem:[%s150 + $0x1c0] sm:$0xff]
    %v208 = vld [vmem:[%s150 + $0x1c8] sm:$0xff]
    %v209 = vld [vmem:[%s150 + $0x1d0] sm:$0xff]
    %v210 = vld [vmem:[%s150 + $0x1d8] sm:$0xff]
    %v211 = vld [vmem:[%s150 + $0x1e0] sm:$0xff]
    %v212 = vld [vmem:[%s150 + $0x1e8] sm:$0xff]
    %v213 = vld [vmem:[%s150 + $0x1f0] sm:$0xff]
    %v214 = vld [vmem:[%s150 + $0x1f8] sm:$0xff]
    %v217 = vunpack.c.l.b16 %v84
    %v218 = vunpack.c.h.b16 %v84
    %v219 = vunpack.c.l.b16 %v85
    %v220 = vunpack.c.h.b16 %v85
    %v221 = vpack.c.b16 %v219, %v217
    %v222 = vpack.c.b16 %v220, %v218
    %v289 = vunpack.c.l.b16 %v151
    %v290 = vunpack.c.h.b16 %v151
    %v291 = vunpack.c.l.b16 %v152
    %v292 = vunpack.c.h.b16 %v152
    %v293 = vunpack.c.l.b16 %v153
    %v294 = vunpack.c.h.b16 %v153
    %v295 = vunpack.c.l.b16 %v154
    %v296 = vunpack.c.h.b16 %v154
    %v297 = vunpack.c.l.b16 %v155
    %v298 = vunpack.c.h.b16 %v155
    %v299 = vunpack.c.l.b16 %v156
    %v300 = vunpack.c.h.b16 %v156
    %v301 = vunpack.c.l.b16 %v157
    %v302 = vunpack.c.h.b16 %v157
    %v303 = vunpack.c.l.b16 %v158
    %v304 = vunpack.c.h.b16 %v158
    %v305 = vunpack.c.l.b16 %v159
    %v306 = vunpack.c.h.b16 %v159
    %v307 = vunpack.c.l.b16 %v160
    %v308 = vunpack.c.h.b16 %v160
    %v309 = vunpack.c.l.b16 %v161
    %v310 = vunpack.c.h.b16 %v161
    %v311 = vunpack.c.l.b16 %v162
    %v312 = vunpack.c.h.b16 %v162
    %v313 = vunpack.c.l.b16 %v163
    %v314 = vunpack.c.h.b16 %v163
    %v315 = vunpack.c.l.b16 %v164
    %v316 = vunpack.c.h.b16 %v164
    %v317 = vunpack.c.l.b16 %v165
    %v318 = vunpack.c.h.b16 %v165
    %v319 = vunpack.c.l.b16 %v166
    %v320 = vunpack.c.h.b16 %v166
    %v321 = vunpack.c.l.b16 %v167
    %v322 = vunpack.c.h.b16 %v167
    %v323 = vunpack.c.l.b16 %v168
    %v324 = vunpack.c.h.b16 %v168
    %v325 = vunpack.c.l.b16 %v169
    %v326 = vunpack.c.h.b16 %v169
    %v327 = vunpack.c.l.b16 %v170
    %v328 = vunpack.c.h.b16 %v170
    %v329 = vunpack.c.l.b16 %v171
    %v330 = vunpack.c.h.b16 %v171
    %v331 = vunpack.c.l.b16 %v172
    %v332 = vunpack.c.h.b16 %v172
    %v333 = vunpack.c.l.b16 %v173
    %v334 = vunpack.c.h.b16 %v173
    %v335 = vunpack.c.l.b16 %v174
    %v336 = vunpack.c.h.b16 %v174
    %v337 = vunpack.c.l.b16 %v175
    %v338 = vunpack.c.h.b16 %v175
    %v339 = vunpack.c.l.b16 %v176
    %v340 = vunpack.c.h.b16 %v176
    %v341 = vunpack.c.l.b16 %v177
    %v342 = vunpack.c.h.b16 %v177
    %v343 = vunpack.c.l.b16 %v178
    %v344 = vunpack.c.h.b16 %v178
    %v345 = vunpack.c.l.b16 %v179
    %v346 = vunpack.c.h.b16 %v179
    %v347 = vunpack.c.l.b16 %v180
    %v348 = vunpack.c.h.b16 %v180
    %v349 = vunpack.c.l.b16 %v181
    %v350 = vunpack.c.h.b16 %v181
    %v351 = vunpack.c.l.b16 %v182
    %v352 = vunpack.c.h.b16 %v182
    %v353 = vunpack.c.l.b16 %v183
    %v354 = vunpack.c.h.b16 %v183
    %v355 = vunpack.c.l.b16 %v184
    %v356 = vunpack.c.h.b16 %v184
    %v357 = vunpack.c.l.b16 %v185
    %v358 = vunpack.c.h.b16 %v185
    %v359 = vunpack.c.l.b16 %v186
    %v360 = vunpack.c.h.b16 %v186
    %v361 = vunpack.c.l.b16 %v187
    %v362 = vunpack.c.h.b16 %v187
    %v363 = vunpack.c.l.b16 %v188
    %v364 = vunpack.c.h.b16 %v188
    %v365 = vunpack.c.l.b16 %v189
    %v366 = vunpack.c.h.b16 %v189
    %v367 = vunpack.c.l.b16 %v190
    %v368 = vunpack.c.h.b16 %v190
    %v369 = vunpack.c.l.b16 %v191
    %v370 = vunpack.c.h.b16 %v191
    %v371 = vunpack.c.l.b16 %v192
    %v372 = vunpack.c.h.b16 %v192
    %v373 = vunpack.c.l.b16 %v193
    %v374 = vunpack.c.h.b16 %v193
    %v375 = vunpack.c.l.b16 %v194
    %v376 = vunpack.c.h.b16 %v194
    %v377 = vunpack.c.l.b16 %v195
    %v378 = vunpack.c.h.b16 %v195
    %v379 = vunpack.c.l.b16 %v196
    %v380 = vunpack.c.h.b16 %v196
    %v381 = vunpack.c.l.b16 %v197
    %v382 = vunpack.c.h.b16 %v197
    %v383 = vunpack.c.l.b16 %v198
    %v384 = vunpack.c.h.b16 %v198
    %v385 = vunpack.c.l.b16 %v199
    %v386 = vunpack.c.h.b16 %v199
    %v387 = vunpack.c.l.b16 %v200
    %v388 = vunpack.c.h.b16 %v200
    %v389 = vunpack.c.l.b16 %v201
    %v390 = vunpack.c.h.b16 %v201
    %v391 = vunpack.c.l.b16 %v202
    %v392 = vunpack.c.h.b16 %v202
    %v393 = vunpack.c.l.b16 %v203
    %v394 = vunpack.c.h.b16 %v203
    %v395 = vunpack.c.l.b16 %v204
    %v396 = vunpack.c.h.b16 %v204
    %v397 = vunpack.c.l.b16 %v205
    %v398 = vunpack.c.h.b16 %v205
    %v399 = vunpack.c.l.b16 %v206
    %v400 = vunpack.c.h.b16 %v206
    %v401 = vunpack.c.l.b16 %v207
    %v402 = vunpack.c.h.b16 %v207
    %v403 = vunpack.c.l.b16 %v208
    %v404 = vunpack.c.h.b16 %v208
    %v405 = vunpack.c.l.b16 %v209
    %v406 = vunpack.c.h.b16 %v209
    %v407 = vunpack.c.l.b16 %v210
    %v408 = vunpack.c.h.b16 %v210
    %v409 = vunpack.c.l.b16 %v211
    %v410 = vunpack.c.h.b16 %v211
    %v411 = vunpack.c.l.b16 %v212
    %v412 = vunpack.c.h.b16 %v212
    %v413 = vunpack.c.l.b16 %v213
    %v414 = vunpack.c.h.b16 %v213
    %v415 = vunpack.c.l.b16 %v214
    %v416 = vunpack.c.h.b16 %v214
    %v417 = vpack.c.b16 %v293, %v289
    %v418 = vpack.c.b16 %v294, %v290
    %v419 = vpack.c.b16 %v295, %v291
    %v420 = vpack.c.b16 %v296, %v292
    %v421 = vpack.c.b16 %v301, %v297
    %v422 = vpack.c.b16 %v302, %v298
    %v423 = vpack.c.b16 %v303, %v299
    %v424 = vpack.c.b16 %v304, %v300
    %v425 = vpack.c.b16 %v309, %v305
    %v426 = vpack.c.b16 %v310, %v306
    %v427 = vpack.c.b16 %v311, %v307
    %v428 = vpack.c.b16 %v312, %v308
    %v429 = vpack.c.b16 %v317, %v313
    %v430 = vpack.c.b16 %v318, %v314
    %v431 = vpack.c.b16 %v319, %v315
    %v432 = vpack.c.b16 %v320, %v316
    %v433 = vpack.c.b16 %v325, %v321
    %v434 = vpack.c.b16 %v326, %v322
    %v435 = vpack.c.b16 %v327, %v323
    %v436 = vpack.c.b16 %v328, %v324
    %v437 = vpack.c.b16 %v333, %v329
    %v438 = vpack.c.b16 %v334, %v330
    %v439 = vpack.c.b16 %v335, %v331
    %v440 = vpack.c.b16 %v336, %v332
    %v441 = vpack.c.b16 %v341, %v337
    %v442 = vpack.c.b16 %v342, %v338
    %v443 = vpack.c.b16 %v343, %v339
    %v444 = vpack.c.b16 %v344, %v340
    %v445 = vpack.c.b16 %v349, %v345
    %v446 = vpack.c.b16 %v350, %v346
    %v447 = vpack.c.b16 %v351, %v347
    %v448 = vpack.c.b16 %v352, %v348
    %v449 = vpack.c.b16 %v357, %v353
    %v450 = vpack.c.b16 %v358, %v354
    %v451 = vpack.c.b16 %v359, %v355
    %v452 = vpack.c.b16 %v360, %v356
    %v453 = vpack.c.b16 %v365, %v361
    %v454 = vpack.c.b16 %v366, %v362
    %v455 = vpack.c.b16 %v367, %v363
    %v456 = vpack.c.b16 %v368, %v364
    %v457 = vpack.c.b16 %v373, %v369
    %v458 = vpack.c.b16 %v374, %v370
    %v459 = vpack.c.b16 %v375, %v371
    %v460 = vpack.c.b16 %v376, %v372
    %v461 = vpack.c.b16 %v381, %v377
    %v462 = vpack.c.b16 %v382, %v378
    %v463 = vpack.c.b16 %v383, %v379
    %v464 = vpack.c.b16 %v384, %v380
    %v465 = vpack.c.b16 %v389, %v385
    %v466 = vpack.c.b16 %v390, %v386
    %v467 = vpack.c.b16 %v391, %v387
    %v468 = vpack.c.b16 %v392, %v388
    %v469 = vpack.c.b16 %v397, %v393
    %v470 = vpack.c.b16 %v398, %v394
    %v471 = vpack.c.b16 %v399, %v395
    %v472 = vpack.c.b16 %v400, %v396
    %v473 = vpack.c.b16 %v405, %v401
    %v474 = vpack.c.b16 %v406, %v402
    %v475 = vpack.c.b16 %v407, %v403
    %v476 = vpack.c.b16 %v408, %v404
    %v477 = vpack.c.b16 %v413, %v409
    %v478 = vpack.c.b16 %v414, %v410
    %v479 = vpack.c.b16 %v415, %v411
    %v480 = vpack.c.b16 %v416, %v412
    %545 = vmatpush.bf16.msra.mxu0 %v445
    %546 = vmatpush.bf16.msra.mxu0 %v441
    %547 = vmatpush.bf16.msra.mxu0 %v437
    %548 = vmatpush.bf16.msra.mxu0 %v433
    %549 = vmatpush.bf16.msra.mxu0 %v429
    %550 = vmatpush.bf16.msra.mxu0 %v425
    %551 = vmatpush.bf16.msra.mxu0 %v421
    %552 = vmatpush.bf16.msra.mxu0 %v417
    %553 = vmatmul.bf16.gmra.mxu0 %v221
    %v554 = vpop.f32.mrf.mxu0
    %v555 = vadd.f32 0.0, %v554
    %v556 = vpop.f32.mrf.mxu0
    %v557 = vadd.f32 0.0, %v556
    %558 = vdwg.mxu0
    %559 = vmatpush.bf16.msra.mxu0 %v477
    %560 = vmatpush.bf16.msra.mxu0 %v473
    %561 = vmatpush.bf16.msra.mxu0 %v469
    %562 = vmatpush.bf16.msra.mxu0 %v465
    %563 = vmatpush.bf16.msra.mxu0 %v461
    %564 = vmatpush.bf16.msra.mxu0 %v457
    %565 = vmatpush.bf16.msra.mxu0 %v453
    %566 = vmatpush.bf16.msra.mxu0 %v449
    %567 = vmatmul.bf16.gmra.mxu0 %v222
    %v568 = vpop.f32.mrf.mxu0
    %v569 = vadd.f32 %v555, %v568
    %v570 = vpop.f32.mrf.mxu0
    %v571 = vadd.f32 %v557, %v570
    %572 = vdwg.mxu0
    %573 = vmatpush.bf16.msra.mxu0 %v446
    %574 = vmatpush.bf16.msra.mxu0 %v442
    %575 = vmatpush.bf16.msra.mxu0 %v438
    %576 = vmatpush.bf16.msra.mxu0 %v434
    %577 = vmatpush.bf16.msra.mxu0 %v430
    %578 = vmatpush.bf16.msra.mxu0 %v426
    %579 = vmatpush.bf16.msra.mxu0 %v422
    %580 = vmatpush.bf16.msra.mxu0 %v418
    %581 = vmatmul.bf16.gmra.mxu0 %v221
    %v582 = vpop.f32.mrf.mxu0
    %v583 = vadd.f32 0.0, %v582
    %v584 = vpop.f32.mrf.mxu0
    %v585 = vadd.f32 0.0, %v584
    %586 = vdwg.mxu0
    %587 = vmatpush.bf16.msra.mxu0 %v478
    %588 = vmatpush.bf16.msra.mxu0 %v474
    %589 = vmatpush.bf16.msra.mxu0 %v470
    %590 = vmatpush.bf16.msra.mxu0 %v466
    %591 = vmatpush.bf16.msra.mxu0 %v462
    %592 = vmatpush.bf16.msra.mxu0 %v458
    %593 = vmatpush.bf16.msra.mxu0 %v454
    %594 = vmatpush.bf16.msra.mxu0 %v450
    %595 = vmatmul.bf16.gmra.mxu0 %v222
    %v596 = vpop.f32.mrf.mxu0
    %v597 = vadd.f32 %v583, %v596
    %v598 = vpop.f32.mrf.mxu0
    %v599 = vadd.f32 %v585, %v598
    %600 = vdwg.mxu0
    %601 = vmatpush.bf16.msra.mxu0 %v447
    %602 = vmatpush.bf16.msra.mxu0 %v443
    %603 = vmatpush.bf16.msra.mxu0 %v439
    %604 = vmatpush.bf16.msra.mxu0 %v435
    %605 = vmatpush.bf16.msra.mxu0 %v431
    %606 = vmatpush.bf16.msra.mxu0 %v427
    %607 = vmatpush.bf16.msra.mxu0 %v423
    %608 = vmatpush.bf16.msra.mxu0 %v419
    %609 = vmatmul.bf16.gmra.mxu0 %v221
    %v610 = vpop.f32.mrf.mxu0
    %v611 = vadd.f32 0.0, %v610
    %v612 = vpop.f32.mrf.mxu0
    %v613 = vadd.f32 0.0, %v612
    %614 = vdwg.mxu0
    %615 = vmatpush.bf16.msra.mxu0 %v479
    %616 = vmatpush.bf16.msra.mxu0 %v475
    %617 = vmatpush.bf16.msra.mxu0 %v471
    %618 = vmatpush.bf16.msra.mxu0 %v467
    %619 = vmatpush.bf16.msra.mxu0 %v463
    %620 = vmatpush.bf16.msra.mxu0 %v459
    %621 = vmatpush.bf16.msra.mxu0 %v455
    %622 = vmatpush.bf16.msra.mxu0 %v451
    %623 = vmatmul.bf16.gmra.mxu0 %v222
    %v624 = vpop.f32.mrf.mxu0
    %v625 = vadd.f32 %v611, %v624
    %v626 = vpop.f32.mrf.mxu0
    %v627 = vadd.f32 %v613, %v626
    %628 = vdwg.mxu0
    %629 = vmatpush.bf16.msra.mxu0 %v448
    %630 = vmatpush.bf16.msra.mxu0 %v444
    %631 = vmatpush.bf16.msra.mxu0 %v440
    %632 = vmatpush.bf16.msra.mxu0 %v436
    %633 = vmatpush.bf16.msra.mxu0 %v432
    %634 = vmatpush.bf16.msra.mxu0 %v428
    %635 = vmatpush.bf16.msra.mxu0 %v424
    %636 = vmatpush.bf16.msra.mxu0 %v420
    %637 = vmatmul.bf16.gmra.mxu0 %v221
    %v638 = vpop.f32.mrf.mxu0
    %v639 = vadd.f32 0.0, %v638
    %v640 = vpop.f32.mrf.mxu0
    %v641 = vadd.f32 0.0, %v640
    %642 = vdwg.mxu0
    %643 = vmatpush.bf16.msra.mxu0 %v480
    %644 = vmatpush.bf16.msra.mxu0 %v476
    %645 = vmatpush.bf16.msra.mxu0 %v472
    %646 = vmatpush.bf16.msra.mxu0 %v468
    %647 = vmatpush.bf16.msra.mxu0 %v464
    %648 = vmatpush.bf16.msra.mxu0 %v460
    %649 = vmatpush.bf16.msra.mxu0 %v456
    %650 = vmatpush.bf16.msra.mxu0 %v452
    %651 = vmatmul.bf16.gmra.mxu0 %v222
    %v652 = vpop.f32.mrf.mxu0
    %v653 = vadd.f32 %v639, %v652
    %v654 = vpop.f32.mrf.mxu0
    %v655 = vadd.f32 %v641, %v654
    %656 = vdwg.mxu0
    %v659 = vunpack.c.l.b16 %v81
    %v660 = vunpack.c.h.b16 %v81
    %v661 = vunpack.c.l.b16 %v82
    %v662 = vunpack.c.h.b16 %v82
    %v663 = vpack.c.b16 %v661, %v659
    %v664 = vpack.c.b16 %v662, %v660
    %v731 = vunpack.c.l.b16 %v86
    %v732 = vunpack.c.h.b16 %v86
    %v733 = vunpack.c.l.b16 %v87
    %v734 = vunpack.c.h.b16 %v87
    %v735 = vunpack.c.l.b16 %v88
    %v736 = vunpack.c.h.b16 %v88
    %v737 = vunpack.c.l.b16 %v89
    %v738 = vunpack.c.h.b16 %v89
    %v739 = vunpack.c.l.b16 %v90
    %v740 = vunpack.c.h.b16 %v90
    %v741 = vunpack.c.l.b16 %v91
    %v742 = vunpack.c.h.b16 %v91
    %v743 = vunpack.c.l.b16 %v92
    %v744 = vunpack.c.h.b16 %v92
    %v745 = vunpack.c.l.b16 %v93
    %v746 = vunpack.c.h.b16 %v93
    %v747 = vunpack.c.l.b16 %v94
    %v748 = vunpack.c.h.b16 %v94
    %v749 = vunpack.c.l.b16 %v95
    %v750 = vunpack.c.h.b16 %v95
    %v751 = vunpack.c.l.b16 %v96
    %v752 = vunpack.c.h.b16 %v96
    %v753 = vunpack.c.l.b16 %v97
    %v754 = vunpack.c.h.b16 %v97
    %v755 = vunpack.c.l.b16 %v98
    %v756 = vunpack.c.h.b16 %v98
    %v757 = vunpack.c.l.b16 %v99
    %v758 = vunpack.c.h.b16 %v99
    %v759 = vunpack.c.l.b16 %v100
    %v760 = vunpack.c.h.b16 %v100
    %v761 = vunpack.c.l.b16 %v101
    %v762 = vunpack.c.h.b16 %v101
    %v763 = vunpack.c.l.b16 %v102
    %v764 = vunpack.c.h.b16 %v102
    %v765 = vunpack.c.l.b16 %v103
    %v766 = vunpack.c.h.b16 %v103
    %v767 = vunpack.c.l.b16 %v104
    %v768 = vunpack.c.h.b16 %v104
    %v769 = vunpack.c.l.b16 %v105
    %v770 = vunpack.c.h.b16 %v105
    %v771 = vunpack.c.l.b16 %v106
    %v772 = vunpack.c.h.b16 %v106
    %v773 = vunpack.c.l.b16 %v107
    %v774 = vunpack.c.h.b16 %v107
    %v775 = vunpack.c.l.b16 %v108
    %v776 = vunpack.c.h.b16 %v108
    %v777 = vunpack.c.l.b16 %v109
    %v778 = vunpack.c.h.b16 %v109
    %v779 = vunpack.c.l.b16 %v110
    %v780 = vunpack.c.h.b16 %v110
    %v781 = vunpack.c.l.b16 %v111
    %v782 = vunpack.c.h.b16 %v111
    %v783 = vunpack.c.l.b16 %v112
    %v784 = vunpack.c.h.b16 %v112
    %v785 = vunpack.c.l.b16 %v113
    %v786 = vunpack.c.h.b16 %v113
    %v787 = vunpack.c.l.b16 %v114
    %v788 = vunpack.c.h.b16 %v114
    %v789 = vunpack.c.l.b16 %v115
    %v790 = vunpack.c.h.b16 %v115
    %v791 = vunpack.c.l.b16 %v116
    %v792 = vunpack.c.h.b16 %v116
    %v793 = vunpack.c.l.b16 %v117
    %v794 = vunpack.c.h.b16 %v117
    %v795 = vunpack.c.l.b16 %v118
    %v796 = vunpack.c.h.b16 %v118
    %v797 = vunpack.c.l.b16 %v119
    %v798 = vunpack.c.h.b16 %v119
    %v799 = vunpack.c.l.b16 %v120
    %v800 = vunpack.c.h.b16 %v120
    %v801 = vunpack.c.l.b16 %v121
    %v802 = vunpack.c.h.b16 %v121
    %v803 = vunpack.c.l.b16 %v122
    %v804 = vunpack.c.h.b16 %v122
    %v805 = vunpack.c.l.b16 %v123
    %v806 = vunpack.c.h.b16 %v123
    %v807 = vunpack.c.l.b16 %v124
    %v808 = vunpack.c.h.b16 %v124
    %v809 = vunpack.c.l.b16 %v125
    %v810 = vunpack.c.h.b16 %v125
    %v811 = vunpack.c.l.b16 %v126
    %v812 = vunpack.c.h.b16 %v126
    %v813 = vunpack.c.l.b16 %v127
    %v814 = vunpack.c.h.b16 %v127
    %v815 = vunpack.c.l.b16 %v128
    %v816 = vunpack.c.h.b16 %v128
    %v817 = vunpack.c.l.b16 %v129
    %v818 = vunpack.c.h.b16 %v129
    %v819 = vunpack.c.l.b16 %v130
    %v820 = vunpack.c.h.b16 %v130
    %v821 = vunpack.c.l.b16 %v131
    %v822 = vunpack.c.h.b16 %v131
    %v823 = vunpack.c.l.b16 %v132
    %v824 = vunpack.c.h.b16 %v132
    %v825 = vunpack.c.l.b16 %v133
    %v826 = vunpack.c.h.b16 %v133
    %v827 = vunpack.c.l.b16 %v134
    %v828 = vunpack.c.h.b16 %v134
    %v829 = vunpack.c.l.b16 %v135
    %v830 = vunpack.c.h.b16 %v135
    %v831 = vunpack.c.l.b16 %v136
    %v832 = vunpack.c.h.b16 %v136
    %v833 = vunpack.c.l.b16 %v137
    %v834 = vunpack.c.h.b16 %v137
    %v835 = vunpack.c.l.b16 %v138
    %v836 = vunpack.c.h.b16 %v138
    %v837 = vunpack.c.l.b16 %v139
    %v838 = vunpack.c.h.b16 %v139
    %v839 = vunpack.c.l.b16 %v140
    %v840 = vunpack.c.h.b16 %v140
    %v841 = vunpack.c.l.b16 %v141
    %v842 = vunpack.c.h.b16 %v141
    %v843 = vunpack.c.l.b16 %v142
    %v844 = vunpack.c.h.b16 %v142
    %v845 = vunpack.c.l.b16 %v143
    %v846 = vunpack.c.h.b16 %v143
    %v847 = vunpack.c.l.b16 %v144
    %v848 = vunpack.c.h.b16 %v144
    %v849 = vunpack.c.l.b16 %v145
    %v850 = vunpack.c.h.b16 %v145
    %v851 = vunpack.c.l.b16 %v146
    %v852 = vunpack.c.h.b16 %v146
    %v853 = vunpack.c.l.b16 %v147
    %v854 = vunpack.c.h.b16 %v147
    %v855 = vunpack.c.l.b16 %v148
    %v856 = vunpack.c.h.b16 %v148
    %v857 = vunpack.c.l.b16 %v149
    %v858 = vunpack.c.h.b16 %v149
    %v859 = vpack.c.b16 %v735, %v731
    %v860 = vpack.c.b16 %v736, %v732
    %v861 = vpack.c.b16 %v737, %v733
    %v862 = vpack.c.b16 %v738, %v734
    %v863 = vpack.c.b16 %v743, %v739
    %v864 = vpack.c.b16 %v744, %v740
    %v865 = vpack.c.b16 %v745, %v741
    %v866 = vpack.c.b16 %v746, %v742
    %v867 = vpack.c.b16 %v751, %v747
    %v868 = vpack.c.b16 %v752, %v748
    %v869 = vpack.c.b16 %v753, %v749
    %v870 = vpack.c.b16 %v754, %v750
    %v871 = vpack.c.b16 %v759, %v755
    %v872 = vpack.c.b16 %v760, %v756
    %v873 = vpack.c.b16 %v761, %v757
    %v874 = vpack.c.b16 %v762, %v758
    %v875 = vpack.c.b16 %v767, %v763
    %v876 = vpack.c.b16 %v768, %v764
    %v877 = vpack.c.b16 %v769, %v765
    %v878 = vpack.c.b16 %v770, %v766
    %v879 = vpack.c.b16 %v775, %v771
    %v880 = vpack.c.b16 %v776, %v772
    %v881 = vpack.c.b16 %v777, %v773
    %v882 = vpack.c.b16 %v778, %v774
    %v883 = vpack.c.b16 %v783, %v779
    %v884 = vpack.c.b16 %v784, %v780
    %v885 = vpack.c.b16 %v785, %v781
    %v886 = vpack.c.b16 %v786, %v782
    %v887 = vpack.c.b16 %v791, %v787
    %v888 = vpack.c.b16 %v792, %v788
    %v889 = vpack.c.b16 %v793, %v789
    %v890 = vpack.c.b16 %v794, %v790
    %v891 = vpack.c.b16 %v799, %v795
    %v892 = vpack.c.b16 %v800, %v796
    %v893 = vpack.c.b16 %v801, %v797
    %v894 = vpack.c.b16 %v802, %v798
    %v895 = vpack.c.b16 %v807, %v803
    %v896 = vpack.c.b16 %v808, %v804
    %v897 = vpack.c.b16 %v809, %v805
    %v898 = vpack.c.b16 %v810, %v806
    %v899 = vpack.c.b16 %v815, %v811
    %v900 = vpack.c.b16 %v816, %v812
    %v901 = vpack.c.b16 %v817, %v813
    %v902 = vpack.c.b16 %v818, %v814
    %v903 = vpack.c.b16 %v823, %v819
    %v904 = vpack.c.b16 %v824, %v820
    %v905 = vpack.c.b16 %v825, %v821
    %v906 = vpack.c.b16 %v826, %v822
    %v907 = vpack.c.b16 %v831, %v827
    %v908 = vpack.c.b16 %v832, %v828
    %v909 = vpack.c.b16 %v833, %v829
    %v910 = vpack.c.b16 %v834, %v830
    %v911 = vpack.c.b16 %v839, %v835
    %v912 = vpack.c.b16 %v840, %v836
    %v913 = vpack.c.b16 %v841, %v837
    %v914 = vpack.c.b16 %v842, %v838
    %v915 = vpack.c.b16 %v847, %v843
    %v916 = vpack.c.b16 %v848, %v844
    %v917 = vpack.c.b16 %v849, %v845
    %v918 = vpack.c.b16 %v850, %v846
    %v919 = vpack.c.b16 %v855, %v851
    %v920 = vpack.c.b16 %v856, %v852
    %v921 = vpack.c.b16 %v857, %v853
    %v922 = vpack.c.b16 %v858, %v854
    %987 = vmatpush.bf16.msra.mxu0 %v887
    %988 = vmatpush.bf16.msra.mxu0 %v883
    %989 = vmatpush.bf16.msra.mxu0 %v879
    %990 = vmatpush.bf16.msra.mxu0 %v875
    %991 = vmatpush.bf16.msra.mxu0 %v871
    %992 = vmatpush.bf16.msra.mxu0 %v867
    %993 = vmatpush.bf16.msra.mxu0 %v863
    %994 = vmatpush.bf16.msra.mxu0 %v859
    %995 = vmatmul.bf16.gmra.mxu0 %v663
    %v996 = vpop.f32.mrf.mxu0
    %v997 = vadd.f32 %v569, %v996
    %v998 = vpop.f32.mrf.mxu0
    %v999 = vadd.f32 %v571, %v998
    %1000 = vdwg.mxu0
    %1001 = vmatpush.bf16.msra.mxu0 %v919
    %1002 = vmatpush.bf16.msra.mxu0 %v915
    %1003 = vmatpush.bf16.msra.mxu0 %v911
    %1004 = vmatpush.bf16.msra.mxu0 %v907
    %1005 = vmatpush.bf16.msra.mxu0 %v903
    %1006 = vmatpush.bf16.msra.mxu0 %v899
    %1007 = vmatpush.bf16.msra.mxu0 %v895
    %1008 = vmatpush.bf16.msra.mxu0 %v891
    %1009 = vmatmul.bf16.gmra.mxu0 %v664
    %v1010 = vpop.f32.mrf.mxu0
    %v1011 = vadd.f32 %v997, %v1010
    %v1012 = vpop.f32.mrf.mxu0
    %v1013 = vadd.f32 %v999, %v1012
    %1014 = vdwg.mxu0
    %1015 = vmatpush.bf16.msra.mxu0 %v888
    %1016 = vmatpush.bf16.msra.mxu0 %v884
    %1017 = vmatpush.bf16.msra.mxu0 %v880
    %1018 = vmatpush.bf16.msra.mxu0 %v876
    %1019 = vmatpush.bf16.msra.mxu0 %v872
    %1020 = vmatpush.bf16.msra.mxu0 %v868
    %1021 = vmatpush.bf16.msra.mxu0 %v864
    %1022 = vmatpush.bf16.msra.mxu0 %v860
    %1023 = vmatmul.bf16.gmra.mxu0 %v663
    %v1024 = vpop.f32.mrf.mxu0
    %v1025 = vadd.f32 %v597, %v1024
    %v1026 = vpop.f32.mrf.mxu0
    %v1027 = vadd.f32 %v599, %v1026
    %1028 = vdwg.mxu0
    %1029 = vmatpush.bf16.msra.mxu0 %v920
    %1030 = vmatpush.bf16.msra.mxu0 %v916
    %1031 = vmatpush.bf16.msra.mxu0 %v912
    %1032 = vmatpush.bf16.msra.mxu0 %v908
    %1033 = vmatpush.bf16.msra.mxu0 %v904
    %1034 = vmatpush.bf16.msra.mxu0 %v900
    %1035 = vmatpush.bf16.msra.mxu0 %v896
    %1036 = vmatpush.bf16.msra.mxu0 %v892
    %1037 = vmatmul.bf16.gmra.mxu0 %v664
    %v1038 = vpop.f32.mrf.mxu0
    %v1039 = vadd.f32 %v1025, %v1038
    %v1040 = vpop.f32.mrf.mxu0
    %v1041 = vadd.f32 %v1027, %v1040
    %1042 = vdwg.mxu0
    %1043 = vmatpush.bf16.msra.mxu0 %v889
    %1044 = vmatpush.bf16.msra.mxu0 %v885
    %1045 = vmatpush.bf16.msra.mxu0 %v881
    %1046 = vmatpush.bf16.msra.mxu0 %v877
    %1047 = vmatpush.bf16.msra.mxu0 %v873
    %1048 = vmatpush.bf16.msra.mxu0 %v869
    %1049 = vmatpush.bf16.msra.mxu0 %v865
    %1050 = vmatpush.bf16.msra.mxu0 %v861
    %1051 = vmatmul.bf16.gmra.mxu0 %v663
    %v1052 = vpop.f32.mrf.mxu0
    %v1053 = vadd.f32 %v625, %v1052
    %v1054 = vpop.f32.mrf.mxu0
    %v1055 = vadd.f32 %v627, %v1054
    %1056 = vdwg.mxu0
    %1057 = vmatpush.bf16.msra.mxu0 %v921
    %1058 = vmatpush.bf16.msra.mxu0 %v917
    %1059 = vmatpush.bf16.msra.mxu0 %v913
    %1060 = vmatpush.bf16.msra.mxu0 %v909
    %1061 = vmatpush.bf16.msra.mxu0 %v905
    %1062 = vmatpush.bf16.msra.mxu0 %v901
    %1063 = vmatpush.bf16.msra.mxu0 %v897
    %1064 = vmatpush.bf16.msra.mxu0 %v893
    %1065 = vmatmul.bf16.gmra.mxu0 %v664
    %v1066 = vpop.f32.mrf.mxu0
    %v1067 = vadd.f32 %v1053, %v1066
    %v1068 = vpop.f32.mrf.mxu0
    %v1069 = vadd.f32 %v1055, %v1068
    %1070 = vdwg.mxu0
    %1071 = vmatpush.bf16.msra.mxu0 %v890
    %1072 = vmatpush.bf16.msra.mxu0 %v886
    %1073 = vmatpush.bf16.msra.mxu0 %v882
    %1074 = vmatpush.bf16.msra.mxu0 %v878
    %1075 = vmatpush.bf16.msra.mxu0 %v874
    %1076 = vmatpush.bf16.msra.mxu0 %v870
    %1077 = vmatpush.bf16.msra.mxu0 %v866
    %1078 = vmatpush.bf16.msra.mxu0 %v862
    %1079 = vmatmul.bf16.gmra.mxu0 %v663
    %v1080 = vpop.f32.mrf.mxu0
    %v1081 = vadd.f32 %v653, %v1080
    %v1082 = vpop.f32.mrf.mxu0
    %v1083 = vadd.f32 %v655, %v1082
    %1084 = vdwg.mxu0
    %1085 = vmatpush.bf16.msra.mxu0 %v922
    %1086 = vmatpush.bf16.msra.mxu0 %v918
    %1087 = vmatpush.bf16.msra.mxu0 %v914
    %1088 = vmatpush.bf16.msra.mxu0 %v910
    %1089 = vmatpush.bf16.msra.mxu0 %v906
    %1090 = vmatpush.bf16.msra.mxu0 %v902
    %1091 = vmatpush.bf16.msra.mxu0 %v898
    %1092 = vmatpush.bf16.msra.mxu0 %v894
    %1093 = vmatmul.bf16.gmra.mxu0 %v664
    %v1094 = vpop.f32.mrf.mxu0
    %v1095 = vadd.f32 %v1081, %v1094
    %v1096 = vpop.f32.mrf.mxu0
    %v1097 = vadd.f32 %v1083, %v1096
    %1098 = vdwg.mxu0
    %v1100 = vshrl.u32 %v663, 16
    %v1102 = vshll.u32 %v663, 16
    %v1104 = vrot.slane %v1102, 1
    %v1105 = vor.u32 %v1100, %v1104
    %v1107 = vshrl.u32 %v664, 16
    %v1109 = vshll.u32 %v664, 16
    %v1111 = vrot.slane %v1109, 1
    %v1112 = vor.u32 %v1107, %v1111
    %1115 = vmatpush.bf16.msra.mxu0 %v445
    %1116 = vmatpush.bf16.msra.mxu0 %v441
    %1117 = vmatpush.bf16.msra.mxu0 %v437
    %1118 = vmatpush.bf16.msra.mxu0 %v433
    %1119 = vmatpush.bf16.msra.mxu0 %v429
    %1120 = vmatpush.bf16.msra.mxu0 %v425
    %1121 = vmatpush.bf16.msra.mxu0 %v421
    %1122 = vmatpush.bf16.msra.mxu0 %v417
    %1123 = vmatmul.bf16.gmra.mxu0 %v1105
    %v1124 = vpop.f32.mrf.mxu0
    %v1125 = vadd.f32 0.0, %v1124
    %v1126 = vpop.f32.mrf.mxu0
    %v1127 = vadd.f32 0.0, %v1126
    %1128 = vdwg.mxu0
    %1129 = vmatpush.bf16.msra.mxu0 %v477
    %1130 = vmatpush.bf16.msra.mxu0 %v473
    %1131 = vmatpush.bf16.msra.mxu0 %v469
    %1132 = vmatpush.bf16.msra.mxu0 %v465
    %1133 = vmatpush.bf16.msra.mxu0 %v461
    %1134 = vmatpush.bf16.msra.mxu0 %v457
    %1135 = vmatpush.bf16.msra.mxu0 %v453
    %1136 = vmatpush.bf16.msra.mxu0 %v449
    %1137 = vmatmul.bf16.gmra.mxu0 %v1112
    %v1138 = vpop.f32.mrf.mxu0
    %v1139 = vadd.f32 %v1125, %v1138
    %v1140 = vpop.f32.mrf.mxu0
    %v1141 = vadd.f32 %v1127, %v1140
    %1142 = vdwg.mxu0
    %1143 = vmatpush.bf16.msra.mxu0 %v446
    %1144 = vmatpush.bf16.msra.mxu0 %v442
    %1145 = vmatpush.bf16.msra.mxu0 %v438
    %1146 = vmatpush.bf16.msra.mxu0 %v434
    %1147 = vmatpush.bf16.msra.mxu0 %v430
    %1148 = vmatpush.bf16.msra.mxu0 %v426
    %1149 = vmatpush.bf16.msra.mxu0 %v422
    %1150 = vmatpush.bf16.msra.mxu0 %v418
    %1151 = vmatmul.bf16.gmra.mxu0 %v1105
    %v1152 = vpop.f32.mrf.mxu0
    %v1153 = vadd.f32 0.0, %v1152
    %v1154 = vpop.f32.mrf.mxu0
    %v1155 = vadd.f32 0.0, %v1154
    %1156 = vdwg.mxu0
    %1157 = vmatpush.bf16.msra.mxu0 %v478
    %1158 = vmatpush.bf16.msra.mxu0 %v474
    %1159 = vmatpush.bf16.msra.mxu0 %v470
    %1160 = vmatpush.bf16.msra.mxu0 %v466
    %1161 = vmatpush.bf16.msra.mxu0 %v462
    %1162 = vmatpush.bf16.msra.mxu0 %v458
    %1163 = vmatpush.bf16.msra.mxu0 %v454
    %1164 = vmatpush.bf16.msra.mxu0 %v450
    %1165 = vmatmul.bf16.gmra.mxu0 %v1112
    %v1166 = vpop.f32.mrf.mxu0
    %v1167 = vadd.f32 %v1153, %v1166
    %v1168 = vpop.f32.mrf.mxu0
    %v1169 = vadd.f32 %v1155, %v1168
    %1170 = vdwg.mxu0
    %1171 = vmatpush.bf16.msra.mxu0 %v447
    %1172 = vmatpush.bf16.msra.mxu0 %v443
    %1173 = vmatpush.bf16.msra.mxu0 %v439
    %1174 = vmatpush.bf16.msra.mxu0 %v435
    %1175 = vmatpush.bf16.msra.mxu0 %v431
    %1176 = vmatpush.bf16.msra.mxu0 %v427
    %1177 = vmatpush.bf16.msra.mxu0 %v423
    %1178 = vmatpush.bf16.msra.mxu0 %v419
    %1179 = vmatmul.bf16.gmra.mxu0 %v1105
    %v1180 = vpop.f32.mrf.mxu0
    %v1181 = vadd.f32 0.0, %v1180
    %v1182 = vpop.f32.mrf.mxu0
    %v1183 = vadd.f32 0.0, %v1182
    %1184 = vdwg.mxu0
    %1185 = vmatpush.bf16.msra.mxu0 %v479
    %1186 = vmatpush.bf16.msra.mxu0 %v475
    %1187 = vmatpush.bf16.msra.mxu0 %v471
    %1188 = vmatpush.bf16.msra.mxu0 %v467
    %1189 = vmatpush.bf16.msra.mxu0 %v463
    %1190 = vmatpush.bf16.msra.mxu0 %v459
    %1191 = vmatpush.bf16.msra.mxu0 %v455
    %1192 = vmatpush.bf16.msra.mxu0 %v451
    %1193 = vmatmul.bf16.gmra.mxu0 %v1112
    %v1194 = vpop.f32.mrf.mxu0
    %v1195 = vadd.f32 %v1181, %v1194
    %v1196 = vpop.f32.mrf.mxu0
    %v1197 = vadd.f32 %v1183, %v1196
    %1198 = vdwg.mxu0
    %1199 = vmatpush.bf16.msra.mxu0 %v448
    %1200 = vmatpush.bf16.msra.mxu0 %v444
    %1201 = vmatpush.bf16.msra.mxu0 %v440
    %1202 = vmatpush.bf16.msra.mxu0 %v436
    %1203 = vmatpush.bf16.msra.mxu0 %v432
    %1204 = vmatpush.bf16.msra.mxu0 %v428
    %1205 = vmatpush.bf16.msra.mxu0 %v424
    %1206 = vmatpush.bf16.msra.mxu0 %v420
    %1207 = vmatmul.bf16.gmra.mxu0 %v1105
    %v1208 = vpop.f32.mrf.mxu0
    %v1209 = vadd.f32 0.0, %v1208
    %v1210 = vpop.f32.mrf.mxu0
    %v1211 = vadd.f32 0.0, %v1210
    %1212 = vdwg.mxu0
    %1213 = vmatpush.bf16.msra.mxu0 %v480
    %1214 = vmatpush.bf16.msra.mxu0 %v476
    %1215 = vmatpush.bf16.msra.mxu0 %v472
    %1216 = vmatpush.bf16.msra.mxu0 %v468
    %1217 = vmatpush.bf16.msra.mxu0 %v464
    %1218 = vmatpush.bf16.msra.mxu0 %v460
    %1219 = vmatpush.bf16.msra.mxu0 %v456
    %1220 = vmatpush.bf16.msra.mxu0 %v452
    %1221 = vmatmul.bf16.gmra.mxu0 %v1112
    %v1222 = vpop.f32.mrf.mxu0
    %v1223 = vadd.f32 %v1209, %v1222
    %v1224 = vpop.f32.mrf.mxu0
    %v1225 = vadd.f32 %v1211, %v1224
    %1226 = vdwg.mxu0
    %1227 = vmatpush.bf16.msra.mxu0 %v887
    %1228 = vmatpush.bf16.msra.mxu0 %v883
    %1229 = vmatpush.bf16.msra.mxu0 %v879
    %1230 = vmatpush.bf16.msra.mxu0 %v875
    %1231 = vmatpush.bf16.msra.mxu0 %v871
    %1232 = vmatpush.bf16.msra.mxu0 %v867
    %1233 = vmatpush.bf16.msra.mxu0 %v863
    %1234 = vmatpush.bf16.msra.mxu0 %v859
    %1235 = vmatmul.bf16.gmra.mxu0 %v221
    %v1236 = vpop.f32.mrf.mxu0
    %v1237 = vadd.f32 %v1139, %v1236
    %v1238 = vpop.f32.mrf.mxu0
    %v1239 = vadd.f32 %v1141, %v1238
    %1240 = vdwg.mxu0
    %1241 = vmatpush.bf16.msra.mxu0 %v919
    %1242 = vmatpush.bf16.msra.mxu0 %v915
    %1243 = vmatpush.bf16.msra.mxu0 %v911
    %1244 = vmatpush.bf16.msra.mxu0 %v907
    %1245 = vmatpush.bf16.msra.mxu0 %v903
    %1246 = vmatpush.bf16.msra.mxu0 %v899
    %1247 = vmatpush.bf16.msra.mxu0 %v895
    %1248 = vmatpush.bf16.msra.mxu0 %v891
    %1249 = vmatmul.bf16.gmra.mxu0 %v222
    %v1250 = vpop.f32.mrf.mxu0
    %v1251 = vadd.f32 %v1237, %v1250
    %v1252 = vpop.f32.mrf.mxu0
    %v1253 = vadd.f32 %v1239, %v1252
    %1254 = vdwg.mxu0
    %1255 = vmatpush.bf16.msra.mxu0 %v888
    %1256 = vmatpush.bf16.msra.mxu0 %v884
    %1257 = vmatpush.bf16.msra.mxu0 %v880
    %1258 = vmatpush.bf16.msra.mxu0 %v876
    %1259 = vmatpush.bf16.msra.mxu0 %v872
    %1260 = vmatpush.bf16.msra.mxu0 %v868
    %1261 = vmatpush.bf16.msra.mxu0 %v864
    %1262 = vmatpush.bf16.msra.mxu0 %v860
    %1263 = vmatmul.bf16.gmra.mxu0 %v221
    %v1264 = vpop.f32.mrf.mxu0
    %v1265 = vadd.f32 %v1167, %v1264
    %v1266 = vpop.f32.mrf.mxu0
    %v1267 = vadd.f32 %v1169, %v1266
    %1268 = vdwg.mxu0
    %1269 = vmatpush.bf16.msra.mxu0 %v920
    %1270 = vmatpush.bf16.msra.mxu0 %v916
    %1271 = vmatpush.bf16.msra.mxu0 %v912
    %1272 = vmatpush.bf16.msra.mxu0 %v908
    %1273 = vmatpush.bf16.msra.mxu0 %v904
    %1274 = vmatpush.bf16.msra.mxu0 %v900
    %1275 = vmatpush.bf16.msra.mxu0 %v896
    %1276 = vmatpush.bf16.msra.mxu0 %v892
    %1277 = vmatmul.bf16.gmra.mxu0 %v222
    %v1278 = vpop.f32.mrf.mxu0
    %v1279 = vadd.f32 %v1265, %v1278
    %v1280 = vpop.f32.mrf.mxu0
    %v1281 = vadd.f32 %v1267, %v1280
    %1282 = vdwg.mxu0
    %1283 = vmatpush.bf16.msra.mxu0 %v889
    %1284 = vmatpush.bf16.msra.mxu0 %v885
    %1285 = vmatpush.bf16.msra.mxu0 %v881
    %1286 = vmatpush.bf16.msra.mxu0 %v877
    %1287 = vmatpush.bf16.msra.mxu0 %v873
    %1288 = vmatpush.bf16.msra.mxu0 %v869
    %1289 = vmatpush.bf16.msra.mxu0 %v865
    %1290 = vmatpush.bf16.msra.mxu0 %v861
    %1291 = vmatmul.bf16.gmra.mxu0 %v221
    %v1292 = vpop.f32.mrf.mxu0
    %v1293 = vadd.f32 %v1195, %v1292
    %v1294 = vpop.f32.mrf.mxu0
    %v1295 = vadd.f32 %v1197, %v1294
    %1296 = vdwg.mxu0
    %1297 = vmatpush.bf16.msra.mxu0 %v921
    %1298 = vmatpush.bf16.msra.mxu0 %v917
    %1299 = vmatpush.bf16.msra.mxu0 %v913
    %1300 = vmatpush.bf16.msra.mxu0 %v909
    %1301 = vmatpush.bf16.msra.mxu0 %v905
    %1302 = vmatpush.bf16.msra.mxu0 %v901
    %1303 = vmatpush.bf16.msra.mxu0 %v897
    %1304 = vmatpush.bf16.msra.mxu0 %v893
    %1305 = vmatmul.bf16.gmra.mxu0 %v222
    %v1306 = vpop.f32.mrf.mxu0
    %v1307 = vadd.f32 %v1293, %v1306
    %v1308 = vpop.f32.mrf.mxu0
    %v1309 = vadd.f32 %v1295, %v1308
    %1310 = vdwg.mxu0
    %1311 = vmatpush.bf16.msra.mxu0 %v890
    %1312 = vmatpush.bf16.msra.mxu0 %v886
    %1313 = vmatpush.bf16.msra.mxu0 %v882
    %1314 = vmatpush.bf16.msra.mxu0 %v878
    %1315 = vmatpush.bf16.msra.mxu0 %v874
    %1316 = vmatpush.bf16.msra.mxu0 %v870
    %1317 = vmatpush.bf16.msra.mxu0 %v866
    %1318 = vmatpush.bf16.msra.mxu0 %v862
    %1319 = vmatmul.bf16.gmra.mxu0 %v221
    %v1320 = vpop.f32.mrf.mxu0
    %v1321 = vadd.f32 %v1223, %v1320
    %v1322 = vpop.f32.mrf.mxu0
    %v1323 = vadd.f32 %v1225, %v1322
    %1324 = vdwg.mxu0
    %1325 = vmatpush.bf16.msra.mxu0 %v922
    %1326 = vmatpush.bf16.msra.mxu0 %v918
    %1327 = vmatpush.bf16.msra.mxu0 %v914
    %1328 = vmatpush.bf16.msra.mxu0 %v910
    %1329 = vmatpush.bf16.msra.mxu0 %v906
    %1330 = vmatpush.bf16.msra.mxu0 %v902
    %1331 = vmatpush.bf16.msra.mxu0 %v898
    %1332 = vmatpush.bf16.msra.mxu0 %v894
    %1333 = vmatmul.bf16.gmra.mxu0 %v222
    %v1334 = vpop.f32.mrf.mxu0
    %v1335 = vadd.f32 %v1321, %v1334
    %v1336 = vpop.f32.mrf.mxu0
    %v1337 = vadd.f32 %v1323, %v1336
    %1338 = vdwg.mxu0
    %v1339 = vld [vmem:[%s2] sm:$0xf]
    %v1340 = vld [vmem:[%s3] sm:$0xf]
    %v1342 = vperm.slane %v1339, 0
    %v1343 = vperm.slane %v1339, 1
    %v1344 = vperm.slane %v1339, 2
    %v1345 = vperm.slane %v1339, 3
    %v1350 = vmul.f32 %v1011, %v1342
    %v1351 = vmul.f32 %v1039, %v1343
    %v1352 = vmul.f32 %v1067, %v1344
    %v1353 = vmul.f32 %v1095, %v1345
    %v1354 = vmul.f32 %v1013, %v1342
    %v1355 = vmul.f32 %v1041, %v1343
    %v1356 = vmul.f32 %v1069, %v1344
    %v1357 = vmul.f32 %v1097, %v1345
    %v1359 = vperm.slane %v1340, 0
    %v1360 = vperm.slane %v1340, 1
    %v1361 = vperm.slane %v1340, 2
    %v1362 = vperm.slane %v1340, 3
    %v1367 = vadd.f32 %v1350, %v1359
    %v1368 = vadd.f32 %v1351, %v1360
    %v1369 = vadd.f32 %v1352, %v1361
    %v1370 = vadd.f32 %v1353, %v1362
    %v1371 = vadd.f32 %v1354, %v1359
    %v1372 = vadd.f32 %v1355, %v1360
    %v1373 = vadd.f32 %v1356, %v1361
    %v1374 = vadd.f32 %v1357, %v1362
    %v1375 = vmax.f32 %v1367, 0.0
    %v1376 = vmax.f32 %v1368, 0.0
    %v1377 = vmax.f32 %v1369, 0.0
    %v1378 = vmax.f32 %v1370, 0.0
    %v1379 = vmax.f32 %v1371, 0.0
    %v1380 = vmax.f32 %v1372, 0.0
    %v1381 = vmax.f32 %v1373, 0.0
    %v1382 = vmax.f32 %v1374, 0.0
    %v1383 = vmax.f32 %v1375, %v1376
    %v1384 = vmax.f32 %v1379, %v1380
    %v1385 = vmax.f32 %v1377, %v1378
    %v1386 = vmax.f32 %v1381, %v1382
    %v1387 = vmax.f32 %v1383, %v1385
    %v1388 = vmax.f32 %v1384, %v1386
    %v1389 = vpack.c.bf16 %v1387, %v1387
    %v1390 = vpack.c.bf16 %v1388, %v1388
    %v1391 = vmul.f32 %v1251, %v1342
    %v1392 = vmul.f32 %v1279, %v1343
    %v1393 = vmul.f32 %v1307, %v1344
    %v1394 = vmul.f32 %v1335, %v1345
    %v1395 = vmul.f32 %v1253, %v1342
    %v1396 = vmul.f32 %v1281, %v1343
    %v1397 = vmul.f32 %v1309, %v1344
    %v1398 = vmul.f32 %v1337, %v1345
    %v1399 = vadd.f32 %v1391, %v1359
    %v1400 = vadd.f32 %v1392, %v1360
    %v1401 = vadd.f32 %v1393, %v1361
    %v1402 = vadd.f32 %v1394, %v1362
    %v1403 = vadd.f32 %v1395, %v1359
    %v1404 = vadd.f32 %v1396, %v1360
    %v1405 = vadd.f32 %v1397, %v1361
    %v1406 = vadd.f32 %v1398, %v1362
    %v1407 = vmax.f32 %v1399, 0.0
    %v1408 = vmax.f32 %v1400, 0.0
    %v1409 = vmax.f32 %v1401, 0.0
    %v1410 = vmax.f32 %v1402, 0.0
    %v1411 = vmax.f32 %v1403, 0.0
    %v1412 = vmax.f32 %v1404, 0.0
    %v1413 = vmax.f32 %v1405, 0.0
    %v1414 = vmax.f32 %v1406, 0.0
    %v1415 = vmax.f32 %v1407, %v1408
    %v1416 = vmax.f32 %v1411, %v1412
    %v1417 = vmax.f32 %v1409, %v1410
    %v1418 = vmax.f32 %v1413, %v1414
    %v1419 = vmax.f32 %v1415, %v1417
    %v1420 = vmax.f32 %v1416, %v1418
    %v1421 = vpack.c.bf16 %v1419, %v1419
    %v1422 = vpack.c.bf16 %v1420, %v1420
    %v1425 = vunpack.c.l.b16 %v1389
    %v1426 = vunpack.c.l.b16 %v1390
    %v1427 = vpack.c.b16 %v1426, %v1425
    %v1431 = vunpack.c.l.b16 %v1421
    %v1432 = vunpack.c.l.b16 %v1422
    %v1433 = vpack.c.b16 %v1432, %v1431
    %v1435 = vld [vmem:[#allocation5] sm:$0xff]
    %v1436 = vld [vmem:[#allocation5 + $0x8] sm:$0xff]
    %v1437 = vld [vmem:[#allocation5 + $0x10] sm:$0xff]
    %v1438 = vld [vmem:[#allocation5 + $0x18] sm:$0xff]
    %v1439 = vld [vmem:[#allocation5 + $0x20] sm:$0xff]
    %v1440 = vld [vmem:[#allocation5 + $0x28] sm:$0xff]
    %v1441 = vld [vmem:[#allocation5 + $0x30] sm:$0xff]
    %v1442 = vld [vmem:[#allocation5 + $0x38] sm:$0xff]
    %v1443 = vld [vmem:[#allocation5 + $0x40] sm:$0xff]
    %v1444 = vld [vmem:[#allocation5 + $0x48] sm:$0xff]
    %v1445 = vld [vmem:[#allocation5 + $0x50] sm:$0xff]
    %v1446 = vld [vmem:[#allocation5 + $0x58] sm:$0xff]
    %v1447 = vld [vmem:[#allocation5 + $0x60] sm:$0xff]
    %v1448 = vld [vmem:[#allocation5 + $0x68] sm:$0xff]
    %v1449 = vld [vmem:[#allocation5 + $0x70] sm:$0xff]
    %v1450 = vld [vmem:[#allocation5 + $0x78] sm:$0xff]
    %v1451 = vld [vmem:[#allocation5 + $0x80] sm:$0xff]
    %v1452 = vld [vmem:[#allocation5 + $0x88] sm:$0xff]
    %v1453 = vld [vmem:[#allocation5 + $0x90] sm:$0xff]
    %v1454 = vld [vmem:[#allocation5 + $0x98] sm:$0xff]
    %v1455 = vld [vmem:[#allocation5 + $0xa0] sm:$0xff]
    %v1456 = vld [vmem:[#allocation5 + $0xa8] sm:$0xff]
    %v1457 = vld [vmem:[#allocation5 + $0xb0] sm:$0xff]
    %v1458 = vld [vmem:[#allocation5 + $0xb8] sm:$0xff]
    %v1459 = vld [vmem:[#allocation5 + $0xc0] sm:$0xff]
    %v1460 = vld [vmem:[#allocation5 + $0xc8] sm:$0xff]
    %v1461 = vld [vmem:[#allocation5 + $0xd0] sm:$0xff]
    %v1462 = vld [vmem:[#allocation5 + $0xd8] sm:$0xff]
    %v1463 = vld [vmem:[#allocation5 + $0xe0] sm:$0xff]
    %v1464 = vld [vmem:[#allocation5 + $0xe8] sm:$0xff]
    %v1465 = vld [vmem:[#allocation5 + $0xf0] sm:$0xff]
    %v1466 = vld [vmem:[#allocation5 + $0xf8] sm:$0xff]
    %v1467 = vld [vmem:[#allocation5 + $0x100] sm:$0xff]
    %v1468 = vld [vmem:[#allocation5 + $0x108] sm:$0xff]
    %v1469 = vld [vmem:[#allocation5 + $0x110] sm:$0xff]
    %v1470 = vld [vmem:[#allocation5 + $0x118] sm:$0xff]
    %v1471 = vld [vmem:[#allocation5 + $0x120] sm:$0xff]
    %v1472 = vld [vmem:[#allocation5 + $0x128] sm:$0xff]
    %v1473 = vld [vmem:[#allocation5 + $0x130] sm:$0xff]
    %v1474 = vld [vmem:[#allocation5 + $0x138] sm:$0xff]
    %v1475 = vld [vmem:[#allocation5 + $0x140] sm:$0xff]
    %v1476 = vld [vmem:[#allocation5 + $0x148] sm:$0xff]
    %v1477 = vld [vmem:[#allocation5 + $0x150] sm:$0xff]
    %v1478 = vld [vmem:[#allocation5 + $0x158] sm:$0xff]
    %v1479 = vld [vmem:[#allocation5 + $0x160] sm:$0xff]
    %v1480 = vld [vmem:[#allocation5 + $0x168] sm:$0xff]
    %v1481 = vld [vmem:[#allocation5 + $0x170] sm:$0xff]
    %v1482 = vld [vmem:[#allocation5 + $0x178] sm:$0xff]
    %v1483 = vld [vmem:[#allocation5 + $0x180] sm:$0xff]
    %v1484 = vld [vmem:[#allocation5 + $0x188] sm:$0xff]
    %v1485 = vld [vmem:[#allocation5 + $0x190] sm:$0xff]
    %v1486 = vld [vmem:[#allocation5 + $0x198] sm:$0xff]
    %v1487 = vld [vmem:[#allocation5 + $0x1a0] sm:$0xff]
    %v1488 = vld [vmem:[#allocation5 + $0x1a8] sm:$0xff]
    %v1489 = vld [vmem:[#allocation5 + $0x1b0] sm:$0xff]
    %v1490 = vld [vmem:[#allocation5 + $0x1b8] sm:$0xff]
    %v1491 = vld [vmem:[#allocation5 + $0x1c0] sm:$0xff]
    %v1492 = vld [vmem:[#allocation5 + $0x1c8] sm:$0xff]
    %v1493 = vld [vmem:[#allocation5 + $0x1d0] sm:$0xff]
    %v1494 = vld [vmem:[#allocation5 + $0x1d8] sm:$0xff]
    %v1495 = vld [vmem:[#allocation5 + $0x1e0] sm:$0xff]
    %v1496 = vld [vmem:[#allocation5 + $0x1e8] sm:$0xff]
    %v1497 = vld [vmem:[#allocation5 + $0x1f0] sm:$0xff]
    %v1498 = vld [vmem:[#allocation5 + $0x1f8] sm:$0xff]
    %s1499 = scalar_lea.vmem [#allocation5], 512
    %v1500 = vld [vmem:[%s1499] sm:$0xff]
    %v1501 = vld [vmem:[%s1499 + $0x8] sm:$0xff]
    %v1502 = vld [vmem:[%s1499 + $0x10] sm:$0xff]
    %v1503 = vld [vmem:[%s1499 + $0x18] sm:$0xff]
    %v1504 = vld [vmem:[%s1499 + $0x20] sm:$0xff]
    %v1505 = vld [vmem:[%s1499 + $0x28] sm:$0xff]
    %v1506 = vld [vmem:[%s1499 + $0x30] sm:$0xff]
    %v1507 = vld [vmem:[%s1499 + $0x38] sm:$0xff]
    %v1508 = vld [vmem:[%s1499 + $0x40] sm:$0xff]
    %v1509 = vld [vmem:[%s1499 + $0x48] sm:$0xff]
    %v1510 = vld [vmem:[%s1499 + $0x50] sm:$0xff]
    %v1511 = vld [vmem:[%s1499 + $0x58] sm:$0xff]
    %v1512 = vld [vmem:[%s1499 + $0x60] sm:$0xff]
    %v1513 = vld [vmem:[%s1499 + $0x68] sm:$0xff]
    %v1514 = vld [vmem:[%s1499 + $0x70] sm:$0xff]
    %v1515 = vld [vmem:[%s1499 + $0x78] sm:$0xff]
    %v1516 = vld [vmem:[%s1499 + $0x80] sm:$0xff]
    %v1517 = vld [vmem:[%s1499 + $0x88] sm:$0xff]
    %v1518 = vld [vmem:[%s1499 + $0x90] sm:$0xff]
    %v1519 = vld [vmem:[%s1499 + $0x98] sm:$0xff]
    %v1520 = vld [vmem:[%s1499 + $0xa0] sm:$0xff]
    %v1521 = vld [vmem:[%s1499 + $0xa8] sm:$0xff]
    %v1522 = vld [vmem:[%s1499 + $0xb0] sm:$0xff]
    %v1523 = vld [vmem:[%s1499 + $0xb8] sm:$0xff]
    %v1524 = vld [vmem:[%s1499 + $0xc0] sm:$0xff]
    %v1525 = vld [vmem:[%s1499 + $0xc8] sm:$0xff]
    %v1526 = vld [vmem:[%s1499 + $0xd0] sm:$0xff]
    %v1527 = vld [vmem:[%s1499 + $0xd8] sm:$0xff]
    %v1528 = vld [vmem:[%s1499 + $0xe0] sm:$0xff]
    %v1529 = vld [vmem:[%s1499 + $0xe8] sm:$0xff]
    %v1530 = vld [vmem:[%s1499 + $0xf0] sm:$0xff]
    %v1531 = vld [vmem:[%s1499 + $0xf8] sm:$0xff]
    %v1532 = vld [vmem:[%s1499 + $0x100] sm:$0xff]
    %v1533 = vld [vmem:[%s1499 + $0x108] sm:$0xff]
    %v1534 = vld [vmem:[%s1499 + $0x110] sm:$0xff]
    %v1535 = vld [vmem:[%s1499 + $0x118] sm:$0xff]
    %v1536 = vld [vmem:[%s1499 + $0x120] sm:$0xff]
    %v1537 = vld [vmem:[%s1499 + $0x128] sm:$0xff]
    %v1538 = vld [vmem:[%s1499 + $0x130] sm:$0xff]
    %v1539 = vld [vmem:[%s1499 + $0x138] sm:$0xff]
    %v1540 = vld [vmem:[%s1499 + $0x140] sm:$0xff]
    %v1541 = vld [vmem:[%s1499 + $0x148] sm:$0xff]
    %v1542 = vld [vmem:[%s1499 + $0x150] sm:$0xff]
    %v1543 = vld [vmem:[%s1499 + $0x158] sm:$0xff]
    %v1544 = vld [vmem:[%s1499 + $0x160] sm:$0xff]
    %v1545 = vld [vmem:[%s1499 + $0x168] sm:$0xff]
    %v1546 = vld [vmem:[%s1499 + $0x170] sm:$0xff]
    %v1547 = vld [vmem:[%s1499 + $0x178] sm:$0xff]
    %v1548 = vld [vmem:[%s1499 + $0x180] sm:$0xff]
    %v1549 = vld [vmem:[%s1499 + $0x188] sm:$0xff]
    %v1550 = vld [vmem:[%s1499 + $0x190] sm:$0xff]
    %v1551 = vld [vmem:[%s1499 + $0x198] sm:$0xff]
    %v1552 = vld [vmem:[%s1499 + $0x1a0] sm:$0xff]
    %v1553 = vld [vmem:[%s1499 + $0x1a8] sm:$0xff]
    %v1554 = vld [vmem:[%s1499 + $0x1b0] sm:$0xff]
    %v1555 = vld [vmem:[%s1499 + $0x1b8] sm:$0xff]
    %v1556 = vld [vmem:[%s1499 + $0x1c0] sm:$0xff]
    %v1557 = vld [vmem:[%s1499 + $0x1c8] sm:$0xff]
    %v1558 = vld [vmem:[%s1499 + $0x1d0] sm:$0xff]
    %v1559 = vld [vmem:[%s1499 + $0x1d8] sm:$0xff]
    %v1560 = vld [vmem:[%s1499 + $0x1e0] sm:$0xff]
    %v1561 = vld [vmem:[%s1499 + $0x1e8] sm:$0xff]
    %v1562 = vld [vmem:[%s1499 + $0x1f0] sm:$0xff]
    %v1563 = vld [vmem:[%s1499 + $0x1f8] sm:$0xff]
    %v1565 = vshrl.u32 %v1427, 16
    %v1567 = vshll.u32 %v1427, 16
    %v1569 = vrot.slane %v1567, 1
    %v1570 = vor.u32 %v1565, %v1569
    %v1572 = vshrl.u32 %v1433, 16
    %v1574 = vshll.u32 %v1433, 16
    %v1576 = vrot.slane %v1574, 1
    %v1577 = vor.u32 %v1572, %v1576
    %v1644 = vunpack.c.l.b16 %v1500
    %v1645 = vunpack.c.h.b16 %v1500
    %v1646 = vunpack.c.l.b16 %v1501
    %v1647 = vunpack.c.h.b16 %v1501
    %v1648 = vunpack.c.l.b16 %v1502
    %v1649 = vunpack.c.h.b16 %v1502
    %v1650 = vunpack.c.l.b16 %v1503
    %v1651 = vunpack.c.h.b16 %v1503
    %v1652 = vunpack.c.l.b16 %v1504
    %v1653 = vunpack.c.h.b16 %v1504
    %v1654 = vunpack.c.l.b16 %v1505
    %v1655 = vunpack.c.h.b16 %v1505
    %v1656 = vunpack.c.l.b16 %v1506
    %v1657 = vunpack.c.h.b16 %v1506
    %v1658 = vunpack.c.l.b16 %v1507
    %v1659 = vunpack.c.h.b16 %v1507
    %v1660 = vunpack.c.l.b16 %v1508
    %v1661 = vunpack.c.h.b16 %v1508
    %v1662 = vunpack.c.l.b16 %v1509
    %v1663 = vunpack.c.h.b16 %v1509
    %v1664 = vunpack.c.l.b16 %v1510
    %v1665 = vunpack.c.h.b16 %v1510
    %v1666 = vunpack.c.l.b16 %v1511
    %v1667 = vunpack.c.h.b16 %v1511
    %v1668 = vunpack.c.l.b16 %v1512
    %v1669 = vunpack.c.h.b16 %v1512
    %v1670 = vunpack.c.l.b16 %v1513
    %v1671 = vunpack.c.h.b16 %v1513
    %v1672 = vunpack.c.l.b16 %v1514
    %v1673 = vunpack.c.h.b16 %v1514
    %v1674 = vunpack.c.l.b16 %v1515
    %v1675 = vunpack.c.h.b16 %v1515
    %v1676 = vunpack.c.l.b16 %v1516
    %v1677 = vunpack.c.h.b16 %v1516
    %v1678 = vunpack.c.l.b16 %v1517
    %v1679 = vunpack.c.h.b16 %v1517
    %v1680 = vunpack.c.l.b16 %v1518
    %v1681 = vunpack.c.h.b16 %v1518
    %v1682 = vunpack.c.l.b16 %v1519
    %v1683 = vunpack.c.h.b16 %v1519
    %v1684 = vunpack.c.l.b16 %v1520
    %v1685 = vunpack.c.h.b16 %v1520
    %v1686 = vunpack.c.l.b16 %v1521
    %v1687 = vunpack.c.h.b16 %v1521
    %v1688 = vunpack.c.l.b16 %v1522
    %v1689 = vunpack.c.h.b16 %v1522
    %v1690 = vunpack.c.l.b16 %v1523
    %v1691 = vunpack.c.h.b16 %v1523
    %v1692 = vunpack.c.l.b16 %v1524
    %v1693 = vunpack.c.h.b16 %v1524
    %v1694 = vunpack.c.l.b16 %v1525
    %v1695 = vunpack.c.h.b16 %v1525
    %v1696 = vunpack.c.l.b16 %v1526
    %v1697 = vunpack.c.h.b16 %v1526
    %v1698 = vunpack.c.l.b16 %v1527
    %v1699 = vunpack.c.h.b16 %v1527
    %v1700 = vunpack.c.l.b16 %v1528
    %v1701 = vunpack.c.h.b16 %v1528
    %v1702 = vunpack.c.l.b16 %v1529
    %v1703 = vunpack.c.h.b16 %v1529
    %v1704 = vunpack.c.l.b16 %v1530
    %v1705 = vunpack.c.h.b16 %v1530
    %v1706 = vunpack.c.l.b16 %v1531
    %v1707 = vunpack.c.h.b16 %v1531
    %v1708 = vunpack.c.l.b16 %v1532
    %v1709 = vunpack.c.h.b16 %v1532
    %v1710 = vunpack.c.l.b16 %v1533
    %v1711 = vunpack.c.h.b16 %v1533
    %v1712 = vunpack.c.l.b16 %v1534
    %v1713 = vunpack.c.h.b16 %v1534
    %v1714 = vunpack.c.l.b16 %v1535
    %v1715 = vunpack.c.h.b16 %v1535
    %v1716 = vunpack.c.l.b16 %v1536
    %v1717 = vunpack.c.h.b16 %v1536
    %v1718 = vunpack.c.l.b16 %v1537
    %v1719 = vunpack.c.h.b16 %v1537
    %v1720 = vunpack.c.l.b16 %v1538
    %v1721 = vunpack.c.h.b16 %v1538
    %v1722 = vunpack.c.l.b16 %v1539
    %v1723 = vunpack.c.h.b16 %v1539
    %v1724 = vunpack.c.l.b16 %v1540
    %v1725 = vunpack.c.h.b16 %v1540
    %v1726 = vunpack.c.l.b16 %v1541
    %v1727 = vunpack.c.h.b16 %v1541
    %v1728 = vunpack.c.l.b16 %v1542
    %v1729 = vunpack.c.h.b16 %v1542
    %v1730 = vunpack.c.l.b16 %v1543
    %v1731 = vunpack.c.h.b16 %v1543
    %v1732 = vunpack.c.l.b16 %v1544
    %v1733 = vunpack.c.h.b16 %v1544
    %v1734 = vunpack.c.l.b16 %v1545
    %v1735 = vunpack.c.h.b16 %v1545
    %v1736 = vunpack.c.l.b16 %v1546
    %v1737 = vunpack.c.h.b16 %v1546
    %v1738 = vunpack.c.l.b16 %v1547
    %v1739 = vunpack.c.h.b16 %v1547
    %v1740 = vunpack.c.l.b16 %v1548
    %v1741 = vunpack.c.h.b16 %v1548
    %v1742 = vunpack.c.l.b16 %v1549
    %v1743 = vunpack.c.h.b16 %v1549
    %v1744 = vunpack.c.l.b16 %v1550
    %v1745 = vunpack.c.h.b16 %v1550
    %v1746 = vunpack.c.l.b16 %v1551
    %v1747 = vunpack.c.h.b16 %v1551
    %v1748 = vunpack.c.l.b16 %v1552
    %v1749 = vunpack.c.h.b16 %v1552
    %v1750 = vunpack.c.l.b16 %v1553
    %v1751 = vunpack.c.h.b16 %v1553
    %v1752 = vunpack.c.l.b16 %v1554
    %v1753 = vunpack.c.h.b16 %v1554
    %v1754 = vunpack.c.l.b16 %v1555
    %v1755 = vunpack.c.h.b16 %v1555
    %v1756 = vunpack.c.l.b16 %v1556
    %v1757 = vunpack.c.h.b16 %v1556
    %v1758 = vunpack.c.l.b16 %v1557
    %v1759 = vunpack.c.h.b16 %v1557
    %v1760 = vunpack.c.l.b16 %v1558
    %v1761 = vunpack.c.h.b16 %v1558
    %v1762 = vunpack.c.l.b16 %v1559
    %v1763 = vunpack.c.h.b16 %v1559
    %v1764 = vunpack.c.l.b16 %v1560
    %v1765 = vunpack.c.h.b16 %v1560
    %v1766 = vunpack.c.l.b16 %v1561
    %v1767 = vunpack.c.h.b16 %v1561
    %v1768 = vunpack.c.l.b16 %v1562
    %v1769 = vunpack.c.h.b16 %v1562
    %v1770 = vunpack.c.l.b16 %v1563
    %v1771 = vunpack.c.h.b16 %v1563
    %v1772 = vpack.c.b16 %v1648, %v1644
    %v1773 = vpack.c.b16 %v1649, %v1645
    %v1774 = vpack.c.b16 %v1650, %v1646
    %v1775 = vpack.c.b16 %v1651, %v1647
    %v1776 = vpack.c.b16 %v1656, %v1652
    %v1777 = vpack.c.b16 %v1657, %v1653
    %v1778 = vpack.c.b16 %v1658, %v1654
    %v1779 = vpack.c.b16 %v1659, %v1655
    %v1780 = vpack.c.b16 %v1664, %v1660
    %v1781 = vpack.c.b16 %v1665, %v1661
    %v1782 = vpack.c.b16 %v1666, %v1662
    %v1783 = vpack.c.b16 %v1667, %v1663
    %v1784 = vpack.c.b16 %v1672, %v1668
    %v1785 = vpack.c.b16 %v1673, %v1669
    %v1786 = vpack.c.b16 %v1674, %v1670
    %v1787 = vpack.c.b16 %v1675, %v1671
    %v1788 = vpack.c.b16 %v1680, %v1676
    %v1789 = vpack.c.b16 %v1681, %v1677
    %v1790 = vpack.c.b16 %v1682, %v1678
    %v1791 = vpack.c.b16 %v1683, %v1679
    %v1792 = vpack.c.b16 %v1688, %v1684
    %v1793 = vpack.c.b16 %v1689, %v1685
    %v1794 = vpack.c.b16 %v1690, %v1686
    %v1795 = vpack.c.b16 %v1691, %v1687
    %v1796 = vpack.c.b16 %v1696, %v1692
    %v1797 = vpack.c.b16 %v1697, %v1693
    %v1798 = vpack.c.b16 %v1698, %v1694
    %v1799 = vpack.c.b16 %v1699, %v1695
    %v1800 = vpack.c.b16 %v1704, %v1700
    %v1801 = vpack.c.b16 %v1705, %v1701
    %v1802 = vpack.c.b16 %v1706, %v1702
    %v1803 = vpack.c.b16 %v1707, %v1703
    %v1804 = vpack.c.b16 %v1712, %v1708
    %v1805 = vpack.c.b16 %v1713, %v1709
    %v1806 = vpack.c.b16 %v1714, %v1710
    %v1807 = vpack.c.b16 %v1715, %v1711
    %v1808 = vpack.c.b16 %v1720, %v1716
    %v1809 = vpack.c.b16 %v1721, %v1717
    %v1810 = vpack.c.b16 %v1722, %v1718
    %v1811 = vpack.c.b16 %v1723, %v1719
    %v1812 = vpack.c.b16 %v1728, %v1724
    %v1813 = vpack.c.b16 %v1729, %v1725
    %v1814 = vpack.c.b16 %v1730, %v1726
    %v1815 = vpack.c.b16 %v1731, %v1727
    %v1816 = vpack.c.b16 %v1736, %v1732
    %v1817 = vpack.c.b16 %v1737, %v1733
    %v1818 = vpack.c.b16 %v1738, %v1734
    %v1819 = vpack.c.b16 %v1739, %v1735
    %v1820 = vpack.c.b16 %v1744, %v1740
    %v1821 = vpack.c.b16 %v1745, %v1741
    %v1822 = vpack.c.b16 %v1746, %v1742
    %v1823 = vpack.c.b16 %v1747, %v1743
    %v1824 = vpack.c.b16 %v1752, %v1748
    %v1825 = vpack.c.b16 %v1753, %v1749
    %v1826 = vpack.c.b16 %v1754, %v1750
    %v1827 = vpack.c.b16 %v1755, %v1751
    %v1828 = vpack.c.b16 %v1760, %v1756
    %v1829 = vpack.c.b16 %v1761, %v1757
    %v1830 = vpack.c.b16 %v1762, %v1758
    %v1831 = vpack.c.b16 %v1763, %v1759
    %v1832 = vpack.c.b16 %v1768, %v1764
    %v1833 = vpack.c.b16 %v1769, %v1765
    %v1834 = vpack.c.b16 %v1770, %v1766
    %v1835 = vpack.c.b16 %v1771, %v1767
    %1900 = vmatpush.bf16.msra.mxu0 %v1800
    %1901 = vmatpush.bf16.msra.mxu0 %v1796
    %1902 = vmatpush.bf16.msra.mxu0 %v1792
    %1903 = vmatpush.bf16.msra.mxu0 %v1788
    %1904 = vmatpush.bf16.msra.mxu0 %v1784
    %1905 = vmatpush.bf16.msra.mxu0 %v1780
    %1906 = vmatpush.bf16.msra.mxu0 %v1776
    %1907 = vmatpush.bf16.msra.mxu0 %v1772
    %1908 = vmatmul.bf16.gmra.mxu0 %v1570
    %v1909 = vpop.f32.mrf.mxu0
    %v1910 = vadd.f32 0.0, %v1909
    %v1911 = vpop.f32.mrf.mxu0
    %v1912 = vadd.f32 0.0, %v1911
    %1913 = vdwg.mxu0
    %1914 = vmatpush.bf16.msra.mxu0 %v1832
    %1915 = vmatpush.bf16.msra.mxu0 %v1828
    %1916 = vmatpush.bf16.msra.mxu0 %v1824
    %1917 = vmatpush.bf16.msra.mxu0 %v1820
    %1918 = vmatpush.bf16.msra.mxu0 %v1816
    %1919 = vmatpush.bf16.msra.mxu0 %v1812
    %1920 = vmatpush.bf16.msra.mxu0 %v1808
    %1921 = vmatpush.bf16.msra.mxu0 %v1804
    %1922 = vmatmul.bf16.gmra.mxu0 %v1577
    %v1923 = vpop.f32.mrf.mxu0
    %v1924 = vadd.f32 %v1910, %v1923
    %v1925 = vpop.f32.mrf.mxu0
    %v1926 = vadd.f32 %v1912, %v1925
    %1927 = vdwg.mxu0
    %1928 = vmatpush.bf16.msra.mxu0 %v1801
    %1929 = vmatpush.bf16.msra.mxu0 %v1797
    %1930 = vmatpush.bf16.msra.mxu0 %v1793
    %1931 = vmatpush.bf16.msra.mxu0 %v1789
    %1932 = vmatpush.bf16.msra.mxu0 %v1785
    %1933 = vmatpush.bf16.msra.mxu0 %v1781
    %1934 = vmatpush.bf16.msra.mxu0 %v1777
    %1935 = vmatpush.bf16.msra.mxu0 %v1773
    %1936 = vmatmul.bf16.gmra.mxu0 %v1570
    %v1937 = vpop.f32.mrf.mxu0
    %v1938 = vadd.f32 0.0, %v1937
    %v1939 = vpop.f32.mrf.mxu0
    %v1940 = vadd.f32 0.0, %v1939
    %1941 = vdwg.mxu0
    %1942 = vmatpush.bf16.msra.mxu0 %v1833
    %1943 = vmatpush.bf16.msra.mxu0 %v1829
    %1944 = vmatpush.bf16.msra.mxu0 %v1825
    %1945 = vmatpush.bf16.msra.mxu0 %v1821
    %1946 = vmatpush.bf16.msra.mxu0 %v1817
    %1947 = vmatpush.bf16.msra.mxu0 %v1813
    %1948 = vmatpush.bf16.msra.mxu0 %v1809
    %1949 = vmatpush.bf16.msra.mxu0 %v1805
    %1950 = vmatmul.bf16.gmra.mxu0 %v1577
    %v1951 = vpop.f32.mrf.mxu0
    %v1952 = vadd.f32 %v1938, %v1951
    %v1953 = vpop.f32.mrf.mxu0
    %v1954 = vadd.f32 %v1940, %v1953
    %1955 = vdwg.mxu0
    %1956 = vmatpush.bf16.msra.mxu0 %v1802
    %1957 = vmatpush.bf16.msra.mxu0 %v1798
    %1958 = vmatpush.bf16.msra.mxu0 %v1794
    %1959 = vmatpush.bf16.msra.mxu0 %v1790
    %1960 = vmatpush.bf16.msra.mxu0 %v1786
    %1961 = vmatpush.bf16.msra.mxu0 %v1782
    %1962 = vmatpush.bf16.msra.mxu0 %v1778
    %1963 = vmatpush.bf16.msra.mxu0 %v1774
    %1964 = vmatmul.bf16.gmra.mxu0 %v1570
    %v1965 = vpop.f32.mrf.mxu0
    %v1966 = vadd.f32 0.0, %v1965
    %v1967 = vpop.f32.mrf.mxu0
    %v1968 = vadd.f32 0.0, %v1967
    %1969 = vdwg.mxu0
    %1970 = vmatpush.bf16.msra.mxu0 %v1834
    %1971 = vmatpush.bf16.msra.mxu0 %v1830
    %1972 = vmatpush.bf16.msra.mxu0 %v1826
    %1973 = vmatpush.bf16.msra.mxu0 %v1822
    %1974 = vmatpush.bf16.msra.mxu0 %v1818
    %1975 = vmatpush.bf16.msra.mxu0 %v1814
    %1976 = vmatpush.bf16.msra.mxu0 %v1810
    %1977 = vmatpush.bf16.msra.mxu0 %v1806
    %1978 = vmatmul.bf16.gmra.mxu0 %v1577
    %v1979 = vpop.f32.mrf.mxu0
    %v1980 = vadd.f32 %v1966, %v1979
    %v1981 = vpop.f32.mrf.mxu0
    %v1982 = vadd.f32 %v1968, %v1981
    %1983 = vdwg.mxu0
    %1984 = vmatpush.bf16.msra.mxu0 %v1803
    %1985 = vmatpush.bf16.msra.mxu0 %v1799
    %1986 = vmatpush.bf16.msra.mxu0 %v1795
    %1987 = vmatpush.bf16.msra.mxu0 %v1791
    %1988 = vmatpush.bf16.msra.mxu0 %v1787
    %1989 = vmatpush.bf16.msra.mxu0 %v1783
    %1990 = vmatpush.bf16.msra.mxu0 %v1779
    %1991 = vmatpush.bf16.msra.mxu0 %v1775
    %1992 = vmatmul.bf16.gmra.mxu0 %v1570
    %v1993 = vpop.f32.mrf.mxu0
    %v1994 = vadd.f32 0.0, %v1993
    %v1995 = vpop.f32.mrf.mxu0
    %v1996 = vadd.f32 0.0, %v1995
    %1997 = vdwg.mxu0
    %1998 = vmatpush.bf16.msra.mxu0 %v1835
    %1999 = vmatpush.bf16.msra.mxu0 %v1831
    %2000 = vmatpush.bf16.msra.mxu0 %v1827
    %2001 = vmatpush.bf16.msra.mxu0 %v1823
    %2002 = vmatpush.bf16.msra.mxu0 %v1819
    %2003 = vmatpush.bf16.msra.mxu0 %v1815
    %2004 = vmatpush.bf16.msra.mxu0 %v1811
    %2005 = vmatpush.bf16.msra.mxu0 %v1807
    %2006 = vmatmul.bf16.gmra.mxu0 %v1577
    %v2007 = vpop.f32.mrf.mxu0
    %v2008 = vadd.f32 %v1994, %v2007
    %v2009 = vpop.f32.mrf.mxu0
    %v2010 = vadd.f32 %v1996, %v2009
    %2011 = vdwg.mxu0
    %v2076 = vunpack.c.l.b16 %v1435
    %v2077 = vunpack.c.h.b16 %v1435
    %v2078 = vunpack.c.l.b16 %v1436
    %v2079 = vunpack.c.h.b16 %v1436
    %v2080 = vunpack.c.l.b16 %v1437
    %v2081 = vunpack.c.h.b16 %v1437
    %v2082 = vunpack.c.l.b16 %v1438
    %v2083 = vunpack.c.h.b16 %v1438
    %v2084 = vunpack.c.l.b16 %v1439
    %v2085 = vunpack.c.h.b16 %v1439
    %v2086 = vunpack.c.l.b16 %v1440
    %v2087 = vunpack.c.h.b16 %v1440
    %v2088 = vunpack.c.l.b16 %v1441
    %v2089 = vunpack.c.h.b16 %v1441
    %v2090 = vunpack.c.l.b16 %v1442
    %v2091 = vunpack.c.h.b16 %v1442
    %v2092 = vunpack.c.l.b16 %v1443
    %v2093 = vunpack.c.h.b16 %v1443
    %v2094 = vunpack.c.l.b16 %v1444
    %v2095 = vunpack.c.h.b16 %v1444
    %v2096 = vunpack.c.l.b16 %v1445
    %v2097 = vunpack.c.h.b16 %v1445
    %v2098 = vunpack.c.l.b16 %v1446
    %v2099 = vunpack.c.h.b16 %v1446
    %v2100 = vunpack.c.l.b16 %v1447
    %v2101 = vunpack.c.h.b16 %v1447
    %v2102 = vunpack.c.l.b16 %v1448
    %v2103 = vunpack.c.h.b16 %v1448
    %v2104 = vunpack.c.l.b16 %v1449
    %v2105 = vunpack.c.h.b16 %v1449
    %v2106 = vunpack.c.l.b16 %v1450
    %v2107 = vunpack.c.h.b16 %v1450
    %v2108 = vunpack.c.l.b16 %v1451
    %v2109 = vunpack.c.h.b16 %v1451
    %v2110 = vunpack.c.l.b16 %v1452
    %v2111 = vunpack.c.h.b16 %v1452
    %v2112 = vunpack.c.l.b16 %v1453
    %v2113 = vunpack.c.h.b16 %v1453
    %v2114 = vunpack.c.l.b16 %v1454
    %v2115 = vunpack.c.h.b16 %v1454
    %v2116 = vunpack.c.l.b16 %v1455
    %v2117 = vunpack.c.h.b16 %v1455
    %v2118 = vunpack.c.l.b16 %v1456
    %v2119 = vunpack.c.h.b16 %v1456
    %v2120 = vunpack.c.l.b16 %v1457
    %v2121 = vunpack.c.h.b16 %v1457
    %v2122 = vunpack.c.l.b16 %v1458
    %v2123 = vunpack.c.h.b16 %v1458
    %v2124 = vunpack.c.l.b16 %v1459
    %v2125 = vunpack.c.h.b16 %v1459
    %v2126 = vunpack.c.l.b16 %v1460
    %v2127 = vunpack.c.h.b16 %v1460
    %v2128 = vunpack.c.l.b16 %v1461
    %v2129 = vunpack.c.h.b16 %v1461
    %v2130 = vunpack.c.l.b16 %v1462
    %v2131 = vunpack.c.h.b16 %v1462
    %v2132 = vunpack.c.l.b16 %v1463
    %v2133 = vunpack.c.h.b16 %v1463
    %v2134 = vunpack.c.l.b16 %v1464
    %v2135 = vunpack.c.h.b16 %v1464
    %v2136 = vunpack.c.l.b16 %v1465
    %v2137 = vunpack.c.h.b16 %v1465
    %v2138 = vunpack.c.l.b16 %v1466
    %v2139 = vunpack.c.h.b16 %v1466
    %v2140 = vunpack.c.l.b16 %v1467
    %v2141 = vunpack.c.h.b16 %v1467
    %v2142 = vunpack.c.l.b16 %v1468
    %v2143 = vunpack.c.h.b16 %v1468
    %v2144 = vunpack.c.l.b16 %v1469
    %v2145 = vunpack.c.h.b16 %v1469
    %v2146 = vunpack.c.l.b16 %v1470
    %v2147 = vunpack.c.h.b16 %v1470
    %v2148 = vunpack.c.l.b16 %v1471
    %v2149 = vunpack.c.h.b16 %v1471
    %v2150 = vunpack.c.l.b16 %v1472
    %v2151 = vunpack.c.h.b16 %v1472
    %v2152 = vunpack.c.l.b16 %v1473
    %v2153 = vunpack.c.h.b16 %v1473
    %v2154 = vunpack.c.l.b16 %v1474
    %v2155 = vunpack.c.h.b16 %v1474
    %v2156 = vunpack.c.l.b16 %v1475
    %v2157 = vunpack.c.h.b16 %v1475
    %v2158 = vunpack.c.l.b16 %v1476
    %v2159 = vunpack.c.h.b16 %v1476
    %v2160 = vunpack.c.l.b16 %v1477
    %v2161 = vunpack.c.h.b16 %v1477
    %v2162 = vunpack.c.l.b16 %v1478
    %v2163 = vunpack.c.h.b16 %v1478
    %v2164 = vunpack.c.l.b16 %v1479
    %v2165 = vunpack.c.h.b16 %v1479
    %v2166 = vunpack.c.l.b16 %v1480
    %v2167 = vunpack.c.h.b16 %v1480
    %v2168 = vunpack.c.l.b16 %v1481
    %v2169 = vunpack.c.h.b16 %v1481
    %v2170 = vunpack.c.l.b16 %v1482
    %v2171 = vunpack.c.h.b16 %v1482
    %v2172 = vunpack.c.l.b16 %v1483
    %v2173 = vunpack.c.h.b16 %v1483
    %v2174 = vunpack.c.l.b16 %v1484
    %v2175 = vunpack.c.h.b16 %v1484
    %v2176 = vunpack.c.l.b16 %v1485
    %v2177 = vunpack.c.h.b16 %v1485
    %v2178 = vunpack.c.l.b16 %v1486
    %v2179 = vunpack.c.h.b16 %v1486
    %v2180 = vunpack.c.l.b16 %v1487
    %v2181 = vunpack.c.h.b16 %v1487
    %v2182 = vunpack.c.l.b16 %v1488
    %v2183 = vunpack.c.h.b16 %v1488
    %v2184 = vunpack.c.l.b16 %v1489
    %v2185 = vunpack.c.h.b16 %v1489
    %v2186 = vunpack.c.l.b16 %v1490
    %v2187 = vunpack.c.h.b16 %v1490
    %v2188 = vunpack.c.l.b16 %v1491
    %v2189 = vunpack.c.h.b16 %v1491
    %v2190 = vunpack.c.l.b16 %v1492
    %v2191 = vunpack.c.h.b16 %v1492
    %v2192 = vunpack.c.l.b16 %v1493
    %v2193 = vunpack.c.h.b16 %v1493
    %v2194 = vunpack.c.l.b16 %v1494
    %v2195 = vunpack.c.h.b16 %v1494
    %v2196 = vunpack.c.l.b16 %v1495
    %v2197 = vunpack.c.h.b16 %v1495
    %v2198 = vunpack.c.l.b16 %v1496
    %v2199 = vunpack.c.h.b16 %v1496
    %v2200 = vunpack.c.l.b16 %v1497
    %v2201 = vunpack.c.h.b16 %v1497
    %v2202 = vunpack.c.l.b16 %v1498
    %v2203 = vunpack.c.h.b16 %v1498
    %v2204 = vpack.c.b16 %v2080, %v2076
    %v2205 = vpack.c.b16 %v2081, %v2077
    %v2206 = vpack.c.b16 %v2082, %v2078
    %v2207 = vpack.c.b16 %v2083, %v2079
    %v2208 = vpack.c.b16 %v2088, %v2084
    %v2209 = vpack.c.b16 %v2089, %v2085
    %v2210 = vpack.c.b16 %v2090, %v2086
    %v2211 = vpack.c.b16 %v2091, %v2087
    %v2212 = vpack.c.b16 %v2096, %v2092
    %v2213 = vpack.c.b16 %v2097, %v2093
    %v2214 = vpack.c.b16 %v2098, %v2094
    %v2215 = vpack.c.b16 %v2099, %v2095
    %v2216 = vpack.c.b16 %v2104, %v2100
    %v2217 = vpack.c.b16 %v2105, %v2101
    %v2218 = vpack.c.b16 %v2106, %v2102
    %v2219 = vpack.c.b16 %v2107, %v2103
    %v2220 = vpack.c.b16 %v2112, %v2108
    %v2221 = vpack.c.b16 %v2113, %v2109
    %v2222 = vpack.c.b16 %v2114, %v2110
    %v2223 = vpack.c.b16 %v2115, %v2111
    %v2224 = vpack.c.b16 %v2120, %v2116
    %v2225 = vpack.c.b16 %v2121, %v2117
    %v2226 = vpack.c.b16 %v2122, %v2118
    %v2227 = vpack.c.b16 %v2123, %v2119
    %v2228 = vpack.c.b16 %v2128, %v2124
    %v2229 = vpack.c.b16 %v2129, %v2125
    %v2230 = vpack.c.b16 %v2130, %v2126
    %v2231 = vpack.c.b16 %v2131, %v2127
    %v2232 = vpack.c.b16 %v2136, %v2132
    %v2233 = vpack.c.b16 %v2137, %v2133
    %v2234 = vpack.c.b16 %v2138, %v2134
    %v2235 = vpack.c.b16 %v2139, %v2135
    %v2236 = vpack.c.b16 %v2144, %v2140
    %v2237 = vpack.c.b16 %v2145, %v2141
    %v2238 = vpack.c.b16 %v2146, %v2142
    %v2239 = vpack.c.b16 %v2147, %v2143
    %v2240 = vpack.c.b16 %v2152, %v2148
    %v2241 = vpack.c.b16 %v2153, %v2149
    %v2242 = vpack.c.b16 %v2154, %v2150
    %v2243 = vpack.c.b16 %v2155, %v2151
    %v2244 = vpack.c.b16 %v2160, %v2156
    %v2245 = vpack.c.b16 %v2161, %v2157
    %v2246 = vpack.c.b16 %v2162, %v2158
    %v2247 = vpack.c.b16 %v2163, %v2159
    %v2248 = vpack.c.b16 %v2168, %v2164
    %v2249 = vpack.c.b16 %v2169, %v2165
    %v2250 = vpack.c.b16 %v2170, %v2166
    %v2251 = vpack.c.b16 %v2171, %v2167
    %v2252 = vpack.c.b16 %v2176, %v2172
    %v2253 = vpack.c.b16 %v2177, %v2173
    %v2254 = vpack.c.b16 %v2178, %v2174
    %v2255 = vpack.c.b16 %v2179, %v2175
    %v2256 = vpack.c.b16 %v2184, %v2180
    %v2257 = vpack.c.b16 %v2185, %v2181
    %v2258 = vpack.c.b16 %v2186, %v2182
    %v2259 = vpack.c.b16 %v2187, %v2183
    %v2260 = vpack.c.b16 %v2192, %v2188
    %v2261 = vpack.c.b16 %v2193, %v2189
    %v2262 = vpack.c.b16 %v2194, %v2190
    %v2263 = vpack.c.b16 %v2195, %v2191
    %v2264 = vpack.c.b16 %v2200, %v2196
    %v2265 = vpack.c.b16 %v2201, %v2197
    %v2266 = vpack.c.b16 %v2202, %v2198
    %v2267 = vpack.c.b16 %v2203, %v2199
    %2332 = vmatpush.bf16.msra.mxu0 %v2232
    %2333 = vmatpush.bf16.msra.mxu0 %v2228
    %2334 = vmatpush.bf16.msra.mxu0 %v2224
    %2335 = vmatpush.bf16.msra.mxu0 %v2220
    %2336 = vmatpush.bf16.msra.mxu0 %v2216
    %2337 = vmatpush.bf16.msra.mxu0 %v2212
    %2338 = vmatpush.bf16.msra.mxu0 %v2208
    %2339 = vmatpush.bf16.msra.mxu0 %v2204
    %2340 = vmatmul.bf16.gmra.mxu0 %v1427
    %v2341 = vpop.f32.mrf.mxu0
    %v2342 = vadd.f32 %v1924, %v2341
    %v2343 = vpop.f32.mrf.mxu0
    %v2344 = vadd.f32 %v1926, %v2343
    %2345 = vdwg.mxu0
    %2346 = vmatpush.bf16.msra.mxu0 %v2264
    %2347 = vmatpush.bf16.msra.mxu0 %v2260
    %2348 = vmatpush.bf16.msra.mxu0 %v2256
    %2349 = vmatpush.bf16.msra.mxu0 %v2252
    %2350 = vmatpush.bf16.msra.mxu0 %v2248
    %2351 = vmatpush.bf16.msra.mxu0 %v2244
    %2352 = vmatpush.bf16.msra.mxu0 %v2240
    %2353 = vmatpush.bf16.msra.mxu0 %v2236
    %2354 = vmatmul.bf16.gmra.mxu0 %v1433
    %v2355 = vpop.f32.mrf.mxu0
    %v2356 = vadd.f32 %v2342, %v2355
    %v2357 = vpop.f32.mrf.mxu0
    %v2358 = vadd.f32 %v2344, %v2357
    %2359 = vdwg.mxu0
    %2360 = vmatpush.bf16.msra.mxu0 %v2233
    %2361 = vmatpush.bf16.msra.mxu0 %v2229
    %2362 = vmatpush.bf16.msra.mxu0 %v2225
    %2363 = vmatpush.bf16.msra.mxu0 %v2221
    %2364 = vmatpush.bf16.msra.mxu0 %v2217
    %2365 = vmatpush.bf16.msra.mxu0 %v2213
    %2366 = vmatpush.bf16.msra.mxu0 %v2209
    %2367 = vmatpush.bf16.msra.mxu0 %v2205
    %2368 = vmatmul.bf16.gmra.mxu0 %v1427
    %v2369 = vpop.f32.mrf.mxu0
    %v2370 = vadd.f32 %v1952, %v2369
    %v2371 = vpop.f32.mrf.mxu0
    %v2372 = vadd.f32 %v1954, %v2371
    %2373 = vdwg.mxu0
    %2374 = vmatpush.bf16.msra.mxu0 %v2265
    %2375 = vmatpush.bf16.msra.mxu0 %v2261
    %2376 = vmatpush.bf16.msra.mxu0 %v2257
    %2377 = vmatpush.bf16.msra.mxu0 %v2253
    %2378 = vmatpush.bf16.msra.mxu0 %v2249
    %2379 = vmatpush.bf16.msra.mxu0 %v2245
    %2380 = vmatpush.bf16.msra.mxu0 %v2241
    %2381 = vmatpush.bf16.msra.mxu0 %v2237
    %2382 = vmatmul.bf16.gmra.mxu0 %v1433
    %v2383 = vpop.f32.mrf.mxu0
    %v2384 = vadd.f32 %v2370, %v2383
    %v2385 = vpop.f32.mrf.mxu0
    %v2386 = vadd.f32 %v2372, %v2385
    %2387 = vdwg.mxu0
    %2388 = vmatpush.bf16.msra.mxu0 %v2234
    %2389 = vmatpush.bf16.msra.mxu0 %v2230
    %2390 = vmatpush.bf16.msra.mxu0 %v2226
    %2391 = vmatpush.bf16.msra.mxu0 %v2222
    %2392 = vmatpush.bf16.msra.mxu0 %v2218
    %2393 = vmatpush.bf16.msra.mxu0 %v2214
    %2394 = vmatpush.bf16.msra.mxu0 %v2210
    %2395 = vmatpush.bf16.msra.mxu0 %v2206
    %2396 = vmatmul.bf16.gmra.mxu0 %v1427
    %v2397 = vpop.f32.mrf.mxu0
    %v2398 = vadd.f32 %v1980, %v2397
    %v2399 = vpop.f32.mrf.mxu0
    %v2400 = vadd.f32 %v1982, %v2399
    %2401 = vdwg.mxu0
    %2402 = vmatpush.bf16.msra.mxu0 %v2266
    %2403 = vmatpush.bf16.msra.mxu0 %v2262
    %2404 = vmatpush.bf16.msra.mxu0 %v2258
    %2405 = vmatpush.bf16.msra.mxu0 %v2254
    %2406 = vmatpush.bf16.msra.mxu0 %v2250
    %2407 = vmatpush.bf16.msra.mxu0 %v2246
    %2408 = vmatpush.bf16.msra.mxu0 %v2242
    %2409 = vmatpush.bf16.msra.mxu0 %v2238
    %2410 = vmatmul.bf16.gmra.mxu0 %v1433
    %v2411 = vpop.f32.mrf.mxu0
    %v2412 = vadd.f32 %v2398, %v2411
    %v2413 = vpop.f32.mrf.mxu0
    %v2414 = vadd.f32 %v2400, %v2413
    %2415 = vdwg.mxu0
    %2416 = vmatpush.bf16.msra.mxu0 %v2235
    %2417 = vmatpush.bf16.msra.mxu0 %v2231
    %2418 = vmatpush.bf16.msra.mxu0 %v2227
    %2419 = vmatpush.bf16.msra.mxu0 %v2223
    %2420 = vmatpush.bf16.msra.mxu0 %v2219
    %2421 = vmatpush.bf16.msra.mxu0 %v2215
    %2422 = vmatpush.bf16.msra.mxu0 %v2211
    %2423 = vmatpush.bf16.msra.mxu0 %v2207
    %2424 = vmatmul.bf16.gmra.mxu0 %v1427
    %v2425 = vpop.f32.mrf.mxu0
    %v2426 = vadd.f32 %v2008, %v2425
    %v2427 = vpop.f32.mrf.mxu0
    %v2428 = vadd.f32 %v2010, %v2427
    %2429 = vdwg.mxu0
    %2430 = vmatpush.bf16.msra.mxu0 %v2267
    %2431 = vmatpush.bf16.msra.mxu0 %v2263
    %2432 = vmatpush.bf16.msra.mxu0 %v2259
    %2433 = vmatpush.bf16.msra.mxu0 %v2255
    %2434 = vmatpush.bf16.msra.mxu0 %v2251
    %2435 = vmatpush.bf16.msra.mxu0 %v2247
    %2436 = vmatpush.bf16.msra.mxu0 %v2243
    %2437 = vmatpush.bf16.msra.mxu0 %v2239
    %2438 = vmatmul.bf16.gmra.mxu0 %v1433
    %v2439 = vpop.f32.mrf.mxu0
    %v2440 = vadd.f32 %v2426, %v2439
    %v2441 = vpop.f32.mrf.mxu0
    %v2442 = vadd.f32 %v2428, %v2441
    %2443 = vdwg.mxu0
    %v2444 = vld [vmem:[%s5] sm:$0xf]
    %v2445 = vld [vmem:[%s6] sm:$0xf]
    %v2447 = vperm.slane %v2444, 0
    %v2448 = vperm.slane %v2444, 1
    %v2449 = vperm.slane %v2444, 2
    %v2450 = vperm.slane %v2444, 3
    %v2455 = vmul.f32 %v2356, %v2447
    %v2456 = vmul.f32 %v2384, %v2448
    %v2457 = vmul.f32 %v2412, %v2449
    %v2458 = vmul.f32 %v2440, %v2450
    %v2459 = vmul.f32 %v2358, %v2447
    %v2460 = vmul.f32 %v2386, %v2448
    %v2461 = vmul.f32 %v2414, %v2449
    %v2462 = vmul.f32 %v2442, %v2450
    %v2464 = vperm.slane %v2445, 0
    %v2465 = vperm.slane %v2445, 1
    %v2466 = vperm.slane %v2445, 2
    %v2467 = vperm.slane %v2445, 3
    %v2472 = vadd.f32 %v2455, %v2464
    %v2473 = vadd.f32 %v2456, %v2465
    %v2474 = vadd.f32 %v2457, %v2466
    %v2475 = vadd.f32 %v2458, %v2467
    %v2476 = vadd.f32 %v2459, %v2464
    %v2477 = vadd.f32 %v2460, %v2465
    %v2478 = vadd.f32 %v2461, %v2466
    %v2479 = vadd.f32 %v2462, %v2467
    %v2480 = vmax.f32 %v2472, 0.0
    %v2481 = vmax.f32 %v2473, 0.0
    %v2482 = vmax.f32 %v2474, 0.0
    %v2483 = vmax.f32 %v2475, 0.0
    %v2484 = vmax.f32 %v2476, 0.0
    %v2485 = vmax.f32 %v2477, 0.0
    %v2486 = vmax.f32 %v2478, 0.0
    %v2487 = vmax.f32 %v2479, 0.0
    %v2488 = vmax.f32 %v2480, %v2481
    %v2489 = vmax.f32 %v2484, %v2485
    %v2490 = vmax.f32 %v2482, %v2483
    %v2491 = vmax.f32 %v2486, %v2487
    %v2492 = vmax.f32 %v2488, %v2490
    %v2493 = vmax.f32 %v2489, %v2491
    %v2494 = vpack.c.bf16 %v2493, %v2492
    %v2495 = vld [vmem:[%s7] sm:$0x1]
    %vm2496 = vcmask 113664
    %v2498 = vsel %vm2496, %v2495, 0
    %vm2500 = vcmask 1046528
    %v2502 = vsel %vm2500, %v2494, 0
    %2504 = vmatpush.bf16.msra.mxu0 0
    %2505 = vmatpush.bf16.msra.mxu0 0
    %2506 = vmatpush.bf16.msra.mxu0 0
    %2507 = vmatpush.bf16.msra.mxu0 0
    %2508 = vmatpush.bf16.msra.mxu0 0
    %2509 = vmatpush.bf16.msra.mxu0 0
    %2510 = vmatpush.bf16.msra.mxu0 0
    %2511 = vmatpush.bf16.msra.mxu0 %v2502
    %2512 = vmatmul.bf16.gmra.mxu0 %v2498
    %v2513 = vpop.f32.mrf.mxu0
    %v2514 = vadd.f32 0.0, %v2513
    %v2515 = vpop.f32.mrf.mxu0
    %2516 = vdwg.mxu0
    %s2517 = scalar_lea.vmem %s7, 1
    %v2518 = vld [vmem:[%s2517] sm:$0x1]
    %v2520 = vsel %vm2496, %v2518, 0
    %2522 = vmatpush.bf16.msra.mxu0 0
    %2523 = vmatpush.bf16.msra.mxu0 0
    %2524 = vmatpush.bf16.msra.mxu0 0
    %2525 = vmatpush.bf16.msra.mxu0 0
    %2526 = vmatpush.bf16.msra.mxu0 0
    %2527 = vmatpush.bf16.msra.mxu0 0
    %2528 = vmatpush.bf16.msra.mxu0 0
    %2529 = vmatpush.bf16.msra.mxu0 %v2502
    %2530 = vmatmul.bf16.gmra.mxu0 %v2520
    %v2531 = vpop.f32.mrf.mxu0
    %v2532 = vadd.f32 0.0, %v2531
    %v2533 = vpop.f32.mrf.mxu0
    %2534 = vdwg.mxu0
    %s2535 = scalar_lea.vmem %s7, 2
    %v2536 = vld [vmem:[%s2535] sm:$0x1]
    %v2538 = vsel %vm2496, %v2536, 0
    %2540 = vmatpush.bf16.msra.mxu0 0
    %2541 = vmatpush.bf16.msra.mxu0 0
    %2542 = vmatpush.bf16.msra.mxu0 0
    %2543 = vmatpush.bf16.msra.mxu0 0
    %2544 = vmatpush.bf16.msra.mxu0 0
    %2545 = vmatpush.bf16.msra.mxu0 0
    %2546 = vmatpush.bf16.msra.mxu0 0
    %2547 = vmatpush.bf16.msra.mxu0 %v2502
    %2548 = vmatmul.bf16.gmra.mxu0 %v2538
    %v2549 = vpop.f32.mrf.mxu0
    %v2550 = vadd.f32 0.0, %v2549
    %v2551 = vpop.f32.mrf.mxu0
    %2552 = vdwg.mxu0
    %s2553 = scalar_lea.vmem %s7, 3
    %v2554 = vld [vmem:[%s2553] sm:$0x1]
    %v2556 = vsel %vm2496, %v2554, 0
    %2558 = vmatpush.bf16.msra.mxu0 0
    %2559 = vmatpush.bf16.msra.mxu0 0
    %2560 = vmatpush.bf16.msra.mxu0 0
    %2561 = vmatpush.bf16.msra.mxu0 0
    %2562 = vmatpush.bf16.msra.mxu0 0
    %2563 = vmatpush.bf16.msra.mxu0 0
    %2564 = vmatpush.bf16.msra.mxu0 0
    %2565 = vmatpush.bf16.msra.mxu0 %v2502
    %2566 = vmatmul.bf16.gmra.mxu0 %v2556
    %v2567 = vpop.f32.mrf.mxu0
    %v2568 = vadd.f32 0.0, %v2567
    %v2569 = vpop.f32.mrf.mxu0
    %2570 = vdwg.mxu0
    %s2571 = scalar_lea.vmem %s7, 4
    %v2572 = vld [vmem:[%s2571] sm:$0x1]
    %v2574 = vsel %vm2496, %v2572, 0
    %2576 = vmatpush.bf16.msra.mxu0 0
    %2577 = vmatpush.bf16.msra.mxu0 0
    %2578 = vmatpush.bf16.msra.mxu0 0
    %2579 = vmatpush.bf16.msra.mxu0 0
    %2580 = vmatpush.bf16.msra.mxu0 0
    %2581 = vmatpush.bf16.msra.mxu0 0
    %2582 = vmatpush.bf16.msra.mxu0 0
    %2583 = vmatpush.bf16.msra.mxu0 %v2502
    %2584 = vmatmul.bf16.gmra.mxu0 %v2574
    %v2585 = vpop.f32.mrf.mxu0
    %v2586 = vadd.f32 0.0, %v2585
    %v2587 = vpop.f32.mrf.mxu0
    %2588 = vdwg.mxu0
    %s2589 = scalar_lea.vmem %s7, 5
    %v2590 = vld [vmem:[%s2589] sm:$0x1]
    %v2592 = vsel %vm2496, %v2590, 0
    %2594 = vmatpush.bf16.msra.mxu0 0
    %2595 = vmatpush.bf16.msra.mxu0 0
    %2596 = vmatpush.bf16.msra.mxu0 0
    %2597 = vmatpush.bf16.msra.mxu0 0
    %2598 = vmatpush.bf16.msra.mxu0 0
    %2599 = vmatpush.bf16.msra.mxu0 0
    %2600 = vmatpush.bf16.msra.mxu0 0
    %2601 = vmatpush.bf16.msra.mxu0 %v2502
    %2602 = vmatmul.bf16.gmra.mxu0 %v2592
    %v2603 = vpop.f32.mrf.mxu0
    %v2604 = vadd.f32 0.0, %v2603
    %v2605 = vpop.f32.mrf.mxu0
    %2606 = vdwg.mxu0
    %v2607 = vpack.c.bf16 %v2514, %v2514
    %v2608 = vpack.c.bf16 %v2532, %v2532
    %v2609 = vpack.c.bf16 %v2550, %v2550
    %v2610 = vpack.c.bf16 %v2568, %v2568
    %v2611 = vpack.c.bf16 %v2586, %v2586
    %v2612 = vpack.c.bf16 %v2604, %v2604
    %v2613 = vld [vmem:[%s8] sm:$0xf]
    %v2614 = vld [vmem:[%s8 + $0x4] sm:$0xf]
    %v2615 = vld [vmem:[%s8 + $0x8] sm:$0xf]
    %v2616 = vld [vmem:[%s8 + $0xc] sm:$0xf]
    %v2617 = vld [vmem:[%s8 + $0x10] sm:$0xf]
    %v2618 = vld [vmem:[%s8 + $0x14] sm:$0xf]
    %v2619 = vld [vmem:[%s8 + $0x18] sm:$0xf]
    %v2620 = vld [vmem:[%s8 + $0x1c] sm:$0xf]
    %v2621 = vld [vmem:[%s8 + $0x20] sm:$0xf]
    %v2622 = vld [vmem:[%s8 + $0x24] sm:$0xf]
    %v2623 = vld [vmem:[%s8 + $0x28] sm:$0xf]
    %v2624 = vld [vmem:[%s8 + $0x2c] sm:$0xf]
    %v2625 = vld [vmem:[%s8 + $0x30] sm:$0xf]
    %v2626 = vld [vmem:[%s8 + $0x34] sm:$0xf]
    %v2627 = vld [vmem:[%s8 + $0x38] sm:$0xf]
    %v2628 = vld [vmem:[%s8 + $0x3c] sm:$0xf]
    %v2629 = vld [vmem:[%s8 + $0x40] sm:$0xf]
    %v2630 = vld [vmem:[%s8 + $0x44] sm:$0xf]
    %v2631 = vld [vmem:[%s8 + $0x48] sm:$0xf]
    %v2632 = vld [vmem:[%s8 + $0x4c] sm:$0xf]
    %v2633 = vld [vmem:[%s8 + $0x50] sm:$0xf]
    %v2634 = vld [vmem:[%s8 + $0x54] sm:$0xf]
    %v2635 = vld [vmem:[%s8 + $0x58] sm:$0xf]
    %v2636 = vld [vmem:[%s8 + $0x5c] sm:$0xf]
    %v2637 = vld [vmem:[%s8 + $0x60] sm:$0xf]
    %v2638 = vld [vmem:[%s8 + $0x64] sm:$0xf]
    %v2639 = vld [vmem:[%s8 + $0x68] sm:$0xf]
    %v2640 = vld [vmem:[%s8 + $0x6c] sm:$0xf]
    %v2641 = vld [vmem:[%s8 + $0x70] sm:$0xf]
    %v2642 = vld [vmem:[%s8 + $0x74] sm:$0xf]
    %v2643 = vld [vmem:[%s8 + $0x78] sm:$0xf]
    %v2644 = vld [vmem:[%s8 + $0x7c] sm:$0xf]
    %v2645 = vld [vmem:[%s8 + $0x80] sm:$0xf]
    %v2646 = vld [vmem:[%s8 + $0x84] sm:$0xf]
    %v2647 = vld [vmem:[%s8 + $0x88] sm:$0xf]
    %v2648 = vld [vmem:[%s8 + $0x8c] sm:$0xf]
    %v2649 = vld [vmem:[%s8 + $0x90] sm:$0xf]
    %v2650 = vld [vmem:[%s8 + $0x94] sm:$0xf]
    %v2651 = vld [vmem:[%s8 + $0x98] sm:$0xf]
    %v2652 = vld [vmem:[%s8 + $0x9c] sm:$0xf]
    %v2653 = vld [vmem:[%s8 + $0xa0] sm:$0xf]
    %v2654 = vld [vmem:[%s8 + $0xa4] sm:$0xf]
    %v2655 = vld [vmem:[%s8 + $0xa8] sm:$0xf]
    %v2656 = vld [vmem:[%s8 + $0xac] sm:$0xf]
    %v2657 = vld [vmem:[%s8 + $0xb0] sm:$0xf]
    %v2658 = vld [vmem:[%s8 + $0xb4] sm:$0xf]
    %v2659 = vld [vmem:[%s8 + $0xb8] sm:$0xf]
    %v2660 = vld [vmem:[%s8 + $0xbc] sm:$0xf]
    %v2661 = vld [vmem:[%s8 + $0xc0] sm:$0xf]
    %v2662 = vld [vmem:[%s8 + $0xc4] sm:$0xf]
    %v2663 = vld [vmem:[%s8 + $0xc8] sm:$0xf]
    %v2664 = vld [vmem:[%s8 + $0xcc] sm:$0xf]
    %v2665 = vld [vmem:[%s8 + $0xd0] sm:$0xf]
    %v2666 = vld [vmem:[%s8 + $0xd4] sm:$0xf]
    %v2667 = vld [vmem:[%s8 + $0xd8] sm:$0xf]
    %v2668 = vld [vmem:[%s8 + $0xdc] sm:$0xf]
    %v2669 = vld [vmem:[%s8 + $0xe0] sm:$0xf]
    %v2670 = vld [vmem:[%s8 + $0xe4] sm:$0xf]
    %v2671 = vld [vmem:[%s8 + $0xe8] sm:$0xf]
    %v2672 = vld [vmem:[%s8 + $0xec] sm:$0xf]
    %v2673 = vld [vmem:[%s8 + $0xf0] sm:$0xf]
    %v2674 = vld [vmem:[%s8 + $0xf4] sm:$0xf]
    %v2675 = vld [vmem:[%s8 + $0xf8] sm:$0xf]
    %v2676 = vld [vmem:[%s8 + $0xfc] sm:$0xf]
    %v2677 = vld [vmem:[%s8 + $0x100] sm:$0xf]
    %v2678 = vld [vmem:[%s8 + $0x104] sm:$0xf]
    %v2679 = vld [vmem:[%s8 + $0x108] sm:$0xf]
    %v2680 = vld [vmem:[%s8 + $0x10c] sm:$0xf]
    %v2681 = vld [vmem:[%s8 + $0x110] sm:$0xf]
    %v2682 = vld [vmem:[%s8 + $0x114] sm:$0xf]
    %v2683 = vld [vmem:[%s8 + $0x118] sm:$0xf]
    %v2684 = vld [vmem:[%s8 + $0x11c] sm:$0xf]
    %v2685 = vld [vmem:[%s8 + $0x120] sm:$0xf]
    %v2686 = vld [vmem:[%s8 + $0x124] sm:$0xf]
    %v2687 = vld [vmem:[%s8 + $0x128] sm:$0xf]
    %v2688 = vld [vmem:[%s8 + $0x12c] sm:$0xf]
    %v2689 = vld [vmem:[%s8 + $0x130] sm:$0xf]
    %v2690 = vld [vmem:[%s8 + $0x134] sm:$0xf]
    %v2691 = vld [vmem:[%s8 + $0x138] sm:$0xf]
    %v2692 = vld [vmem:[%s8 + $0x13c] sm:$0xf]
    %v2693 = vld [vmem:[%s8 + $0x140] sm:$0xf]
    %v2694 = vld [vmem:[%s8 + $0x144] sm:$0xf]
    %v2695 = vld [vmem:[%s8 + $0x148] sm:$0xf]
    %v2696 = vld [vmem:[%s8 + $0x14c] sm:$0xf]
    %v2697 = vld [vmem:[%s8 + $0x150] sm:$0xf]
    %v2698 = vld [vmem:[%s8 + $0x154] sm:$0xf]
    %v2699 = vld [vmem:[%s8 + $0x158] sm:$0xf]
    %v2700 = vld [vmem:[%s8 + $0x15c] sm:$0xf]
    %v2701 = vld [vmem:[%s8 + $0x160] sm:$0xf]
    %v2702 = vld [vmem:[%s8 + $0x164] sm:$0xf]
    %v2703 = vld [vmem:[%s8 + $0x168] sm:$0xf]
    %v2704 = vld [vmem:[%s8 + $0x16c] sm:$0xf]
    %v2705 = vld [vmem:[%s8 + $0x170] sm:$0xf]
    %v2706 = vld [vmem:[%s8 + $0x174] sm:$0xf]
    %v2707 = vld [vmem:[%s8 + $0x178] sm:$0xf]
    %v2708 = vld [vmem:[%s8 + $0x17c] sm:$0xf]
    %v2709 = vld [vmem:[%s9] sm:$0x1]
    %v2711 = vperm.slane %v2709, 0
    %v2809 = vunpack.c.l.b16 %v2613
    %v2810 = vunpack.c.l.b16 %v2614
    %v2811 = vunpack.c.l.b16 %v2615
    %v2812 = vunpack.c.l.b16 %v2616
    %v2813 = vunpack.c.l.b16 %v2617
    %v2814 = vunpack.c.l.b16 %v2618
    %v2815 = vunpack.c.l.b16 %v2619
    %v2816 = vunpack.c.l.b16 %v2620
    %v2817 = vunpack.c.l.b16 %v2621
    %v2818 = vunpack.c.l.b16 %v2622
    %v2819 = vunpack.c.l.b16 %v2623
    %v2820 = vunpack.c.l.b16 %v2624
    %v2821 = vunpack.c.l.b16 %v2625
    %v2822 = vunpack.c.l.b16 %v2626
    %v2823 = vunpack.c.l.b16 %v2627
    %v2824 = vunpack.c.l.b16 %v2628
    %v2825 = vunpack.c.l.b16 %v2629
    %v2826 = vunpack.c.l.b16 %v2630
    %v2827 = vunpack.c.l.b16 %v2631
    %v2828 = vunpack.c.l.b16 %v2632
    %v2829 = vunpack.c.l.b16 %v2633
    %v2830 = vunpack.c.l.b16 %v2634
    %v2831 = vunpack.c.l.b16 %v2635
    %v2832 = vunpack.c.l.b16 %v2636
    %v2833 = vunpack.c.l.b16 %v2637
    %v2834 = vunpack.c.l.b16 %v2638
    %v2835 = vunpack.c.l.b16 %v2639
    %v2836 = vunpack.c.l.b16 %v2640
    %v2837 = vunpack.c.l.b16 %v2641
    %v2838 = vunpack.c.l.b16 %v2642
    %v2839 = vunpack.c.l.b16 %v2643
    %v2840 = vunpack.c.l.b16 %v2644
    %v2841 = vunpack.c.l.b16 %v2645
    %v2842 = vunpack.c.l.b16 %v2646
    %v2843 = vunpack.c.l.b16 %v2647
    %v2844 = vunpack.c.l.b16 %v2648
    %v2845 = vunpack.c.l.b16 %v2649
    %v2846 = vunpack.c.l.b16 %v2650
    %v2847 = vunpack.c.l.b16 %v2651
    %v2848 = vunpack.c.l.b16 %v2652
    %v2849 = vunpack.c.l.b16 %v2653
    %v2850 = vunpack.c.l.b16 %v2654
    %v2851 = vunpack.c.l.b16 %v2655
    %v2852 = vunpack.c.l.b16 %v2656
    %v2853 = vunpack.c.l.b16 %v2657
    %v2854 = vunpack.c.l.b16 %v2658
    %v2855 = vunpack.c.l.b16 %v2659
    %v2856 = vunpack.c.l.b16 %v2660
    %v2857 = vunpack.c.l.b16 %v2661
    %v2858 = vunpack.c.l.b16 %v2662
    %v2859 = vunpack.c.l.b16 %v2663
    %v2860 = vunpack.c.l.b16 %v2664
    %v2861 = vunpack.c.l.b16 %v2665
    %v2862 = vunpack.c.l.b16 %v2666
    %v2863 = vunpack.c.l.b16 %v2667
    %v2864 = vunpack.c.l.b16 %v2668
    %v2865 = vunpack.c.l.b16 %v2669
    %v2866 = vunpack.c.l.b16 %v2670
    %v2867 = vunpack.c.l.b16 %v2671
    %v2868 = vunpack.c.l.b16 %v2672
    %v2869 = vunpack.c.l.b16 %v2673
    %v2870 = vunpack.c.l.b16 %v2674
    %v2871 = vunpack.c.l.b16 %v2675
    %v2872 = vunpack.c.l.b16 %v2676
    %v2873 = vunpack.c.l.b16 %v2677
    %v2874 = vunpack.c.l.b16 %v2678
    %v2875 = vunpack.c.l.b16 %v2679
    %v2876 = vunpack.c.l.b16 %v2680
    %v2877 = vunpack.c.l.b16 %v2681
    %v2878 = vunpack.c.l.b16 %v2682
    %v2879 = vunpack.c.l.b16 %v2683
    %v2880 = vunpack.c.l.b16 %v2684
    %v2881 = vunpack.c.l.b16 %v2685
    %v2882 = vunpack.c.l.b16 %v2686
    %v2883 = vunpack.c.l.b16 %v2687
    %v2884 = vunpack.c.l.b16 %v2688
    %v2885 = vunpack.c.l.b16 %v2689
    %v2886 = vunpack.c.l.b16 %v2690
    %v2887 = vunpack.c.l.b16 %v2691
    %v2888 = vunpack.c.l.b16 %v2692
    %v2889 = vunpack.c.l.b16 %v2693
    %v2890 = vunpack.c.l.b16 %v2694
    %v2891 = vunpack.c.l.b16 %v2695
    %v2892 = vunpack.c.l.b16 %v2696
    %v2893 = vunpack.c.l.b16 %v2697
    %v2894 = vunpack.c.l.b16 %v2698
    %v2895 = vunpack.c.l.b16 %v2699
    %v2896 = vunpack.c.l.b16 %v2700
    %v2897 = vunpack.c.l.b16 %v2701
    %v2898 = vunpack.c.l.b16 %v2702
    %v2899 = vunpack.c.l.b16 %v2703
    %v2900 = vunpack.c.l.b16 %v2704
    %v2901 = vunpack.c.l.b16 %v2705
    %v2902 = vunpack.c.l.b16 %v2706
    %v2903 = vunpack.c.l.b16 %v2707
    %v2904 = vunpack.c.l.b16 %v2708
    %v2905 = vpack.c.b16 %v2810, %v2809
    %v2906 = vpack.c.b16 %v2812, %v2811
    %v2907 = vpack.c.b16 %v2814, %v2813
    %v2908 = vpack.c.b16 %v2816, %v2815
    %v2909 = vpack.c.b16 %v2818, %v2817
    %v2910 = vpack.c.b16 %v2820, %v2819
    %v2911 = vpack.c.b16 %v2822, %v2821
    %v2912 = vpack.c.b16 %v2824, %v2823
    %v2913 = vpack.c.b16 %v2826, %v2825
    %v2914 = vpack.c.b16 %v2828, %v2827
    %v2915 = vpack.c.b16 %v2830, %v2829
    %v2916 = vpack.c.b16 %v2832, %v2831
    %v2917 = vpack.c.b16 %v2834, %v2833
    %v2918 = vpack.c.b16 %v2836, %v2835
    %v2919 = vpack.c.b16 %v2838, %v2837
    %v2920 = vpack.c.b16 %v2840, %v2839
    %v2921 = vpack.c.b16 %v2842, %v2841
    %v2922 = vpack.c.b16 %v2844, %v2843
    %v2923 = vpack.c.b16 %v2846, %v2845
    %v2924 = vpack.c.b16 %v2848, %v2847
    %v2925 = vpack.c.b16 %v2850, %v2849
    %v2926 = vpack.c.b16 %v2852, %v2851
    %v2927 = vpack.c.b16 %v2854, %v2853
    %v2928 = vpack.c.b16 %v2856, %v2855
    %v2929 = vpack.c.b16 %v2858, %v2857
    %v2930 = vpack.c.b16 %v2860, %v2859
    %v2931 = vpack.c.b16 %v2862, %v2861
    %v2932 = vpack.c.b16 %v2864, %v2863
    %v2933 = vpack.c.b16 %v2866, %v2865
    %v2934 = vpack.c.b16 %v2868, %v2867
    %v2935 = vpack.c.b16 %v2870, %v2869
    %v2936 = vpack.c.b16 %v2872, %v2871
    %v2937 = vpack.c.b16 %v2874, %v2873
    %v2938 = vpack.c.b16 %v2876, %v2875
    %v2939 = vpack.c.b16 %v2878, %v2877
    %v2940 = vpack.c.b16 %v2880, %v2879
    %v2941 = vpack.c.b16 %v2882, %v2881
    %v2942 = vpack.c.b16 %v2884, %v2883
    %v2943 = vpack.c.b16 %v2886, %v2885
    %v2944 = vpack.c.b16 %v2888, %v2887
    %v2945 = vpack.c.b16 %v2890, %v2889
    %v2946 = vpack.c.b16 %v2892, %v2891
    %v2947 = vpack.c.b16 %v2894, %v2893
    %v2948 = vpack.c.b16 %v2896, %v2895
    %v2949 = vpack.c.b16 %v2898, %v2897
    %v2950 = vpack.c.b16 %v2900, %v2899
    %v2951 = vpack.c.b16 %v2902, %v2901
    %v2952 = vpack.c.b16 %v2904, %v2903
    %3001 = vmatpush.bf16.msra.mxu0 %v2912
    %3002 = vmatpush.bf16.msra.mxu0 %v2911
    %3003 = vmatpush.bf16.msra.mxu0 %v2910
    %3004 = vmatpush.bf16.msra.mxu0 %v2909
    %3005 = vmatpush.bf16.msra.mxu0 %v2908
    %3006 = vmatpush.bf16.msra.mxu0 %v2907
    %3007 = vmatpush.bf16.msra.mxu0 %v2906
    %3008 = vmatpush.bf16.msra.mxu0 %v2905
    %3009 = vmatmul.bf16.gmra.mxu0 %v2607
    %v3010 = vpop.f32.mrf.mxu0
    %v3011 = vadd.f32 %v2711, %v3010
    %v3012 = vpop.f32.mrf.mxu0
    %3013 = vdwg.mxu0
    %3014 = vmatpush.bf16.msra.mxu0 %v2920
    %3015 = vmatpush.bf16.msra.mxu0 %v2919
    %3016 = vmatpush.bf16.msra.mxu0 %v2918
    %3017 = vmatpush.bf16.msra.mxu0 %v2917
    %3018 = vmatpush.bf16.msra.mxu0 %v2916
    %3019 = vmatpush.bf16.msra.mxu0 %v2915
    %3020 = vmatpush.bf16.msra.mxu0 %v2914
    %3021 = vmatpush.bf16.msra.mxu0 %v2913
    %3022 = vmatmul.bf16.gmra.mxu0 %v2608
    %v3023 = vpop.f32.mrf.mxu0
    %v3024 = vadd.f32 %v3011, %v3023
    %v3025 = vpop.f32.mrf.mxu0
    %3026 = vdwg.mxu0
    %3027 = vmatpush.bf16.msra.mxu0 %v2928
    %3028 = vmatpush.bf16.msra.mxu0 %v2927
    %3029 = vmatpush.bf16.msra.mxu0 %v2926
    %3030 = vmatpush.bf16.msra.mxu0 %v2925
    %3031 = vmatpush.bf16.msra.mxu0 %v2924
    %3032 = vmatpush.bf16.msra.mxu0 %v2923
    %3033 = vmatpush.bf16.msra.mxu0 %v2922
    %3034 = vmatpush.bf16.msra.mxu0 %v2921
    %3035 = vmatmul.bf16.gmra.mxu0 %v2609
    %v3036 = vpop.f32.mrf.mxu0
    %v3037 = vadd.f32 %v3024, %v3036
    %v3038 = vpop.f32.mrf.mxu0
    %3039 = vdwg.mxu0
    %3040 = vmatpush.bf16.msra.mxu0 %v2936
    %3041 = vmatpush.bf16.msra.mxu0 %v2935
    %3042 = vmatpush.bf16.msra.mxu0 %v2934
    %3043 = vmatpush.bf16.msra.mxu0 %v2933
    %3044 = vmatpush.bf16.msra.mxu0 %v2932
    %3045 = vmatpush.bf16.msra.mxu0 %v2931
    %3046 = vmatpush.bf16.msra.mxu0 %v2930
    %3047 = vmatpush.bf16.msra.mxu0 %v2929
    %3048 = vmatmul.bf16.gmra.mxu0 %v2610
    %v3049 = vpop.f32.mrf.mxu0
    %v3050 = vadd.f32 %v3037, %v3049
    %v3051 = vpop.f32.mrf.mxu0
    %3052 = vdwg.mxu0
    %3053 = vmatpush.bf16.msra.mxu0 %v2944
    %3054 = vmatpush.bf16.msra.mxu0 %v2943
    %3055 = vmatpush.bf16.msra.mxu0 %v2942
    %3056 = vmatpush.bf16.msra.mxu0 %v2941
    %3057 = vmatpush.bf16.msra.mxu0 %v2940
    %3058 = vmatpush.bf16.msra.mxu0 %v2939
    %3059 = vmatpush.bf16.msra.mxu0 %v2938
    %3060 = vmatpush.bf16.msra.mxu0 %v2937
    %3061 = vmatmul.bf16.gmra.mxu0 %v2611
    %v3062 = vpop.f32.mrf.mxu0
    %v3063 = vadd.f32 %v3050, %v3062
    %v3064 = vpop.f32.mrf.mxu0
    %3065 = vdwg.mxu0
    %3066 = vmatpush.bf16.msra.mxu0 %v2952
    %3067 = vmatpush.bf16.msra.mxu0 %v2951
    %3068 = vmatpush.bf16.msra.mxu0 %v2950
    %3069 = vmatpush.bf16.msra.mxu0 %v2949
    %3070 = vmatpush.bf16.msra.mxu0 %v2948
    %3071 = vmatpush.bf16.msra.mxu0 %v2947
    %3072 = vmatpush.bf16.msra.mxu0 %v2946
    %3073 = vmatpush.bf16.msra.mxu0 %v2945
    %3074 = vmatmul.bf16.gmra.mxu0 %v2612
    %v3075 = vpop.f32.mrf.mxu0
    %v3076 = vadd.f32 %v3063, %v3075
    %v3077 = vpop.f32.mrf.mxu0
    %3078 = vdwg.mxu0
    %v3079 = vmax.f32 %v3076, 0.0
    %v3080 = vpack.c.bf16 %v3079, %v3079
    %v3081 = vld [vmem:[%s10] sm:$0xf]
    %v3082 = vld [vmem:[%s10 + $0x4] sm:$0xf]
    %v3083 = vld [vmem:[%s10 + $0x8] sm:$0xf]
    %v3084 = vld [vmem:[%s10 + $0xc] sm:$0xf]
    %v3085 = vld [vmem:[%s10 + $0x10] sm:$0xf]
    %v3086 = vld [vmem:[%s10 + $0x14] sm:$0xf]
    %v3087 = vld [vmem:[%s10 + $0x18] sm:$0xf]
    %v3088 = vld [vmem:[%s10 + $0x1c] sm:$0xf]
    %v3089 = vld [vmem:[%s10 + $0x20] sm:$0xf]
    %v3090 = vld [vmem:[%s10 + $0x24] sm:$0xf]
    %v3091 = vld [vmem:[%s10 + $0x28] sm:$0xf]
    %v3092 = vld [vmem:[%s10 + $0x2c] sm:$0xf]
    %v3093 = vld [vmem:[%s10 + $0x30] sm:$0xf]
    %v3094 = vld [vmem:[%s10 + $0x34] sm:$0xf]
    %v3095 = vld [vmem:[%s10 + $0x38] sm:$0xf]
    %v3096 = vld [vmem:[%s10 + $0x3c] sm:$0xf]
    %v3097 = vld [vmem:[%s11] sm:$0x1]
    %v3099 = vperm.slane %v3097, 0
    %v3117 = vunpack.c.l.b16 %v3081
    %v3118 = vunpack.c.l.b16 %v3082
    %v3119 = vunpack.c.l.b16 %v3083
    %v3120 = vunpack.c.l.b16 %v3084
    %v3121 = vunpack.c.l.b16 %v3085
    %v3122 = vunpack.c.l.b16 %v3086
    %v3123 = vunpack.c.l.b16 %v3087
    %v3124 = vunpack.c.l.b16 %v3088
    %v3125 = vunpack.c.l.b16 %v3089
    %v3126 = vunpack.c.l.b16 %v3090
    %v3127 = vunpack.c.l.b16 %v3091
    %v3128 = vunpack.c.l.b16 %v3092
    %v3129 = vunpack.c.l.b16 %v3093
    %v3130 = vunpack.c.l.b16 %v3094
    %v3131 = vunpack.c.l.b16 %v3095
    %v3132 = vunpack.c.l.b16 %v3096
    %v3133 = vpack.c.b16 %v3118, %v3117
    %v3134 = vpack.c.b16 %v3120, %v3119
    %v3135 = vpack.c.b16 %v3122, %v3121
    %v3136 = vpack.c.b16 %v3124, %v3123
    %v3137 = vpack.c.b16 %v3126, %v3125
    %v3138 = vpack.c.b16 %v3128, %v3127
    %v3139 = vpack.c.b16 %v3130, %v3129
    %v3140 = vpack.c.b16 %v3132, %v3131
    %3149 = vmatpush.bf16.msra.mxu0 %v3140
    %3150 = vmatpush.bf16.msra.mxu0 %v3139
    %3151 = vmatpush.bf16.msra.mxu0 %v3138
    %3152 = vmatpush.bf16.msra.mxu0 %v3137
    %3153 = vmatpush.bf16.msra.mxu0 %v3136
    %3154 = vmatpush.bf16.msra.mxu0 %v3135
    %3155 = vmatpush.bf16.msra.mxu0 %v3134
    %3156 = vmatpush.bf16.msra.mxu0 %v3133
    %3157 = vmatmul.bf16.gmra.mxu0 %v3080
    %v3158 = vpop.f32.mrf.mxu0
    %v3159 = vadd.f32 %v3099, %v3158
    %v3160 = vpop.f32.mrf.mxu0
    %3161 = vdwg.mxu0
    %v3162 = vmax.f32 %v3159, 0.0
    %v3163 = vpack.c.bf16 %v3162, %v3162
    %v3164 = vld [vmem:[%s12] sm:$0xf]
    %v3165 = vld [vmem:[%s12 + $0x4] sm:$0xf]
    %v3166 = vld [vmem:[%s12 + $0x8] sm:$0xf]
    %v3167 = vld [vmem:[%s12 + $0xc] sm:$0xf]
    %v3168 = vld [vmem:[%s12 + $0x10] sm:$0xf]
    %v3169 = vld [vmem:[%s12 + $0x14] sm:$0xf]
    %v3170 = vld [vmem:[%s12 + $0x18] sm:$0xf]
    %v3171 = vld [vmem:[%s12 + $0x1c] sm:$0xf]
    %v3172 = vld [vmem:[%s12 + $0x20] sm:$0xf]
    %v3173 = vld [vmem:[%s12 + $0x24] sm:$0xf]
    %v3174 = vld [vmem:[%s12 + $0x28] sm:$0xf]
    %v3175 = vld [vmem:[%s12 + $0x2c] sm:$0xf]
    %v3176 = vld [vmem:[%s12 + $0x30] sm:$0xf]
    %v3177 = vld [vmem:[%s12 + $0x34] sm:$0xf]
    %v3178 = vld [vmem:[%s12 + $0x38] sm:$0xf]
    %v3179 = vld [vmem:[%s12 + $0x3c] sm:$0xf]
    %v3180 = vld [vmem:[%s13] sm:$0x1]
    %v3182 = vperm.slane %v3180, 0
    %v3200 = vunpack.c.l.b16 %v3164
    %v3201 = vunpack.c.l.b16 %v3165
    %v3202 = vunpack.c.l.b16 %v3166
    %v3203 = vunpack.c.l.b16 %v3167
    %v3204 = vunpack.c.l.b16 %v3168
    %v3205 = vunpack.c.l.b16 %v3169
    %v3206 = vunpack.c.l.b16 %v3170
    %v3207 = vunpack.c.l.b16 %v3171
    %v3208 = vunpack.c.l.b16 %v3172
    %v3209 = vunpack.c.l.b16 %v3173
    %v3210 = vunpack.c.l.b16 %v3174
    %v3211 = vunpack.c.l.b16 %v3175
    %v3212 = vunpack.c.l.b16 %v3176
    %v3213 = vunpack.c.l.b16 %v3177
    %v3214 = vunpack.c.l.b16 %v3178
    %v3215 = vunpack.c.l.b16 %v3179
    %v3216 = vpack.c.b16 %v3201, %v3200
    %v3217 = vpack.c.b16 %v3203, %v3202
    %v3218 = vpack.c.b16 %v3205, %v3204
    %v3219 = vpack.c.b16 %v3207, %v3206
    %v3220 = vpack.c.b16 %v3209, %v3208
    %v3221 = vpack.c.b16 %v3211, %v3210
    %v3222 = vpack.c.b16 %v3213, %v3212
    %v3223 = vpack.c.b16 %v3215, %v3214
    %3232 = vmatpush.bf16.msra.mxu0 %v3223
    %3233 = vmatpush.bf16.msra.mxu0 %v3222
    %3234 = vmatpush.bf16.msra.mxu0 %v3221
    %3235 = vmatpush.bf16.msra.mxu0 %v3220
    %3236 = vmatpush.bf16.msra.mxu0 %v3219
    %3237 = vmatpush.bf16.msra.mxu0 %v3218
    %3238 = vmatpush.bf16.msra.mxu0 %v3217
    %3239 = vmatpush.bf16.msra.mxu0 %v3216
    %3240 = vmatmul.bf16.gmra.mxu0 %v3163
    %v3241 = vpop.f32.mrf.mxu0
    %v3242 = vadd.f32 %v3182, %v3241
    %v3243 = vpop.f32.mrf.mxu0
    %3244 = vdwg.mxu0
    %3245 = vst [vmem:[#allocation7] sm:$0x3] %v3242
    // Predicated region
    $region66: #{lenet5_forward.1} parent=1 // pred_check
      _
    $region67: #{lenet5_forward.1} parent=1 // pred_check_branch
      %3247 = sbr.rel (0) target = $region69
    $region68: #{lenet5_forward.1} parent=1 // pred_region
      %3249 = vsyncadd [#allocation4], 0
      %s3251 = sshll.u32 [#allocation7], 4
      %s3252 = int_to_ptr.vmem [resolvable:$true] %s3251
      %s3253 = sshll.u32 %s14, 4
      %s3254 = int_to_ptr.hbm [resolvable:$true] %s3253
      %3256 = dma.vmem_to_hbm [thread:$0]  %s3252, 32, %s3254, [#allocation4]
    $region69: #{lenet5_forward.1} parent=1 // pred_fallthru
      _
    // Predicated region
    $region70: #{lenet5_forward.1} parent=1 // pred_check
      _
    $region71: #{lenet5_forward.1} parent=1 // pred_check_branch
      %3258 = sbr.rel (0) target = $region73
    $region72: #{lenet5_forward.1} parent=1 // pred_region
      %3260 = dma.done [#allocation4], 32
    $region73: #{lenet5_forward.1} parent=1 // pred_fallthru
      _
    %3261 = vsyncpa [#allocation3], 1
    %3262 = vsyncpa [#allocation6], 1
    %3263 = vsyncpa [#allocation4], 1

</llo_original>
